<compile_context>
chip_gen: v7x
topology: tpu7x:2x2x1
jax: 0.10.0
libtpu: 0.0.40
codegen_flags: <defaults>
</compile_context>

<pallas_src>
import math

import jax
import jax.numpy as jnp
from jax.experimental import pallas as pl
from jax.experimental.pallas import tpu as pltpu


# ----------------------------------------------------------------------------
# Row-block size selection.
# Legality: R divides H, R is even, and (R % 16 == 0 or R == H) so the
# lane-dense pooled-output block has R//2 divisible by 8 (sublane) or equal to
# the full H//2 extent.  Among legal sizes, pick the largest whose live VMEM
# (bf16 tap slab + f32 accumulator + double-buffered I/O blocks) stays small
# enough for the v7x 64 MiB / 32 MiB-scoped budget, capped at `max_rows` so
# there are multiple grid steps to pipeline.
# ----------------------------------------------------------------------------
def _pick_row_block(H, W, Cin, Cout, max_rows):
    cands = sorted({H} | {R for R in range(16, H, 16) if H % R == 0})

    def live_bytes(R):
        taps = (R + 2) * W * 3 * Cin * 2 * 2          # bf16 tap slab + shifted copies
        acc = R * W * Cout * 4 * 2                    # f32 accumulator + pool temps
        io = 2 * (R * W * Cin * 2                     # double-buffered input block
                  + (R // 2) * (W // 2) * Cout * 4)   # double-buffered output block
        return taps + acc + io

    fits = [R for R in cands if live_bytes(R) <= (8 << 20)] or cands[:1]
    capped = [R for R in fits if R <= max_rows] or fits[:1]
    return max(capped)


# ----------------------------------------------------------------------------
# Fused VGG stage kernel on one row block.
#   x_ref : (1, R, W, Cin)           bf16 conv rows [r*R, r*R + R)
#   xt_ref: (1, 1, W, Cin)           bf16 row r*R - 1 (clamped; masked at r==0)
#   xb_ref: (1, 1, W, Cin)           bf16 row r*R + R (clamped; masked at r==last)
#   w_ref : (3, 3*Cin, Cout)         bf16 weights, layout (ky, (kx, cin), cout)
#   b_ref : (1, Cout)                f32 bias
#   o_ref : (1, R//2, (W//2)*Cout)   f32 lane-dense pooled output
# ----------------------------------------------------------------------------
def vgg_stage_kernel(x_ref, xt_ref, xb_ref, w_ref, b_ref, o_ref):
    _, R, W, Cin = x_ref.shape
    Cout = w_ref.shape[-1]
    Rh, Wh = R // 2, W // 2

    r = pl.program_id(1)
    last = pl.num_programs(1) - 1

    xm = x_ref[0]                                      # (R, W, Cin)
    top = xt_ref[0]                                    # (1, W, Cin)
    bot = xb_ref[0]                                    # (1, W, Cin)
    # The halo rows were fetched with clamped indices; zero them at the image
    # border so the conv sees the 1-pixel zero padding.
    top = jnp.where(r > 0, top, jnp.zeros_like(top))
    bot = jnp.where(r < last, bot, jnp.zeros_like(bot))
    xr = jnp.concatenate([top, xm, bot], axis=0)       # (R+2, W, Cin)

    # Build the W-direction taps once (shared by all three ky taps):
    # channel-concat of left-shifted / centered / right-shifted views.
    zc = jnp.zeros((R + 2, 1, Cin), xr.dtype)
    x_l = jnp.concatenate([zc, xr[:, : W - 1, :]], axis=1)    # input col j-1 (kx=0)
    x_r = jnp.concatenate([xr[:, 1:, :], zc], axis=1)         # input col j+1 (kx=2)
    xw = jnp.concatenate([x_l, xr, x_r], axis=-1)             # (R+2, W, 3*Cin)

    # Three accumulating MXU matmuls with K = 3*Cin (no 9x im2col blow-up):
    # bf16 operands, f32 accumulation.
    acc = jnp.zeros((R * W, Cout), jnp.float32)
    for ky in range(3):                                # unrolled at trace time
        a = xw[ky:ky + R].reshape(R * W, 3 * Cin)
        acc = acc + jnp.dot(a, w_ref[ky], preferred_element_type=jnp.float32)

    acc = acc + b_ref[...]                             # bias (f32)
    acc = jnp.maximum(acc, 0.0)                        # ReLU

    # Fused 2x2 / stride-2 max pool on the f32 accumulator
    # (reshape + static index + jnp.maximum only).
    y = acc.reshape(Rh, 2, W, Cout)
    y = jnp.maximum(y[:, 0], y[:, 1])                  # (Rh, W, Cout)
    y = y.reshape(Rh, Wh, 2, Cout)
    y = jnp.maximum(y[:, :, 0], y[:, :, 1])            # (Rh, Wh, Cout)
    o_ref[...] = y.reshape(1, Rh, Wh * Cout).astype(o_ref.dtype)


def vgg_stage(x, w, b, *, max_row_block=64):
    """Fused Conv2d(3x3, pad=1) + bias + ReLU + MaxPool2d(2) for one VGG stage.

    x: (N, H, W, Cin) NHWC float32, w: (3, 3, Cin, Cout) HWIO, b: (Cout,)
    returns: (N, H//2, W//2, Cout) NHWC float32.
    """
    N, H, W, Cin = x.shape
    Cout = w.shape[-1]
    assert H % 2 == 0 and W % 2 == 0, "even spatial dims required"
    # TODO(synk): odd H/W (PyTorch MaxPool2d floor behaviour) not supported.

    R = _pick_row_block(H, W, Cin, Cout, max_row_block)
    nb = H // R
    Hh, Wh = H // 2, W // 2

    # bf16 operands (half the HBM->VMEM bytes, native MXU format); f32 bias.
    xb = x.astype(jnp.bfloat16)
    wf = w.reshape(3, 3 * Cin, Cout).astype(jnp.bfloat16)   # (ky, (kx, cin), cout)
    b2 = b.reshape(1, Cout).astype(jnp.float32)

    # Explicit scoped-VMEM budget from the actual block sizes (default scoped
    # limit is 16 MiB on v5e / 32 MiB on v6e+; never exceed v7x's 64 MiB).
    blk_io = 2 * (R * W * Cin * 2 + 2 * W * Cin * 2
                  + (R // 2) * Wh * Cout * 4 + 9 * Cin * Cout * 2 + Cout * 4)
    tmp = 4 * (R + 2) * W * Cin * 2 + 3 * R * W * Cout * 4
    vmem_limit = int(min(64 << 20, max(32 << 20, 2 * (blk_io + tmp))))

    cost = pl.CostEstimate(
        flops=2 * N * H * W * 9 * Cin * Cout,
        transcendentals=0,
        bytes_accessed=(N * H * W * Cin * 2 + 9 * Cin * Cout * 2
                        + Cout * 4 + N * Hh * Wh * Cout * 4),
    )

    out = pl.pallas_call(
        vgg_stage_kernel,
        out_shape=jax.ShapeDtypeStruct((N, Hh, Wh * Cout), jnp.float32),
        grid=(N, nb),
        in_specs=[
            # interior rows of the block
            pl.BlockSpec((1, R, W, Cin), lambda n, r: (n, r, 0, 0)),
            # 1-row halos above / below the block, clamped in-bounds
            # (their values are masked to zero at the image border in-kernel)
            pl.BlockSpec((1, 1, W, Cin),
                         lambda n, r: (n, jnp.maximum(r * R - 1, 0), 0, 0)),
            pl.BlockSpec((1, 1, W, Cin),
                         lambda n, r: (n, jnp.minimum(r * R + R, H - 1), 0, 0)),
            pl.BlockSpec((3, 3 * Cin, Cout), lambda n, r: (0, 0, 0)),
            pl.BlockSpec((1, Cout), lambda n, r: (0, 0)),
        ],
        out_specs=pl.BlockSpec((1, R // 2, Wh * Cout), lambda n, r: (n, r, 0)),
        compiler_params=pltpu.CompilerParams(
            dimension_semantics=("parallel", "parallel"),
            vmem_limit_bytes=vmem_limit,
        ),
        cost_estimate=cost,
    )(xb, xb, xb, wf, b2)
    return out.reshape(N, Hh, Wh, Cout)


# ----------------------------------------------------------------------------
# VGGBasicNetwork equivalent: run the feature modules in sequence and return
# the list of per-module outputs (like the PyTorch forward()).
# ----------------------------------------------------------------------------
def init_vgg_params(key, stage_channels, in_channels=3, dtype=jnp.float32):
    """Conv weight ~ N(0, sqrt(2/(k*k*Cout))), bias = 0 (_initialize_weights)."""
    params = []
    cin = in_channels
    for cout in stage_channels:
        key, sub = jax.random.split(key)
        std = math.sqrt(2.0 / (3 * 3 * cout))
        w = (jax.random.normal(sub, (3, 3, cin, cout)) * std).astype(dtype)
        b = jnp.zeros((cout,), dtype)
        params.append((w, b))
        cin = cout
    return params


def vgg_basic_network_forward(x_nchw, params, *, max_row_block=64):
    """x_nchw: (N, C, H, W) as in PyTorch. Returns per-stage features (NCHW)."""
    x = jnp.transpose(x_nchw, (0, 2, 3, 1))            # NCHW -> NHWC
    features = []
    for (w, b) in params:
        x = vgg_stage(x, w, b, max_row_block=max_row_block)
        features.append(jnp.transpose(x, (0, 3, 1, 2)))
    return features


# ----------------------------------------------------------------------------
# Pure-JAX reference (NCHW) using the same bf16-rounded operands as the kernel
# (which accumulates in f32), so per-stage outputs match closely.
# ----------------------------------------------------------------------------
def ref_stage(x_nchw, w_hwio, b):
    xr = x_nchw.astype(jnp.bfloat16).astype(jnp.float32)
    wr = w_hwio.astype(jnp.bfloat16).astype(jnp.float32)
    y = jax.lax.conv_general_dilated(
        xr, wr, window_strides=(1, 1), padding="SAME",
        dimension_numbers=("NCHW", "HWIO", "NCHW"),
        precision=jax.lax.Precision.HIGHEST)
    y = jax.nn.relu(y + b.reshape(1, -1, 1, 1))
    y = jax.lax.reduce_window(
        y, -jnp.inf, jax.lax.max,
        window_dimensions=(1, 1, 2, 2), window_strides=(1, 1, 2, 2),
        padding="VALID")
    return y


if __name__ == "__main__":
    key = jax.random.PRNGKey(0)
    k_x, k_p = jax.random.split(key)

    # Small but structure-exercising shapes: batch=2, RGB, 32x32, 3 VGG stages.
    # Stage 1 (H=32, row block 16) exercises the multi-row-block + halo path;
    # stages 2-3 fall back to a single whole-image block.
    N, C, H, W = 2, 3, 32, 32
    stage_channels = (8, 16, 32)

    x = jax.random.normal(k_x, (N, C, H, W), jnp.float32)
    params = init_vgg_params(k_p, stage_channels, in_channels=C)

    feats = vgg_basic_network_forward(x, params, max_row_block=16)
    feats = [jax.block_until_ready(f) for f in feats]

    # Validate every stage against the pure-JAX reference.
    ref = x
    for i, (w, b) in enumerate(params):
        ref = ref_stage(ref, w, b)
        assert feats[i].shape == ref.shape, (feats[i].shape, ref.shape)
        assert jnp.allclose(feats[i], ref, rtol=2e-2, atol=2e-2), f"stage {i} mismatch"

    assert feats[0].shape == (N, stage_channels[0], H // 2, W // 2)
    assert feats[1].shape == (N, stage_channels[1], H // 4, W // 4)
    assert feats[2].shape == (N, stage_channels[2], H // 8, W // 8)

    print("KERNEL_OK")
</pallas_src>

<mosaic_0001>
module attributes {stable_mosaic.version = 11 : i64} {
  func.func @vgg_stage_kernel(%arg0: i32, %arg1: i32, %arg2: memref<1x16x32x3xbf16, #tpu.memory_space<vmem>>, %arg3: memref<1x1x32x3xbf16, #tpu.memory_space<vmem>>, %arg4: memref<1x1x32x3xbf16, #tpu.memory_space<vmem>>, %arg5: memref<3x9x8xbf16, #tpu.memory_space<vmem>>, %arg6: memref<1x8xf32, #tpu.memory_space<vmem>>, %arg7: memref<1x8x128xf32, #tpu.memory_space<vmem>>) attributes {dimension_semantics = [#tpu.dimension_semantics<parallel>, #tpu.dimension_semantics<parallel>], iteration_bounds = array<i64: 2, 2>, scalar_prefetch = 0 : i64, scratch_operands = 0 : i64, tpu.core_type = #tpu.core_type<tc>, window_params = [{transform_indices = @transform_0, window_bounds = array<i64: 1, 16, 32, 3>}, {transform_indices = @transform_1, window_bounds = array<i64: 1, 1, 32, 3>}, {transform_indices = @transform_2, window_bounds = array<i64: 1, 1, 32, 3>}, {pipeline_mode = #tpu.pipeline_mode<synchronous>, transform_indices = @transform_3, window_bounds = array<i64: 3, 9, 8>}, {pipeline_mode = #tpu.pipeline_mode<synchronous>, transform_indices = @transform_4, window_bounds = array<i64: 1, 8>}, {transform_indices = @transform_5, window_bounds = array<i64: 1, 8, 128>}]} {
    %c0 = arith.constant 0 : index
    %c0_0 = arith.constant 0 : index
    %c0_1 = arith.constant 0 : index
    %c0_2 = arith.constant 0 : index
    %0 = vector.load %arg2[%c0, %c0_0, %c0_1, %c0_2] : memref<1x16x32x3xbf16, #tpu.memory_space<vmem>>, vector<1x16x32x3xbf16>
    %1 = vector.shape_cast %0 : vector<1x16x32x3xbf16> to vector<16x32x3xbf16>
    %c0_3 = arith.constant 0 : index
    %c0_4 = arith.constant 0 : index
    %c0_5 = arith.constant 0 : index
    %c0_6 = arith.constant 0 : index
    %2 = vector.load %arg3[%c0_3, %c0_4, %c0_5, %c0_6] : memref<1x1x32x3xbf16, #tpu.memory_space<vmem>>, vector<1x1x32x3xbf16>
    %3 = vector.shape_cast %2 : vector<1x1x32x3xbf16> to vector<1x32x3xbf16>
    %c0_7 = arith.constant 0 : index
    %c0_8 = arith.constant 0 : index
    %c0_9 = arith.constant 0 : index
    %c0_10 = arith.constant 0 : index
    %4 = vector.load %arg4[%c0_7, %c0_8, %c0_9, %c0_10] : memref<1x1x32x3xbf16, #tpu.memory_space<vmem>>, vector<1x1x32x3xbf16>
    %5 = vector.shape_cast %4 : vector<1x1x32x3xbf16> to vector<1x32x3xbf16>
    %c0_i32 = arith.constant 0 : i32
    %6 = arith.cmpi sgt, %arg1, %c0_i32 : i32
    %cst = arith.constant 0.000000e+00 : bf16
    %7 = vector.broadcast %cst : bf16 to vector<1x32x3xbf16>
    %8 = arith.select %6, %3, %7 : vector<1x32x3xbf16>
    %c1_i32 = arith.constant 1 : i32
    %9 = arith.cmpi slt, %arg1, %c1_i32 : i32
    %cst_11 = arith.constant 0.000000e+00 : bf16
    %10 = vector.broadcast %cst_11 : bf16 to vector<1x32x3xbf16>
    %11 = arith.select %9, %5, %10 : vector<1x32x3xbf16>
    %12 = tpu.concatenate %8, %1, %11 in 0 : vector<1x32x3xbf16>, vector<16x32x3xbf16>, vector<1x32x3xbf16> -> vector<18x32x3xbf16>
    %cst_12 = arith.constant 0.000000e+00 : bf16
    %13 = vector.broadcast %cst_12 : bf16 to vector<18x1x3xbf16>
    %14 = vector.extract_strided_slice %12 {offsets = [0, 0, 0], sizes = [18, 31, 3], strides = [1, 1, 1]} : vector<18x32x3xbf16> to vector<18x31x3xbf16>
    %15 = tpu.concatenate %13, %14 in 1 : vector<18x1x3xbf16>, vector<18x31x3xbf16> -> vector<18x32x3xbf16>
    %16 = vector.extract_strided_slice %12 {offsets = [0, 1, 0], sizes = [18, 31, 3], strides = [1, 1, 1]} : vector<18x32x3xbf16> to vector<18x31x3xbf16>
    %17 = tpu.concatenate %16, %13 in 1 : vector<18x31x3xbf16>, vector<18x1x3xbf16> -> vector<18x32x3xbf16>
    %18 = tpu.concatenate %15, %12, %17 in 2 : vector<18x32x3xbf16>, vector<18x32x3xbf16>, vector<18x32x3xbf16> -> vector<18x32x9xbf16>
    %cst_13 = arith.constant 0.000000e+00 : f32
    %19 = vector.broadcast %cst_13 : f32 to vector<512x8xf32>
    %20 = vector.extract_strided_slice %18 {offsets = [0, 0, 0], sizes = [16, 32, 9], strides = [1, 1, 1]} : vector<18x32x9xbf16> to vector<16x32x9xbf16>
    %21 = vector.shape_cast %20 : vector<16x32x9xbf16> to vector<512x9xbf16>
    %c0_14 = arith.constant 0 : index
    %c0_15 = arith.constant 0 : index
    %c0_16 = arith.constant 0 : index
    %22 = vector.load %arg5[%c0_14, %c0_15, %c0_16] : memref<3x9x8xbf16, #tpu.memory_space<vmem>>, vector<1x9x8xbf16>
    %23 = vector.shape_cast %22 : vector<1x9x8xbf16> to vector<9x8xbf16>
    %cst_17 = arith.constant dense<0.000000e+00> : vector<512x8xf32>
    %24 = tpu.matmul %21, %23, %cst_17 {dimension_numbers = #tpu.dot_dimension_numbers<[1], [0], [0], [1], [0, 0, 1, 1], [], []>} : vector<512x9xbf16>, vector<9x8xbf16>, vector<512x8xf32> -> vector<512x8xf32>
    %25 = arith.addf %19, %24 : vector<512x8xf32>
    %26 = vector.extract_strided_slice %18 {offsets = [1, 0, 0], sizes = [16, 32, 9], strides = [1, 1, 1]} : vector<18x32x9xbf16> to vector<16x32x9xbf16>
    %27 = vector.shape_cast %26 : vector<16x32x9xbf16> to vector<512x9xbf16>
    %c1 = arith.constant 1 : index
    %c0_18 = arith.constant 0 : index
    %c0_19 = arith.constant 0 : index
    %28 = vector.load %arg5[%c1, %c0_18, %c0_19] : memref<3x9x8xbf16, #tpu.memory_space<vmem>>, vector<1x9x8xbf16>
    %29 = vector.shape_cast %28 : vector<1x9x8xbf16> to vector<9x8xbf16>
    %cst_20 = arith.constant dense<0.000000e+00> : vector<512x8xf32>
    %30 = tpu.matmul %27, %29, %cst_20 {dimension_numbers = #tpu.dot_dimension_numbers<[1], [0], [0], [1], [0, 0, 1, 1], [], []>} : vector<512x9xbf16>, vector<9x8xbf16>, vector<512x8xf32> -> vector<512x8xf32>
    %31 = arith.addf %25, %30 : vector<512x8xf32>
    %32 = vector.extract_strided_slice %18 {offsets = [2, 0, 0], sizes = [16, 32, 9], strides = [1, 1, 1]} : vector<18x32x9xbf16> to vector<16x32x9xbf16>
    %33 = vector.shape_cast %32 : vector<16x32x9xbf16> to vector<512x9xbf16>
    %c2 = arith.constant 2 : index
    %c0_21 = arith.constant 0 : index
    %c0_22 = arith.constant 0 : index
    %34 = vector.load %arg5[%c2, %c0_21, %c0_22] : memref<3x9x8xbf16, #tpu.memory_space<vmem>>, vector<1x9x8xbf16>
    %35 = vector.shape_cast %34 : vector<1x9x8xbf16> to vector<9x8xbf16>
    %cst_23 = arith.constant dense<0.000000e+00> : vector<512x8xf32>
    %36 = tpu.matmul %33, %35, %cst_23 {dimension_numbers = #tpu.dot_dimension_numbers<[1], [0], [0], [1], [0, 0, 1, 1], [], []>} : vector<512x9xbf16>, vector<9x8xbf16>, vector<512x8xf32> -> vector<512x8xf32>
    %37 = arith.addf %31, %36 : vector<512x8xf32>
    %c0_24 = arith.constant 0 : index
    %c0_25 = arith.constant 0 : index
    %38 = vector.load %arg6[%c0_24, %c0_25] : memref<1x8xf32, #tpu.memory_space<vmem>>, vector<1x8xf32>
    %39 = vector.broadcast %38 : vector<1x8xf32> to vector<512x8xf32>
    %40 = arith.addf %37, %39 : vector<512x8xf32>
    %cst_26 = arith.constant 0.000000e+00 : f32
    %41 = vector.broadcast %cst_26 : f32 to vector<512x8xf32>
    %42 = arith.maximumf %40, %41 : vector<512x8xf32>
    %43 = vector.shape_cast %42 : vector<512x8xf32> to vector<8x2x32x8xf32>
    %44 = vector.extract_strided_slice %43 {offsets = [0, 0, 0, 0], sizes = [8, 1, 32, 8], strides = [1, 1, 1, 1]} : vector<8x2x32x8xf32> to vector<8x1x32x8xf32>
    %45 = vector.shape_cast %44 : vector<8x1x32x8xf32> to vector<8x32x8xf32>
    %46 = vector.extract_strided_slice %43 {offsets = [0, 1, 0, 0], sizes = [8, 1, 32, 8], strides = [1, 1, 1, 1]} : vector<8x2x32x8xf32> to vector<8x1x32x8xf32>
    %47 = vector.shape_cast %46 : vector<8x1x32x8xf32> to vector<8x32x8xf32>
    %48 = arith.maximumf %45, %47 : vector<8x32x8xf32>
    %49 = vector.shape_cast %48 : vector<8x32x8xf32> to vector<8x16x2x8xf32>
    %50 = vector.extract_strided_slice %49 {offsets = [0, 0, 0, 0], sizes = [8, 16, 1, 8], strides = [1, 1, 1, 1]} : vector<8x16x2x8xf32> to vector<8x16x1x8xf32>
    %51 = vector.shape_cast %50 : vector<8x16x1x8xf32> to vector<8x16x8xf32>
    %52 = vector.extract_strided_slice %49 {offsets = [0, 0, 1, 0], sizes = [8, 16, 1, 8], strides = [1, 1, 1, 1]} : vector<8x16x2x8xf32> to vector<8x16x1x8xf32>
    %53 = vector.shape_cast %52 : vector<8x16x1x8xf32> to vector<8x16x8xf32>
    %54 = arith.maximumf %51, %53 : vector<8x16x8xf32>
    %55 = vector.shape_cast %54 : vector<8x16x8xf32> to vector<1x8x128xf32>
    %c0_27 = arith.constant 0 : index
    %c0_28 = arith.constant 0 : index
    %c0_29 = arith.constant 0 : index
    %56 = vector.load %arg7[%c0_27, %c0_28, %c0_29] : memref<1x8x128xf32, #tpu.memory_space<vmem>>, vector<1x8x128xf32>
    tpu.vector_store %arg7[%c0_27, %c0_28, %c0_29], %55 {strides = array<i32>} : memref<1x8x128xf32, #tpu.memory_space<vmem>>, vector<1x8x128xf32>,
    return
  }
  func.func @transform_0(%arg0: i32, %arg1: i32) -> (i32, i32, i32, i32) {
    %c0_i32 = arith.constant 0 : i32
    %c0_i32_0 = arith.constant 0 : i32
    %c0_i32_1 = arith.constant 0 : i32
    return %arg0, %arg1, %c0_i32, %c0_i32_0 : i32, i32, i32, i32
  }
  func.func @transform_1(%arg0: i32, %arg1: i32) -> (i32, i32, i32, i32) {
    %c16_i32 = arith.constant 16 : i32
    %0 = arith.muli %arg1, %c16_i32 : i32
    %c1_i32 = arith.constant 1 : i32
    %1 = arith.subi %0, %c1_i32 : i32
    %c0_i32 = arith.constant 0 : i32
    %2 = arith.maxsi %1, %c0_i32 : i32
    %c0_i32_0 = arith.constant 0 : i32
    %c0_i32_1 = arith.constant 0 : i32
    %c0_i32_2 = arith.constant 0 : i32
    return %arg0, %2, %c0_i32_0, %c0_i32_1 : i32, i32, i32, i32
  }
  func.func @transform_2(%arg0: i32, %arg1: i32) -> (i32, i32, i32, i32) {
    %c16_i32 = arith.constant 16 : i32
    %0 = arith.muli %arg1, %c16_i32 : i32
    %c16_i32_0 = arith.constant 16 : i32
    %1 = arith.addi %0, %c16_i32_0 : i32
    %c31_i32 = arith.constant 31 : i32
    %2 = arith.minsi %1, %c31_i32 : i32
    %c0_i32 = arith.constant 0 : i32
    %c0_i32_1 = arith.constant 0 : i32
    %c0_i32_2 = arith.constant 0 : i32
    return %arg0, %2, %c0_i32, %c0_i32_1 : i32, i32, i32, i32
  }
  func.func @transform_3(%arg0: i32, %arg1: i32) -> (i32, i32, i32) {
    %c0_i32 = arith.constant 0 : i32
    %c0_i32_0 = arith.constant 0 : i32
    %c0_i32_1 = arith.constant 0 : i32
    %c0_i32_2 = arith.constant 0 : i32
    return %c0_i32, %c0_i32_0, %c0_i32_1 : i32, i32, i32
  }
  func.func @transform_4(%arg0: i32, %arg1: i32) -> (i32, i32) {
    %c0_i32 = arith.constant 0 : i32
    %c0_i32_0 = arith.constant 0 : i32
    %c0_i32_1 = arith.constant 0 : i32
    return %c0_i32, %c0_i32_0 : i32, i32
  }
  func.func @transform_5(%arg0: i32, %arg1: i32) -> (i32, i32, i32) {
    %c0_i32 = arith.constant 0 : i32
    %c0_i32_0 = arith.constant 0 : i32
    return %arg0, %arg1, %c0_i32 : i32, i32, i32
  }
}

</mosaic_0001>

<llo_original>
// kernel: tpu_custom_call.1
$region0: #{tpu_custom_call.1}
  #allocation0 [shape = 'u32[]', space=smem, size = 0x4, offset = 0x4, fixed_abs, tag = 'smem constant byte address 0x4 - core index']
  #allocation1 [shape = 'u32[144,128]{1,0:T(1,128)}', space=vmem, size = 0x12000, scoped, tag = 'internal scratch']
  %s0 = inlined_call_operand.vmem [shape: bf16[2,32,32,3], index: 0, kind: input, shape index: {}]
  %s1 = inlined_call_operand.vmem [shape: bf16[2,32,32,3], index: 1, kind: input, shape index: {}]
  %s2 = inlined_call_operand.vmem [shape: bf16[2,32,32,3], index: 2, kind: input, shape index: {}]
  %s3 = inlined_call_operand.vmem [shape: bf16[3,9,8], index: 3, kind: input, shape index: {}]
  %s4 = inlined_call_operand.vmem [shape: f32[1,8], index: 4, kind: input, shape index: {}]
  %s5 = inlined_call_operand.hbm [shape: f32[2,16,128], index: 5, kind: output, shape index: {}]
  %s6 = sld [smem:[#allocation0]]
  $region53: #{tpu_custom_call.1} parent=0
    _
  %s8 = ssub.s32 1, %s6
  %s9 = scalar_select 0, %s8, %s6
  $region1: #{tpu_custom_call.1} parent=0
    #allocation2 [shape = 'u8[8192]{0}', space=vmem, size = 0x2000, scoped, tag = 'output window, operand 0']
    #allocation3 [shape = 's32[2]{0}', space=sflag, size = 0x8, scoped, tag = 'scoped memory for tpu_custom_call.1']
    %10 = vsyncpa [#allocation3], 0
    %s11 = scalar_lea.sflag [#allocation3], 1
    %12 = vsyncpa %s11, 0
    loop: start=0, step=1, limit=6
    $region2: #{tpu_custom_call.1} parent=1 // loop_pre_header
      _
    $region3: #{tpu_custom_call.1} parent=1 // loop_header
      %s14 = sphi 0, %s18
      %p15 = scmp.ge.s32.totalorder %s14, 6
      %s21 = sphi 0, %s33
      %s22 = sphi 0, %s29
      %s23 = sphi 0, %s21
      %s24 = sphi 0, %s22
      %s25 = sphi 0, %s23
      %s26 = sphi 0, %s24
      %s38 = sphi 0, %s40
      %s41 = sphi 0, %s38
      %s42 = sphi 0, %s41
      %s58 = sphi 0, %s42
      %s74 = sphi 0, %s76
      %s77 = sphi 0, %s74
      %s78 = sphi 0, %s77
      %s94 = sphi 0, %s78
      %s110 = sphi 0, %s112
      %s113 = sphi 0, %s110
      %s114 = sphi 0, %s113
      %s130 = sphi 0, %s114
      %s134 = sphi 0, %s134
      %s136 = sphi 0, %s134
      %s137 = sphi 0, %s136
      %s151 = sphi 0, %s137
      %s155 = sphi 0, %s155
      %s157 = sphi 0, %s155
      %s158 = sphi 0, %s157
      %s172 = sphi 0, %s158
      %s180 = sphi 0, %s182
      %s183 = sphi 0, %s180
      %s184 = sphi 0, %s183
      %s200 = sphi 0, %s184
    $region4: #{tpu_custom_call.1} parent=1 // loop_header_branch
      %17 = sbr.rel (%p15) target = $region8
    $region5: #{tpu_custom_call.1} parent=1 // loop_body
      %s19 = ssub.s32 %s14, 1
      %s20 = ssub.s32 %s14, 2
      %s27 = sadd.s32 1, %s22
      %p28 = scmp.ge.s32.totalorder %s27, 2
      %s29 = scalar_select %p28, 0, %s27
      %s30 = sadd.s32 1, %s21
      %s31 = scalar_select %p28, %s30, %s21
      %p32 = scmp.ge.s32.totalorder %s31, 2
      %s33 = scalar_select %p32, 0, %s31
      %s34 = ssub.s32 %s21, %s33
      %s35 = ssub.s32 %s22, %s29
      %s36 = sor.u32 %s34, %s35
      %p37 = scmp.eq.s32.totalorder %s36, 0
      %s39 = sadd.s32 %s38, 1
      %s40 = scalar_select %p37, %s38, %s39
      %p43 = pneg %p37
      %p44 = scmp.eq.s32.totalorder %s14, 3
      %p45 = por %p43, %p44
      %p46 = scmp.ne.s32.totalorder %s38, %s41
      %p47 = scmp.eq.s32.totalorder %s14, 0
      %p48 = por %p46, %p47
      %p49 = scmp.ne.s32.totalorder %s38, %s41
      %p50 = scmp.eq.s32.totalorder %s19, 3
      %p51 = por %p49, %p50
      %p52 = scmp.ne.s32.totalorder %s41, %s42
      %p53 = scmp.eq.s32.totalorder %s19, 0
      %p54 = por %p52, %p53
      %p55 = scmp.ne.s32.totalorder %s41, %s42
      %p56 = scmp.eq.s32.totalorder %s20, 3
      %p57 = por %p55, %p56
      %p59 = scmp.ne.s32.totalorder %s42, %s58
      %p60 = scmp.eq.s32.totalorder %s20, 0
      %p61 = por %p59, %p60
      %s62 = smul.u32 %s22, 16
      %s63 = ssub.s32 %s62, 1
      %p64 = scmp.gt.s32.totalorder %s63, 0
      %s65 = scalar_select %p64, %s63, 0
      %s66 = smul.u32 %s29, 16
      %s67 = ssub.s32 %s66, 1
      %p68 = scmp.gt.s32.totalorder %s67, 0
      %s69 = scalar_select %p68, %s67, 0
      %s70 = ssub.s32 %s21, %s33
      %s71 = ssub.s32 %s65, %s69
      %s72 = sor.u32 %s70, %s71
      %p73 = scmp.eq.s32.totalorder %s72, 0
      %s75 = sadd.s32 %s74, 1
      %s76 = scalar_select %p73, %s74, %s75
      %p79 = pneg %p73
      %p80 = scmp.eq.s32.totalorder %s14, 3
      %p81 = por %p79, %p80
      %p82 = scmp.ne.s32.totalorder %s74, %s77
      %p83 = scmp.eq.s32.totalorder %s14, 0
      %p84 = por %p82, %p83
      %p85 = scmp.ne.s32.totalorder %s74, %s77
      %p86 = scmp.eq.s32.totalorder %s19, 3
      %p87 = por %p85, %p86
      %p88 = scmp.ne.s32.totalorder %s77, %s78
      %p89 = scmp.eq.s32.totalorder %s19, 0
      %p90 = por %p88, %p89
      %p91 = scmp.ne.s32.totalorder %s77, %s78
      %p92 = scmp.eq.s32.totalorder %s20, 3
      %p93 = por %p91, %p92
      %p95 = scmp.ne.s32.totalorder %s78, %s94
      %p96 = scmp.eq.s32.totalorder %s20, 0
      %p97 = por %p95, %p96
      %s98 = smul.u32 %s22, 16
      %s99 = sadd.s32 %s98, 16
      %p100 = scmp.lt.s32.totalorder %s99, 31
      %s101 = scalar_select %p100, %s99, 31
      %s102 = smul.u32 %s29, 16
      %s103 = sadd.s32 %s102, 16
      %p104 = scmp.lt.s32.totalorder %s103, 31
      %s105 = scalar_select %p104, %s103, 31
      %s106 = ssub.s32 %s21, %s33
      %s107 = ssub.s32 %s101, %s105
      %s108 = sor.u32 %s106, %s107
      %p109 = scmp.eq.s32.totalorder %s108, 0
      %s111 = sadd.s32 %s110, 1
      %s112 = scalar_select %p109, %s110, %s111
      %p115 = pneg %p109
      %p116 = scmp.eq.s32.totalorder %s14, 3
      %p117 = por %p115, %p116
      %p118 = scmp.ne.s32.totalorder %s110, %s113
      %p119 = scmp.eq.s32.totalorder %s14, 0
      %p120 = por %p118, %p119
      %p121 = scmp.ne.s32.totalorder %s110, %s113
      %p122 = scmp.eq.s32.totalorder %s19, 3
      %p123 = por %p121, %p122
      %p124 = scmp.ne.s32.totalorder %s113, %s114
      %p125 = scmp.eq.s32.totalorder %s19, 0
      %p126 = por %p124, %p125
      %p127 = scmp.ne.s32.totalorder %s113, %s114
      %p128 = scmp.eq.s32.totalorder %s20, 3
      %p129 = por %p127, %p128
      %p131 = scmp.ne.s32.totalorder %s114, %s130
      %p132 = scmp.eq.s32.totalorder %s20, 0
      %p133 = por %p131, %p132
      %s135 = sadd.s32 %s134, 1
      %p138 = scmp.eq.s32.totalorder %s14, 3
      %p139 = scmp.ne.s32.totalorder %s134, %s136
      %p140 = scmp.eq.s32.totalorder %s14, 0
      %p141 = por %p139, %p140
      %p142 = scmp.ne.s32.totalorder %s134, %s136
      %p143 = scmp.eq.s32.totalorder %s19, 3
      %p144 = por %p142, %p143
      %p145 = scmp.ne.s32.totalorder %s136, %s137
      %p146 = scmp.eq.s32.totalorder %s19, 0
      %p147 = por %p145, %p146
      %p148 = scmp.ne.s32.totalorder %s136, %s137
      %p149 = scmp.eq.s32.totalorder %s20, 3
      %p150 = por %p148, %p149
      %p152 = scmp.ne.s32.totalorder %s137, %s151
      %p153 = scmp.eq.s32.totalorder %s20, 0
      %p154 = por %p152, %p153
      %s156 = sadd.s32 %s155, 1
      %p159 = scmp.eq.s32.totalorder %s14, 3
      %p160 = scmp.ne.s32.totalorder %s155, %s157
      %p161 = scmp.eq.s32.totalorder %s14, 0
      %p162 = por %p160, %p161
      %p163 = scmp.ne.s32.totalorder %s155, %s157
      %p164 = scmp.eq.s32.totalorder %s19, 3
      %p165 = por %p163, %p164
      %p166 = scmp.ne.s32.totalorder %s157, %s158
      %p167 = scmp.eq.s32.totalorder %s19, 0
      %p168 = por %p166, %p167
      %p169 = scmp.ne.s32.totalorder %s157, %s158
      %p170 = scmp.eq.s32.totalorder %s20, 3
      %p171 = por %p169, %p170
      %p173 = scmp.ne.s32.totalorder %s158, %s172
      %p174 = scmp.eq.s32.totalorder %s20, 0
      %p175 = por %p173, %p174
      %s176 = ssub.s32 %s21, %s33
      %s177 = ssub.s32 %s22, %s29
      %s178 = sor.u32 %s176, %s177
      %p179 = scmp.eq.s32.totalorder %s178, 0
      %s181 = sadd.s32 %s180, 1
      %s182 = scalar_select %p179, %s180, %s181
      %p185 = pneg %p179
      %p186 = scmp.eq.s32.totalorder %s14, 3
      %p187 = por %p185, %p186
      %p188 = scmp.ne.s32.totalorder %s180, %s183
      %p189 = scmp.eq.s32.totalorder %s14, 0
      %p190 = por %p188, %p189
      %p191 = scmp.ne.s32.totalorder %s180, %s183
      %p192 = scmp.eq.s32.totalorder %s19, 3
      %p193 = por %p191, %p192
      %p194 = scmp.ne.s32.totalorder %s183, %s184
      %p195 = scmp.eq.s32.totalorder %s19, 0
      %p196 = por %p194, %p195
      %p197 = scmp.ne.s32.totalorder %s183, %s184
      %p198 = scmp.eq.s32.totalorder %s20, 3
      %p199 = por %p197, %p198
      %p201 = scmp.ne.s32.totalorder %s184, %s200
      %p202 = scmp.eq.s32.totalorder %s20, 0
      %p203 = por %p201, %p202
      %p204 = scmp.le.s32.totalorder 1, %s14
      %p205 = scmp.lt.s32.totalorder %s14, 5
      %p206 = pnand %p204, %p205
      %p207 = pneg %p206
      // Predicated region
      $region9: #{tpu_custom_call.1} parent=5 // pred_check
        _
      $region10: #{tpu_custom_call.1} parent=5 // pred_check_branch
        %209 = sbr.rel (%p206) target = $region12
      $region11: #{tpu_custom_call.1} parent=5 // pred_region
        %s210 = ssub.s32 %s14, 1
        // Predicated region
        $region13: #{tpu_custom_call.1} parent=11 // pred_check
          %p211 = pneg %p147
        $region14: #{tpu_custom_call.1} parent=11 // pred_check_branch
          %213 = sbr.rel (%p211) target = $region16
        $region15: #{tpu_custom_call.1} parent=11 // pred_region
          _
        $region16: #{tpu_custom_call.1} parent=11 // pred_fallthru
          _
        // Predicated region
        $region17: #{tpu_custom_call.1} parent=11 // pred_check
          %p214 = pneg %p168
        $region18: #{tpu_custom_call.1} parent=11 // pred_check_branch
          %216 = sbr.rel (%p214) target = $region20
        $region19: #{tpu_custom_call.1} parent=11 // pred_region
          _
        $region20: #{tpu_custom_call.1} parent=11 // pred_fallthru
          _
      $region12: #{tpu_custom_call.1} parent=5 // pred_fallthru
        _
      %p217 = scmp.lt.s32.totalorder %s14, 4
      // Predicated region
      $region21: #{tpu_custom_call.1} parent=5 // pred_check
        %p218 = pneg %p217
      $region22: #{tpu_custom_call.1} parent=5 // pred_check_branch
        %220 = sbr.rel (%p218) target = $region24
      $region23: #{tpu_custom_call.1} parent=5 // pred_region
        // Predicated region
        $region25: #{tpu_custom_call.1} parent=23 // pred_check
          %p221 = pneg %p48
        $region26: #{tpu_custom_call.1} parent=23 // pred_check_branch
          %223 = sbr.rel (%p221) target = $region28
        $region27: #{tpu_custom_call.1} parent=23 // pred_region
          %s224 = smul.u32 16, %s22
          %p225 = scmp.lt.s32.totalorder %s21, 1
          %s226 = scalar_select %p225, %s21, 1
          %p227 = scmp.lt.s32.totalorder %s224, 31
          %s228 = scalar_select %p227, %s224, 31
          %s229 = smul.addr %s228, 4
          %s230 = smul.addr %s226, 128
          %s231 = sadd.s32 %s229, %s230
          %s232 = smul.addr %s231, 4
          %s233 = scalar_lea.vmem %s0, %s232
          %s234 = smul.u32 16, %s22
        $region28: #{tpu_custom_call.1} parent=23 // pred_fallthru
          _
        // Predicated region
        $region29: #{tpu_custom_call.1} parent=23 // pred_check
          %p235 = pneg %p84
        $region30: #{tpu_custom_call.1} parent=23 // pred_check_branch
          %237 = sbr.rel (%p235) target = $region32
        $region31: #{tpu_custom_call.1} parent=23 // pred_region
          %s238 = smul.u32 %s22, 16
          %s239 = ssub.s32 %s238, 1
          %p240 = scmp.gt.s32.totalorder %s239, 0
          %s241 = scalar_select %p240, %s239, 0
          %p242 = scmp.lt.s32.totalorder %s21, 1
          %s243 = scalar_select %p242, %s21, 1
          %p244 = scmp.lt.s32.totalorder %s241, 31
          %s245 = scalar_select %p244, %s241, 31
          %s246 = smul.addr %s245, 4
          %s247 = smul.addr %s243, 128
          %s248 = sadd.s32 %s246, %s247
          %s249 = smul.addr %s248, 4
          %s250 = scalar_lea.vmem %s1, %s249
          %s251 = smul.u32 %s22, 16
          %s252 = ssub.s32 %s251, 1
          %p253 = scmp.gt.s32.totalorder %s252, 0
          %s254 = scalar_select %p253, %s252, 0
        $region32: #{tpu_custom_call.1} parent=23 // pred_fallthru
          _
        // Predicated region
        $region33: #{tpu_custom_call.1} parent=23 // pred_check
          %p255 = pneg %p120
        $region34: #{tpu_custom_call.1} parent=23 // pred_check_branch
          %257 = sbr.rel (%p255) target = $region36
        $region35: #{tpu_custom_call.1} parent=23 // pred_region
          %s258 = smul.u32 %s22, 16
          %s259 = sadd.s32 %s258, 16
          %p260 = scmp.lt.s32.totalorder %s259, 31
          %s261 = scalar_select %p260, %s259, 31
          %p262 = scmp.lt.s32.totalorder %s21, 1
          %s263 = scalar_select %p262, %s21, 1
          %p264 = scmp.lt.s32.totalorder %s261, 31
          %s265 = scalar_select %p264, %s261, 31
          %s266 = smul.addr %s265, 4
          %s267 = smul.addr %s263, 128
          %s268 = sadd.s32 %s266, %s267
          %s269 = smul.addr %s268, 4
          %s270 = scalar_lea.vmem %s2, %s269
          %s271 = smul.u32 %s22, 16
          %s272 = sadd.s32 %s271, 16
          %p273 = scmp.lt.s32.totalorder %s272, 31
          %s274 = scalar_select %p273, %s272, 31
        $region36: #{tpu_custom_call.1} parent=23 // pred_fallthru
          _
      $region24: #{tpu_custom_call.1} parent=5 // pred_fallthru
        _
      %p275 = scmp.le.s32.totalorder 1, %s14
      %p276 = scmp.lt.s32.totalorder %s14, 5
      %p277 = pnand %p275, %p276
      %p278 = pneg %p277
      // Predicated region
      $region37: #{tpu_custom_call.1} parent=5 // pred_check
        _
      $region38: #{tpu_custom_call.1} parent=5 // pred_check_branch
        %280 = sbr.rel (%p277) target = $region40
      $region39: #{tpu_custom_call.1} parent=5 // pred_region
        %s281 = ssub.s32 %s14, 1
        %s282 = smul.u32 16, %s24
        %p283 = scmp.lt.s32.totalorder %s23, 1
        %s284 = scalar_select %p283, %s23, 1
        %p285 = scmp.lt.s32.totalorder %s282, 31
        %s286 = scalar_select %p285, %s282, 31
        %s287 = smul.addr %s286, 4
        %s288 = smul.addr %s284, 128
        %s289 = sadd.s32 %s287, %s288
        %s290 = smul.addr %s289, 4
        %s291 = scalar_lea.vmem %s0, %s290
        %p292 = pneg %p54
        %p293 = pneg %p51
        %s294 = smul.u32 %s24, 16
        %s295 = ssub.s32 %s294, 1
        %p296 = scmp.gt.s32.totalorder %s295, 0
        %s297 = scalar_select %p296, %s295, 0
        %p298 = scmp.lt.s32.totalorder %s23, 1
        %s299 = scalar_select %p298, %s23, 1
        %p300 = scmp.lt.s32.totalorder %s297, 31
        %s301 = scalar_select %p300, %s297, 31
        %s302 = smul.addr %s301, 4
        %s303 = smul.addr %s299, 128
        %s304 = sadd.s32 %s302, %s303
        %s305 = smul.addr %s304, 4
        %s306 = scalar_lea.vmem %s1, %s305
        %p307 = pneg %p90
        %p308 = pneg %p87
        %s309 = smul.u32 %s24, 16
        %s310 = sadd.s32 %s309, 16
        %p311 = scmp.lt.s32.totalorder %s310, 31
        %s312 = scalar_select %p311, %s310, 31
        %p313 = scmp.lt.s32.totalorder %s23, 1
        %s314 = scalar_select %p313, %s23, 1
        %p315 = scmp.lt.s32.totalorder %s312, 31
        %s316 = scalar_select %p315, %s312, 31
        %s317 = smul.addr %s316, 4
        %s318 = smul.addr %s314, 128
        %s319 = sadd.s32 %s317, %s318
        %s320 = smul.addr %s319, 4
        %s321 = scalar_lea.vmem %s2, %s320
        %p322 = pneg %p126
        %p323 = pneg %p123
        %p324 = pneg %p147
        %p325 = pneg %p144
        %p326 = pneg %p168
        %p327 = pneg %p165
        %p328 = pneg %p196
        %p329 = pneg %p193
        %s330 = sand.u32 %s183, 1
        %s331 = scalar_lea.sflag [#allocation3], %s330
        %s332 = sand.u32 %s183, 1
        %s333 = smul.addr %s332, 8
        %s334 = scalar_lea.vmem [#allocation2], %s333
        %s335 = smul.u32 16, %s24
        %p336 = scmp.lt.s32.totalorder %s23, 1
        %s337 = scalar_select %p336, %s23, 1
        %p338 = scmp.lt.s32.totalorder %s335, 31
        %s339 = scalar_select %p338, %s335, 31
        %s340 = smul.addr %s339, 4
        %s341 = smul.addr %s337, 128
        %s342 = sadd.s32 %s340, %s341
        %s343 = smul.addr %s342, 4
        %s344 = scalar_lea.vmem %s0, %s343
        %s345 = smul.u32 16, %s24
        %s346 = smul.u32 %s24, 16
        %s347 = ssub.s32 %s346, 1
        %p348 = scmp.gt.s32.totalorder %s347, 0
        %s349 = scalar_select %p348, %s347, 0
        %p350 = scmp.lt.s32.totalorder %s23, 1
        %s351 = scalar_select %p350, %s23, 1
        %p352 = scmp.lt.s32.totalorder %s349, 31
        %s353 = scalar_select %p352, %s349, 31
        %s354 = smul.addr %s353, 4
        %s355 = smul.addr %s351, 128
        %s356 = sadd.s32 %s354, %s355
        %s357 = smul.addr %s356, 4
        %s358 = scalar_lea.vmem %s1, %s357
        %s359 = smul.u32 %s24, 16
        %s360 = ssub.s32 %s359, 1
        %p361 = scmp.gt.s32.totalorder %s360, 0
        %s362 = scalar_select %p361, %s360, 0
        %s363 = smul.u32 %s24, 16
        %s364 = sadd.s32 %s363, 16
        %p365 = scmp.lt.s32.totalorder %s364, 31
        %s366 = scalar_select %p365, %s364, 31
        %p367 = scmp.lt.s32.totalorder %s23, 1
        %s368 = scalar_select %p367, %s23, 1
        %p369 = scmp.lt.s32.totalorder %s366, 31
        %s370 = scalar_select %p369, %s366, 31
        %s371 = smul.addr %s370, 4
        %s372 = smul.addr %s368, 128
        %s373 = sadd.s32 %s371, %s372
        %s374 = smul.addr %s373, 4
        %s375 = scalar_lea.vmem %s2, %s374
        %s376 = smul.u32 %s24, 16
        %s377 = sadd.s32 %s376, 16
        %p378 = scmp.lt.s32.totalorder %s377, 31
        %s379 = scalar_select %p378, %s377, 31
        %v381 = vld [vmem:[%s344] sm:$0xf]
        %v382 = vld [vmem:[%s344 + $0x4] sm:$0xf]
        %v383 = vld [vmem:[%s344 + $0x8] sm:$0xf]
        %v384 = vld [vmem:[%s344 + $0xc] sm:$0xf]
        %v385 = vld [vmem:[%s344 + $0x10] sm:$0xf]
        %v386 = vld [vmem:[%s344 + $0x14] sm:$0xf]
        %v387 = vld [vmem:[%s344 + $0x18] sm:$0xf]
        %v388 = vld [vmem:[%s344 + $0x1c] sm:$0xf]
        %v389 = vld [vmem:[%s344 + $0x20] sm:$0xf]
        %v390 = vld [vmem:[%s344 + $0x24] sm:$0xf]
        %v391 = vld [vmem:[%s344 + $0x28] sm:$0xf]
        %v392 = vld [vmem:[%s344 + $0x2c] sm:$0xf]
        %v393 = vld [vmem:[%s344 + $0x30] sm:$0xf]
        %v394 = vld [vmem:[%s344 + $0x34] sm:$0xf]
        %v395 = vld [vmem:[%s344 + $0x38] sm:$0xf]
        %v396 = vld [vmem:[%s344 + $0x3c] sm:$0xf]
        %v397 = vld [vmem:[%s344 + $0x40] sm:$0xf]
        %v398 = vld [vmem:[%s344 + $0x44] sm:$0xf]
        %v399 = vld [vmem:[%s344 + $0x48] sm:$0xf]
        %v400 = vld [vmem:[%s344 + $0x4c] sm:$0xf]
        %v401 = vld [vmem:[%s344 + $0x50] sm:$0xf]
        %v402 = vld [vmem:[%s344 + $0x54] sm:$0xf]
        %v403 = vld [vmem:[%s344 + $0x58] sm:$0xf]
        %v404 = vld [vmem:[%s344 + $0x5c] sm:$0xf]
        %v405 = vld [vmem:[%s344 + $0x60] sm:$0xf]
        %v406 = vld [vmem:[%s344 + $0x64] sm:$0xf]
        %v407 = vld [vmem:[%s344 + $0x68] sm:$0xf]
        %v408 = vld [vmem:[%s344 + $0x6c] sm:$0xf]
        %v409 = vld [vmem:[%s344 + $0x70] sm:$0xf]
        %v410 = vld [vmem:[%s344 + $0x74] sm:$0xf]
        %v411 = vld [vmem:[%s344 + $0x78] sm:$0xf]
        %v412 = vld [vmem:[%s344 + $0x7c] sm:$0xf]
        %v413 = vld [vmem:[%s344 + $0x80] sm:$0xf]
        %v414 = vld [vmem:[%s344 + $0x84] sm:$0xf]
        %v415 = vld [vmem:[%s344 + $0x88] sm:$0xf]
        %v416 = vld [vmem:[%s344 + $0x8c] sm:$0xf]
        %v417 = vld [vmem:[%s344 + $0x90] sm:$0xf]
        %v418 = vld [vmem:[%s344 + $0x94] sm:$0xf]
        %v419 = vld [vmem:[%s344 + $0x98] sm:$0xf]
        %v420 = vld [vmem:[%s344 + $0x9c] sm:$0xf]
        %v421 = vld [vmem:[%s344 + $0xa0] sm:$0xf]
        %v422 = vld [vmem:[%s344 + $0xa4] sm:$0xf]
        %v423 = vld [vmem:[%s344 + $0xa8] sm:$0xf]
        %v424 = vld [vmem:[%s344 + $0xac] sm:$0xf]
        %v425 = vld [vmem:[%s344 + $0xb0] sm:$0xf]
        %v426 = vld [vmem:[%s344 + $0xb4] sm:$0xf]
        %v427 = vld [vmem:[%s344 + $0xb8] sm:$0xf]
        %v428 = vld [vmem:[%s344 + $0xbc] sm:$0xf]
        %v429 = vld [vmem:[%s344 + $0xc0] sm:$0xf]
        %v430 = vld [vmem:[%s344 + $0xc4] sm:$0xf]
        %v431 = vld [vmem:[%s344 + $0xc8] sm:$0xf]
        %v432 = vld [vmem:[%s344 + $0xcc] sm:$0xf]
        %v433 = vld [vmem:[%s344 + $0xd0] sm:$0xf]
        %v434 = vld [vmem:[%s344 + $0xd4] sm:$0xf]
        %v435 = vld [vmem:[%s344 + $0xd8] sm:$0xf]
        %v436 = vld [vmem:[%s344 + $0xdc] sm:$0xf]
        %v437 = vld [vmem:[%s344 + $0xe0] sm:$0xf]
        %v438 = vld [vmem:[%s344 + $0xe4] sm:$0xf]
        %v439 = vld [vmem:[%s344 + $0xe8] sm:$0xf]
        %v440 = vld [vmem:[%s344 + $0xec] sm:$0xf]
        %v441 = vld [vmem:[%s344 + $0xf0] sm:$0xf]
        %v442 = vld [vmem:[%s344 + $0xf4] sm:$0xf]
        %v443 = vld [vmem:[%s344 + $0xf8] sm:$0xf]
        %v444 = vld [vmem:[%s344 + $0xfc] sm:$0xf]
        %v445 = vld [vmem:[%s358] sm:$0xf]
        %v446 = vld [vmem:[%s358 + $0x4] sm:$0xf]
        %v447 = vld [vmem:[%s358 + $0x8] sm:$0xf]
        %v448 = vld [vmem:[%s358 + $0xc] sm:$0xf]
        %v449 = vld [vmem:[%s375] sm:$0xf]
        %v450 = vld [vmem:[%s375 + $0x4] sm:$0xf]
        %v451 = vld [vmem:[%s375 + $0x8] sm:$0xf]
        %v452 = vld [vmem:[%s375 + $0xc] sm:$0xf]
        %p453 = scmp.gt.s32.totalorder %s24, 0
        %s454 = scalar_select %p453, 1, 0
        %v455 = vstv %s454
        %vm456 = vcmp.eq.s32.totalorder %v455, 1
        %v457 = vsel %vm456, %v445, 0
        %v458 = vsel %vm456, %v446, 0
        %v459 = vsel %vm456, %v447, 0
        %v460 = vsel %vm456, %v448, 0
        %p461 = scmp.lt.s32.totalorder %s24, 1
        %s462 = scalar_select %p461, 1, 0
        %v463 = vstv %s462
        %vm464 = vcmp.eq.s32.totalorder %v463, 1
        %v465 = vsel %vm464, %v449, 0
        %v466 = vsel %vm464, %v450, 0
        %v467 = vsel %vm464, %v451, 0
        %v468 = vsel %vm464, %v452, 0
        %v541 = vunpack.c.l.b16 %v457
        %v542 = vunpack.c.l.b16 %v458
        %v543 = vunpack.c.l.b16 %v459
        %v544 = vunpack.c.l.b16 %v460
        %v545 = vunpack.c.l.b16 %v381
        %v546 = vunpack.c.l.b16 %v382
        %v547 = vunpack.c.l.b16 %v383
        %v548 = vunpack.c.l.b16 %v384
        %v549 = vunpack.c.l.b16 %v385
        %v550 = vunpack.c.l.b16 %v386
        %v551 = vunpack.c.l.b16 %v387
        %v552 = vunpack.c.l.b16 %v388
        %v553 = vunpack.c.l.b16 %v389
        %v554 = vunpack.c.l.b16 %v390
        %v555 = vunpack.c.l.b16 %v391
        %v556 = vunpack.c.l.b16 %v392
        %v557 = vunpack.c.l.b16 %v393
        %v558 = vunpack.c.l.b16 %v394
        %v559 = vunpack.c.l.b16 %v395
        %v560 = vunpack.c.l.b16 %v396
        %v561 = vunpack.c.l.b16 %v397
        %v562 = vunpack.c.l.b16 %v398
        %v563 = vunpack.c.l.b16 %v399
        %v564 = vunpack.c.l.b16 %v400
        %v565 = vunpack.c.l.b16 %v401
        %v566 = vunpack.c.l.b16 %v402
        %v567 = vunpack.c.l.b16 %v403
        %v568 = vunpack.c.l.b16 %v404
        %v569 = vunpack.c.l.b16 %v405
        %v570 = vunpack.c.l.b16 %v406
        %v571 = vunpack.c.l.b16 %v407
        %v572 = vunpack.c.l.b16 %v408
        %v573 = vunpack.c.l.b16 %v409
        %v574 = vunpack.c.l.b16 %v410
        %v575 = vunpack.c.l.b16 %v411
        %v576 = vunpack.c.l.b16 %v412
        %v577 = vunpack.c.l.b16 %v413
        %v578 = vunpack.c.l.b16 %v414
        %v579 = vunpack.c.l.b16 %v415
        %v580 = vunpack.c.l.b16 %v416
        %v581 = vunpack.c.l.b16 %v417
        %v582 = vunpack.c.l.b16 %v418
        %v583 = vunpack.c.l.b16 %v419
        %v584 = vunpack.c.l.b16 %v420
        %v585 = vunpack.c.l.b16 %v421
        %v586 = vunpack.c.l.b16 %v422
        %v587 = vunpack.c.l.b16 %v423
        %v588 = vunpack.c.l.b16 %v424
        %v589 = vunpack.c.l.b16 %v425
        %v590 = vunpack.c.l.b16 %v426
        %v591 = vunpack.c.l.b16 %v427
        %v592 = vunpack.c.l.b16 %v428
        %v593 = vunpack.c.l.b16 %v429
        %v594 = vunpack.c.l.b16 %v430
        %v595 = vunpack.c.l.b16 %v431
        %v596 = vunpack.c.l.b16 %v432
        %v597 = vunpack.c.l.b16 %v433
        %v598 = vunpack.c.l.b16 %v434
        %v599 = vunpack.c.l.b16 %v435
        %v600 = vunpack.c.l.b16 %v436
        %v601 = vunpack.c.l.b16 %v437
        %v602 = vunpack.c.l.b16 %v438
        %v603 = vunpack.c.l.b16 %v439
        %v604 = vunpack.c.l.b16 %v440
        %v605 = vunpack.c.l.b16 %v441
        %v606 = vunpack.c.l.b16 %v442
        %v607 = vunpack.c.l.b16 %v443
        %v608 = vunpack.c.l.b16 %v444
        %v609 = vunpack.c.l.b16 %v465
        %v610 = vunpack.c.l.b16 %v466
        %v611 = vunpack.c.l.b16 %v467
        %v612 = vunpack.c.l.b16 %v468
        %v613 = vpack.c.b16 %v542, %v541
        %v614 = vpack.c.b16 %v544, %v543
        %v615 = vpack.c.b16 %v546, %v545
        %v616 = vpack.c.b16 %v548, %v547
        %v617 = vpack.c.b16 %v550, %v549
        %v618 = vpack.c.b16 %v552, %v551
        %v619 = vpack.c.b16 %v554, %v553
        %v620 = vpack.c.b16 %v556, %v555
        %v621 = vpack.c.b16 %v558, %v557
        %v622 = vpack.c.b16 %v560, %v559
        %v623 = vpack.c.b16 %v562, %v561
        %v624 = vpack.c.b16 %v564, %v563
        %v625 = vpack.c.b16 %v566, %v565
        %v626 = vpack.c.b16 %v568, %v567
        %v627 = vpack.c.b16 %v570, %v569
        %v628 = vpack.c.b16 %v572, %v571
        %v629 = vpack.c.b16 %v574, %v573
        %v630 = vpack.c.b16 %v576, %v575
        %v631 = vpack.c.b16 %v578, %v577
        %v632 = vpack.c.b16 %v580, %v579
        %v633 = vpack.c.b16 %v582, %v581
        %v634 = vpack.c.b16 %v584, %v583
        %v635 = vpack.c.b16 %v586, %v585
        %v636 = vpack.c.b16 %v588, %v587
        %v637 = vpack.c.b16 %v590, %v589
        %v638 = vpack.c.b16 %v592, %v591
        %v639 = vpack.c.b16 %v594, %v593
        %v640 = vpack.c.b16 %v596, %v595
        %v641 = vpack.c.b16 %v598, %v597
        %v642 = vpack.c.b16 %v600, %v599
        %v643 = vpack.c.b16 %v602, %v601
        %v644 = vpack.c.b16 %v604, %v603
        %v645 = vpack.c.b16 %v606, %v605
        %v646 = vpack.c.b16 %v608, %v607
        %v647 = vpack.c.b16 %v610, %v609
        %v648 = vpack.c.b16 %v612, %v611
        %vm649 = vsmask.f32 256
        %v651 = vshrl.u32 %v613, 16
        %v653 = vrot.slane %v651, 7
        %v654 = vshll.u32 %v613, 16
        %v656 = vor.u32 %v653, %v654
        %v658 = vshrl.u32 %v614, 16
        %v660 = vrot.slane %v658, 7
        %v661 = vshll.u32 %v614, 16
        %v663 = vor.u32 %v660, %v661
        %v664 = vsel %vm649, %v653, %v663
        %v666 = vshrl.u32 %v615, 16
        %v668 = vrot.slane %v666, 7
        %v669 = vshll.u32 %v615, 16
        %v671 = vor.u32 %v668, %v669
        %v673 = vshrl.u32 %v616, 16
        %v675 = vrot.slane %v673, 7
        %v676 = vshll.u32 %v616, 16
        %v678 = vor.u32 %v675, %v676
        %v679 = vsel %vm649, %v668, %v678
        %v681 = vshrl.u32 %v617, 16
        %v683 = vrot.slane %v681, 7
        %v684 = vshll.u32 %v617, 16
        %v686 = vor.u32 %v683, %v684
        %v688 = vshrl.u32 %v618, 16
        %v690 = vrot.slane %v688, 7
        %v691 = vshll.u32 %v618, 16
        %v693 = vor.u32 %v690, %v691
        %v694 = vsel %vm649, %v683, %v693
        %v696 = vshrl.u32 %v619, 16
        %v698 = vrot.slane %v696, 7
        %v699 = vshll.u32 %v619, 16
        %v701 = vor.u32 %v698, %v699
        %v703 = vshrl.u32 %v620, 16
        %v705 = vrot.slane %v703, 7
        %v706 = vshll.u32 %v620, 16
        %v708 = vor.u32 %v705, %v706
        %v709 = vsel %vm649, %v698, %v708
        %v711 = vshrl.u32 %v621, 16
        %v713 = vrot.slane %v711, 7
        %v714 = vshll.u32 %v621, 16
        %v716 = vor.u32 %v713, %v714
        %v718 = vshrl.u32 %v622, 16
        %v720 = vrot.slane %v718, 7
        %v721 = vshll.u32 %v622, 16
        %v723 = vor.u32 %v720, %v721
        %v724 = vsel %vm649, %v713, %v723
        %v726 = vshrl.u32 %v623, 16
        %v728 = vrot.slane %v726, 7
        %v729 = vshll.u32 %v623, 16
        %v731 = vor.u32 %v728, %v729
        %v733 = vshrl.u32 %v624, 16
        %v735 = vrot.slane %v733, 7
        %v736 = vshll.u32 %v624, 16
        %v738 = vor.u32 %v735, %v736
        %v739 = vsel %vm649, %v728, %v738
        %v741 = vshrl.u32 %v625, 16
        %v743 = vrot.slane %v741, 7
        %v744 = vshll.u32 %v625, 16
        %v746 = vor.u32 %v743, %v744
        %v748 = vshrl.u32 %v626, 16
        %v750 = vrot.slane %v748, 7
        %v751 = vshll.u32 %v626, 16
        %v753 = vor.u32 %v750, %v751
        %v754 = vsel %vm649, %v743, %v753
        %v756 = vshrl.u32 %v627, 16
        %v758 = vrot.slane %v756, 7
        %v759 = vshll.u32 %v627, 16
        %v761 = vor.u32 %v758, %v759
        %v763 = vshrl.u32 %v628, 16
        %v765 = vrot.slane %v763, 7
        %v766 = vshll.u32 %v628, 16
        %v768 = vor.u32 %v765, %v766
        %v769 = vsel %vm649, %v758, %v768
        %v771 = vshrl.u32 %v629, 16
        %v773 = vrot.slane %v771, 7
        %v774 = vshll.u32 %v629, 16
        %v776 = vor.u32 %v773, %v774
        %v778 = vshrl.u32 %v630, 16
        %v780 = vrot.slane %v778, 7
        %v781 = vshll.u32 %v630, 16
        %v783 = vor.u32 %v780, %v781
        %v784 = vsel %vm649, %v773, %v783
        %v786 = vshrl.u32 %v631, 16
        %v788 = vrot.slane %v786, 7
        %v789 = vshll.u32 %v631, 16
        %v791 = vor.u32 %v788, %v789
        %v793 = vshrl.u32 %v632, 16
        %v795 = vrot.slane %v793, 7
        %v796 = vshll.u32 %v632, 16
        %v798 = vor.u32 %v795, %v796
        %v799 = vsel %vm649, %v788, %v798
        %v801 = vshrl.u32 %v633, 16
        %v803 = vrot.slane %v801, 7
        %v804 = vshll.u32 %v633, 16
        %v806 = vor.u32 %v803, %v804
        %v808 = vshrl.u32 %v634, 16
        %v810 = vrot.slane %v808, 7
        %v811 = vshll.u32 %v634, 16
        %v813 = vor.u32 %v810, %v811
        %v814 = vsel %vm649, %v803, %v813
        %v816 = vshrl.u32 %v635, 16
        %v818 = vrot.slane %v816, 7
        %v819 = vshll.u32 %v635, 16
        %v821 = vor.u32 %v818, %v819
        %v823 = vshrl.u32 %v636, 16
        %v825 = vrot.slane %v823, 7
        %v826 = vshll.u32 %v636, 16
        %v828 = vor.u32 %v825, %v826
        %v829 = vsel %vm649, %v818, %v828
        %v831 = vshrl.u32 %v637, 16
        %v833 = vrot.slane %v831, 7
        %v834 = vshll.u32 %v637, 16
        %v836 = vor.u32 %v833, %v834
        %v838 = vshrl.u32 %v638, 16
        %v840 = vrot.slane %v838, 7
        %v841 = vshll.u32 %v638, 16
        %v843 = vor.u32 %v840, %v841
        %v844 = vsel %vm649, %v833, %v843
        %v846 = vshrl.u32 %v639, 16
        %v848 = vrot.slane %v846, 7
        %v849 = vshll.u32 %v639, 16
        %v851 = vor.u32 %v848, %v849
        %v853 = vshrl.u32 %v640, 16
        %v855 = vrot.slane %v853, 7
        %v856 = vshll.u32 %v640, 16
        %v858 = vor.u32 %v855, %v856
        %v859 = vsel %vm649, %v848, %v858
        %v861 = vshrl.u32 %v641, 16
        %v863 = vrot.slane %v861, 7
        %v864 = vshll.u32 %v641, 16
        %v866 = vor.u32 %v863, %v864
        %v868 = vshrl.u32 %v642, 16
        %v870 = vrot.slane %v868, 7
        %v871 = vshll.u32 %v642, 16
        %v873 = vor.u32 %v870, %v871
        %v874 = vsel %vm649, %v863, %v873
        %v876 = vshrl.u32 %v643, 16
        %v878 = vrot.slane %v876, 7
        %v879 = vshll.u32 %v643, 16
        %v881 = vor.u32 %v878, %v879
        %v883 = vshrl.u32 %v644, 16
        %v885 = vrot.slane %v883, 7
        %v886 = vshll.u32 %v644, 16
        %v888 = vor.u32 %v885, %v886
        %v889 = vsel %vm649, %v878, %v888
        %v891 = vshrl.u32 %v645, 16
        %v893 = vrot.slane %v891, 7
        %v894 = vshll.u32 %v645, 16
        %v896 = vor.u32 %v893, %v894
        %v898 = vshrl.u32 %v646, 16
        %v900 = vrot.slane %v898, 7
        %v901 = vshll.u32 %v646, 16
        %v903 = vor.u32 %v900, %v901
        %v904 = vsel %vm649, %v893, %v903
        %v906 = vshrl.u32 %v647, 16
        %v908 = vrot.slane %v906, 7
        %v909 = vshll.u32 %v647, 16
        %v911 = vor.u32 %v908, %v909
        %v913 = vshrl.u32 %v648, 16
        %v915 = vrot.slane %v913, 7
        %v916 = vshll.u32 %v648, 16
        %v918 = vor.u32 %v915, %v916
        %v919 = vsel %vm649, %v908, %v918
        %vm938 = vcmask 1040384
        %vm939 = vmand %vm938, %vm649
        %v940 = vsel %vm939, 0, %v656
        %v941 = vsel %vm939, 0, %v671
        %v942 = vsel %vm939, 0, %v686
        %v943 = vsel %vm939, 0, %v701
        %v944 = vsel %vm939, 0, %v716
        %v945 = vsel %vm939, 0, %v731
        %v946 = vsel %vm939, 0, %v746
        %v947 = vsel %vm939, 0, %v761
        %v948 = vsel %vm939, 0, %v776
        %v949 = vsel %vm939, 0, %v791
        %v950 = vsel %vm939, 0, %v806
        %v951 = vsel %vm939, 0, %v821
        %v952 = vsel %vm939, 0, %v836
        %v953 = vsel %vm939, 0, %v851
        %v954 = vsel %vm939, 0, %v866
        %v955 = vsel %vm939, 0, %v881
        %v956 = vsel %vm939, 0, %v896
        %v957 = vsel %vm939, 0, %v911
        %vm958 = vsmask.f32 7424
        %v959 = vrot.slane %v654, 1
        %v960 = vor.u32 %v651, %v959
        %v961 = vrot.slane %v661, 1
        %v962 = vsel %vm958, %v960, %v961
        %v963 = vor.u32 %v658, %v961
        %v964 = vrot.slane %v669, 1
        %v965 = vor.u32 %v666, %v964
        %v966 = vrot.slane %v676, 1
        %v967 = vsel %vm958, %v965, %v966
        %v968 = vor.u32 %v673, %v966
        %v969 = vrot.slane %v684, 1
        %v970 = vor.u32 %v681, %v969
        %v971 = vrot.slane %v691, 1
        %v972 = vsel %vm958, %v970, %v971
        %v973 = vor.u32 %v688, %v971
        %v974 = vrot.slane %v699, 1
        %v975 = vor.u32 %v696, %v974
        %v976 = vrot.slane %v706, 1
        %v977 = vsel %vm958, %v975, %v976
        %v978 = vor.u32 %v703, %v976
        %v979 = vrot.slane %v714, 1
        %v980 = vor.u32 %v711, %v979
        %v981 = vrot.slane %v721, 1
        %v982 = vsel %vm958, %v980, %v981
        %v983 = vor.u32 %v718, %v981
        %v984 = vrot.slane %v729, 1
        %v985 = vor.u32 %v726, %v984
        %v986 = vrot.slane %v736, 1
        %v987 = vsel %vm958, %v985, %v986
        %v988 = vor.u32 %v733, %v986
        %v989 = vrot.slane %v744, 1
        %v990 = vor.u32 %v741, %v989
        %v991 = vrot.slane %v751, 1
        %v992 = vsel %vm958, %v990, %v991
        %v993 = vor.u32 %v748, %v991
        %v994 = vrot.slane %v759, 1
        %v995 = vor.u32 %v756, %v994
        %v996 = vrot.slane %v766, 1
        %v997 = vsel %vm958, %v995, %v996
        %v998 = vor.u32 %v763, %v996
        %v999 = vrot.slane %v774, 1
        %v1000 = vor.u32 %v771, %v999
        %v1001 = vrot.slane %v781, 1
        %v1002 = vsel %vm958, %v1000, %v1001
        %v1003 = vor.u32 %v778, %v1001
        %v1004 = vrot.slane %v789, 1
        %v1005 = vor.u32 %v786, %v1004
        %v1006 = vrot.slane %v796, 1
        %v1007 = vsel %vm958, %v1005, %v1006
        %v1008 = vor.u32 %v793, %v1006
        %v1009 = vrot.slane %v804, 1
        %v1010 = vor.u32 %v801, %v1009
        %v1011 = vrot.slane %v811, 1
        %v1012 = vsel %vm958, %v1010, %v1011
        %v1013 = vor.u32 %v808, %v1011
        %v1014 = vrot.slane %v819, 1
        %v1015 = vor.u32 %v816, %v1014
        %v1016 = vrot.slane %v826, 1
        %v1017 = vsel %vm958, %v1015, %v1016
        %v1018 = vor.u32 %v823, %v1016
        %v1019 = vrot.slane %v834, 1
        %v1020 = vor.u32 %v831, %v1019
        %v1021 = vrot.slane %v841, 1
        %v1022 = vsel %vm958, %v1020, %v1021
        %v1023 = vor.u32 %v838, %v1021
        %v1024 = vrot.slane %v849, 1
        %v1025 = vor.u32 %v846, %v1024
        %v1026 = vrot.slane %v856, 1
        %v1027 = vsel %vm958, %v1025, %v1026
        %v1028 = vor.u32 %v853, %v1026
        %v1029 = vrot.slane %v864, 1
        %v1030 = vor.u32 %v861, %v1029
        %v1031 = vrot.slane %v871, 1
        %v1032 = vsel %vm958, %v1030, %v1031
        %v1033 = vor.u32 %v868, %v1031
        %v1034 = vrot.slane %v879, 1
        %v1035 = vor.u32 %v876, %v1034
        %v1036 = vrot.slane %v886, 1
        %v1037 = vsel %vm958, %v1035, %v1036
        %v1038 = vor.u32 %v883, %v1036
        %v1039 = vrot.slane %v894, 1
        %v1040 = vor.u32 %v891, %v1039
        %v1041 = vrot.slane %v901, 1
        %v1042 = vsel %vm958, %v1040, %v1041
        %v1043 = vor.u32 %v898, %v1041
        %v1044 = vrot.slane %v909, 1
        %v1045 = vor.u32 %v906, %v1044
        %v1046 = vrot.slane %v916, 1
        %v1047 = vsel %vm958, %v1045, %v1046
        %v1048 = vor.u32 %v913, %v1046
        %vm1067 = vcmask 1047552
        %vm1068 = vmand %vm1067, %vm958
        %v1069 = vsel %vm1068, %v963, 0
        %v1070 = vsel %vm1068, %v968, 0
        %v1071 = vsel %vm1068, %v973, 0
        %v1072 = vsel %vm1068, %v978, 0
        %v1073 = vsel %vm1068, %v983, 0
        %v1074 = vsel %vm1068, %v988, 0
        %v1075 = vsel %vm1068, %v993, 0
        %v1076 = vsel %vm1068, %v998, 0
        %v1077 = vsel %vm1068, %v1003, 0
        %v1078 = vsel %vm1068, %v1008, 0
        %v1079 = vsel %vm1068, %v1013, 0
        %v1080 = vsel %vm1068, %v1018, 0
        %v1081 = vsel %vm1068, %v1023, 0
        %v1082 = vsel %vm1068, %v1028, 0
        %v1083 = vsel %vm1068, %v1033, 0
        %v1084 = vsel %vm1068, %v1038, 0
        %v1085 = vsel %vm1068, %v1043, 0
        %v1086 = vsel %vm1068, %v1048, 0
        %1087 = vrot.lane.b32.xlu0 %v613, 3
        %v1088 = vpop.permute.xlu0 %1087
        %1089 = vrot.lane.b32.xlu0 %v614, 3
        %v1090 = vpop.permute.xlu0 %1089
        %1091 = vrot.lane.b32.xlu0 %v615, 3
        %v1092 = vpop.permute.xlu0 %1091
        %1093 = vrot.lane.b32.xlu0 %v616, 3
        %v1094 = vpop.permute.xlu0 %1093
        %1095 = vrot.lane.b32.xlu0 %v617, 3
        %v1096 = vpop.permute.xlu0 %1095
        %1097 = vrot.lane.b32.xlu0 %v618, 3
        %v1098 = vpop.permute.xlu0 %1097
        %1099 = vrot.lane.b32.xlu0 %v619, 3
        %v1100 = vpop.permute.xlu0 %1099
        %1101 = vrot.lane.b32.xlu0 %v620, 3
        %v1102 = vpop.permute.xlu0 %1101
        %1103 = vrot.lane.b32.xlu0 %v621, 3
        %v1104 = vpop.permute.xlu0 %1103
        %1105 = vrot.lane.b32.xlu0 %v622, 3
        %v1106 = vpop.permute.xlu0 %1105
        %1107 = vrot.lane.b32.xlu0 %v623, 3
        %v1108 = vpop.permute.xlu0 %1107
        %1109 = vrot.lane.b32.xlu0 %v624, 3
        %v1110 = vpop.permute.xlu0 %1109
        %1111 = vrot.lane.b32.xlu0 %v625, 3
        %v1112 = vpop.permute.xlu0 %1111
        %1113 = vrot.lane.b32.xlu0 %v626, 3
        %v1114 = vpop.permute.xlu0 %1113
        %1115 = vrot.lane.b32.xlu0 %v627, 3
        %v1116 = vpop.permute.xlu0 %1115
        %1117 = vrot.lane.b32.xlu0 %v628, 3
        %v1118 = vpop.permute.xlu0 %1117
        %1119 = vrot.lane.b32.xlu0 %v629, 3
        %v1120 = vpop.permute.xlu0 %1119
        %1121 = vrot.lane.b32.xlu0 %v630, 3
        %v1122 = vpop.permute.xlu0 %1121
        %1123 = vrot.lane.b32.xlu0 %v631, 3
        %v1124 = vpop.permute.xlu0 %1123
        %1125 = vrot.lane.b32.xlu0 %v632, 3
        %v1126 = vpop.permute.xlu0 %1125
        %1127 = vrot.lane.b32.xlu0 %v633, 3
        %v1128 = vpop.permute.xlu0 %1127
        %1129 = vrot.lane.b32.xlu0 %v634, 3
        %v1130 = vpop.permute.xlu0 %1129
        %1131 = vrot.lane.b32.xlu0 %v635, 3
        %v1132 = vpop.permute.xlu0 %1131
        %1133 = vrot.lane.b32.xlu0 %v636, 3
        %v1134 = vpop.permute.xlu0 %1133
        %1135 = vrot.lane.b32.xlu0 %v637, 3
        %v1136 = vpop.permute.xlu0 %1135
        %1137 = vrot.lane.b32.xlu0 %v638, 3
        %v1138 = vpop.permute.xlu0 %1137
        %1139 = vrot.lane.b32.xlu0 %v639, 3
        %v1140 = vpop.permute.xlu0 %1139
        %1141 = vrot.lane.b32.xlu0 %v640, 3
        %v1142 = vpop.permute.xlu0 %1141
        %1143 = vrot.lane.b32.xlu0 %v641, 3
        %v1144 = vpop.permute.xlu0 %1143
        %1145 = vrot.lane.b32.xlu0 %v642, 3
        %v1146 = vpop.permute.xlu0 %1145
        %1147 = vrot.lane.b32.xlu0 %v643, 3
        %v1148 = vpop.permute.xlu0 %1147
        %1149 = vrot.lane.b32.xlu0 %v644, 3
        %v1150 = vpop.permute.xlu0 %1149
        %1151 = vrot.lane.b32.xlu0 %v645, 3
        %v1152 = vpop.permute.xlu0 %1151
        %1153 = vrot.lane.b32.xlu0 %v646, 3
        %v1154 = vpop.permute.xlu0 %1153
        %1155 = vrot.lane.b32.xlu0 %v647, 3
        %v1156 = vpop.permute.xlu0 %1155
        %1157 = vrot.lane.b32.xlu0 %v648, 3
        %v1158 = vpop.permute.xlu0 %1157
        %1177 = vrot.lane.b32.xlu0 %v962, 6
        %v1178 = vpop.permute.xlu0 %1177
        %1179 = vrot.lane.b32.xlu0 %v1069, 6
        %v1180 = vpop.permute.xlu0 %1179
        %1181 = vrot.lane.b32.xlu0 %v967, 6
        %v1182 = vpop.permute.xlu0 %1181
        %1183 = vrot.lane.b32.xlu0 %v1070, 6
        %v1184 = vpop.permute.xlu0 %1183
        %1185 = vrot.lane.b32.xlu0 %v972, 6
        %v1186 = vpop.permute.xlu0 %1185
        %1187 = vrot.lane.b32.xlu0 %v1071, 6
        %v1188 = vpop.permute.xlu0 %1187
        %1189 = vrot.lane.b32.xlu0 %v977, 6
        %v1190 = vpop.permute.xlu0 %1189
        %1191 = vrot.lane.b32.xlu0 %v1072, 6
        %v1192 = vpop.permute.xlu0 %1191
        %1193 = vrot.lane.b32.xlu0 %v982, 6
        %v1194 = vpop.permute.xlu0 %1193
        %1195 = vrot.lane.b32.xlu0 %v1073, 6
        %v1196 = vpop.permute.xlu0 %1195
        %1197 = vrot.lane.b32.xlu0 %v987, 6
        %v1198 = vpop.permute.xlu0 %1197
        %1199 = vrot.lane.b32.xlu0 %v1074, 6
        %v1200 = vpop.permute.xlu0 %1199
        %1201 = vrot.lane.b32.xlu0 %v992, 6
        %v1202 = vpop.permute.xlu0 %1201
        %1203 = vrot.lane.b32.xlu0 %v1075, 6
        %v1204 = vpop.permute.xlu0 %1203
        %1205 = vrot.lane.b32.xlu0 %v997, 6
        %v1206 = vpop.permute.xlu0 %1205
        %1207 = vrot.lane.b32.xlu0 %v1076, 6
        %v1208 = vpop.permute.xlu0 %1207
        %1209 = vrot.lane.b32.xlu0 %v1002, 6
        %v1210 = vpop.permute.xlu0 %1209
        %1211 = vrot.lane.b32.xlu0 %v1077, 6
        %v1212 = vpop.permute.xlu0 %1211
        %1213 = vrot.lane.b32.xlu0 %v1007, 6
        %v1214 = vpop.permute.xlu0 %1213
        %1215 = vrot.lane.b32.xlu0 %v1078, 6
        %v1216 = vpop.permute.xlu0 %1215
        %1217 = vrot.lane.b32.xlu0 %v1012, 6
        %v1218 = vpop.permute.xlu0 %1217
        %1219 = vrot.lane.b32.xlu0 %v1079, 6
        %v1220 = vpop.permute.xlu0 %1219
        %1221 = vrot.lane.b32.xlu0 %v1017, 6
        %v1222 = vpop.permute.xlu0 %1221
        %1223 = vrot.lane.b32.xlu0 %v1080, 6
        %v1224 = vpop.permute.xlu0 %1223
        %1225 = vrot.lane.b32.xlu0 %v1022, 6
        %v1226 = vpop.permute.xlu0 %1225
        %1227 = vrot.lane.b32.xlu0 %v1081, 6
        %v1228 = vpop.permute.xlu0 %1227
        %1229 = vrot.lane.b32.xlu0 %v1027, 6
        %v1230 = vpop.permute.xlu0 %1229
        %1231 = vrot.lane.b32.xlu0 %v1082, 6
        %v1232 = vpop.permute.xlu0 %1231
        %1233 = vrot.lane.b32.xlu0 %v1032, 6
        %v1234 = vpop.permute.xlu0 %1233
        %1235 = vrot.lane.b32.xlu0 %v1083, 6
        %v1236 = vpop.permute.xlu0 %1235
        %1237 = vrot.lane.b32.xlu0 %v1037, 6
        %v1238 = vpop.permute.xlu0 %1237
        %1239 = vrot.lane.b32.xlu0 %v1084, 6
        %v1240 = vpop.permute.xlu0 %1239
        %1241 = vrot.lane.b32.xlu0 %v1042, 6
        %v1242 = vpop.permute.xlu0 %1241
        %1243 = vrot.lane.b32.xlu0 %v1085, 6
        %v1244 = vpop.permute.xlu0 %1243
        %1245 = vrot.lane.b32.xlu0 %v1047, 6
        %v1246 = vpop.permute.xlu0 %1245
        %1247 = vrot.lane.b32.xlu0 %v1086, 6
        %v1248 = vpop.permute.xlu0 %1247
        %vm1249 = vcmask 23552
        %v1252 = vsel %vm1249, %v940, %v1088
        %v1255 = vsel %vm1249, %v664, %v1090
        %v1258 = vsel %vm1249, %v941, %v1092
        %v1261 = vsel %vm1249, %v679, %v1094
        %v1264 = vsel %vm1249, %v942, %v1096
        %v1267 = vsel %vm1249, %v694, %v1098
        %v1270 = vsel %vm1249, %v943, %v1100
        %v1273 = vsel %vm1249, %v709, %v1102
        %v1276 = vsel %vm1249, %v944, %v1104
        %v1279 = vsel %vm1249, %v724, %v1106
        %v1282 = vsel %vm1249, %v945, %v1108
        %v1285 = vsel %vm1249, %v739, %v1110
        %v1288 = vsel %vm1249, %v946, %v1112
        %v1291 = vsel %vm1249, %v754, %v1114
        %v1294 = vsel %vm1249, %v947, %v1116
        %v1297 = vsel %vm1249, %v769, %v1118
        %v1300 = vsel %vm1249, %v948, %v1120
        %v1303 = vsel %vm1249, %v784, %v1122
        %v1306 = vsel %vm1249, %v949, %v1124
        %v1309 = vsel %vm1249, %v799, %v1126
        %v1312 = vsel %vm1249, %v950, %v1128
        %v1315 = vsel %vm1249, %v814, %v1130
        %v1318 = vsel %vm1249, %v951, %v1132
        %v1321 = vsel %vm1249, %v829, %v1134
        %v1324 = vsel %vm1249, %v952, %v1136
        %v1327 = vsel %vm1249, %v844, %v1138
        %v1330 = vsel %vm1249, %v953, %v1140
        %v1333 = vsel %vm1249, %v859, %v1142
        %v1336 = vsel %vm1249, %v954, %v1144
        %v1339 = vsel %vm1249, %v874, %v1146
        %v1342 = vsel %vm1249, %v955, %v1148
        %v1345 = vsel %vm1249, %v889, %v1150
        %v1348 = vsel %vm1249, %v956, %v1152
        %v1351 = vsel %vm1249, %v904, %v1154
        %v1354 = vsel %vm1249, %v957, %v1156
        %v1357 = vsel %vm1249, %v919, %v1158
        %vm1358 = vcmask 48128
        %v1360 = vsel %vm1358, %v1252, %v1178
        %v1362 = vsel %vm1358, %v1255, %v1180
        %v1364 = vsel %vm1358, %v1258, %v1182
        %v1366 = vsel %vm1358, %v1261, %v1184
        %v1368 = vsel %vm1358, %v1264, %v1186
        %v1370 = vsel %vm1358, %v1267, %v1188
        %v1372 = vsel %vm1358, %v1270, %v1190
        %v1374 = vsel %vm1358, %v1273, %v1192
        %v1376 = vsel %vm1358, %v1276, %v1194
        %v1378 = vsel %vm1358, %v1279, %v1196
        %v1380 = vsel %vm1358, %v1282, %v1198
        %v1382 = vsel %vm1358, %v1285, %v1200
        %v1384 = vsel %vm1358, %v1288, %v1202
        %v1386 = vsel %vm1358, %v1291, %v1204
        %v1388 = vsel %vm1358, %v1294, %v1206
        %v1390 = vsel %vm1358, %v1297, %v1208
        %v1392 = vsel %vm1358, %v1300, %v1210
        %v1394 = vsel %vm1358, %v1303, %v1212
        %v1396 = vsel %vm1358, %v1306, %v1214
        %v1398 = vsel %vm1358, %v1309, %v1216
        %v1400 = vsel %vm1358, %v1312, %v1218
        %v1402 = vsel %vm1358, %v1315, %v1220
        %v1404 = vsel %vm1358, %v1318, %v1222
        %v1406 = vsel %vm1358, %v1321, %v1224
        %v1408 = vsel %vm1358, %v1324, %v1226
        %v1410 = vsel %vm1358, %v1327, %v1228
        %v1412 = vsel %vm1358, %v1330, %v1230
        %v1414 = vsel %vm1358, %v1333, %v1232
        %v1416 = vsel %vm1358, %v1336, %v1234
        %v1418 = vsel %vm1358, %v1339, %v1236
        %v1420 = vsel %vm1358, %v1342, %v1238
        %v1422 = vsel %vm1358, %v1345, %v1240
        %v1424 = vsel %vm1358, %v1348, %v1242
        %v1426 = vsel %vm1358, %v1351, %v1244
        %v1428 = vsel %vm1358, %v1354, %v1246
        %v1430 = vsel %vm1358, %v1357, %v1248
        %v1431 = vld [vmem:[%s3] sm:$0xf]
        %v1432 = vld [vmem:[%s3 + $0x4] sm:$0x1]
        %s1433 = scalar_lea.vmem %s3, 8
        %v1434 = vld [vmem:[%s1433] sm:$0xf]
        %v1435 = vld [vmem:[%s1433 + $0x4] sm:$0x1]
        %v1438 = vunpack.c.l.b16 %v1434
        %v1439 = vunpack.c.l.b16 %v1435
        %v1440 = vpack.c.b16 %v1439, %v1438
        %vm1441 = vcmask 72704
        %v1442 = vsel %vm1441, %v1364, 0
        %v1444 = vsel %vm1441, %v1366, 0
        %v1446 = vsel %vm1441, %v1368, 0
        %v1448 = vsel %vm1441, %v1370, 0
        %v1450 = vsel %vm1441, %v1372, 0
        %v1452 = vsel %vm1441, %v1374, 0
        %v1454 = vsel %vm1441, %v1376, 0
        %v1456 = vsel %vm1441, %v1378, 0
        %v1458 = vsel %vm1441, %v1380, 0
        %v1460 = vsel %vm1441, %v1382, 0
        %v1462 = vsel %vm1441, %v1384, 0
        %v1464 = vsel %vm1441, %v1386, 0
        %v1466 = vsel %vm1441, %v1388, 0
        %v1468 = vsel %vm1441, %v1390, 0
        %v1470 = vsel %vm1441, %v1392, 0
        %v1472 = vsel %vm1441, %v1394, 0
        %v1474 = vsel %vm1441, %v1396, 0
        %v1476 = vsel %vm1441, %v1398, 0
        %v1478 = vsel %vm1441, %v1400, 0
        %v1480 = vsel %vm1441, %v1402, 0
        %v1482 = vsel %vm1441, %v1404, 0
        %v1484 = vsel %vm1441, %v1406, 0
        %v1486 = vsel %vm1441, %v1408, 0
        %v1488 = vsel %vm1441, %v1410, 0
        %v1490 = vsel %vm1441, %v1412, 0
        %v1492 = vsel %vm1441, %v1414, 0
        %v1494 = vsel %vm1441, %v1416, 0
        %v1496 = vsel %vm1441, %v1418, 0
        %v1498 = vsel %vm1441, %v1420, 0
        %v1500 = vsel %vm1441, %v1422, 0
        %v1502 = vsel %vm1441, %v1424, 0
        %v1504 = vsel %vm1441, %v1426, 0
        %vm1506 = vcmask 1043456
        %vm1507 = vcmask 1044480
        %v1508 = vsel %vm1506, 4294967295, 65535
        %v1509 = vsel %vm1507, %v1508, 0
        %v1511 = vand.u32 %v1440, %v1509
        %1513 = vmatprep.subr.bf16.mxu0 0
        %1514 = vmatpush1.bf16.msra.mxu0 %v1511
        %1515 = vmatprep.subr.bf16.mxu0 0
        %1516 = vmatpush1.bf16.msra.mxu0 0
        %1517 = vmatprep.subr.bf16.mxu0 0
        %1518 = vmatpush1.bf16.msra.mxu0 0
        %1519 = vmatprep.subr.bf16.mxu0 0
        %1520 = vmatpush1.bf16.msra.mxu0 0
        %1521 = vmatprep.subr.bf16.mxu0 0
        %1522 = vmatpush1.bf16.msra.mxu0 0
        %1523 = vmatprep.subr.bf16.mxu0 0
        %1524 = vmatpush1.bf16.msra.mxu0 0
        %1525 = vmatprep.subr.bf16.mxu0 0
        %1526 = vmatpush1.bf16.msra.mxu0 0
        %1527 = vmatprep.subr.bf16.mxu0 0
        %1528 = vmatpush1.bf16.msra.mxu0 0
        %1529 = vmatprep.subr.bf16.mxu0 0
        %1530 = vmatpush1.bf16.msra.mxu0 0
        %1531 = vmatprep.subr.bf16.mxu0 0
        %1532 = vmatpush1.bf16.msra.mxu0 0
        %1533 = vmatprep.subr.bf16.mxu0 0
        %1534 = vmatpush1.bf16.msra.mxu0 0
        %1535 = vmatprep.subr.bf16.mxu0 0
        %1536 = vmatpush1.bf16.msra.mxu0 0
        %1537 = vmatprep.subr.bf16.mxu0 0
        %1538 = vmatpush1.bf16.msra.mxu0 0
        %1539 = vmatprep.subr.bf16.mxu0 0
        %1540 = vmatpush1.bf16.msra.mxu0 0
        %1541 = vmatprep.subr.bf16.mxu0 0
        %1542 = vmatpush1.bf16.msra.mxu0 0
        %1543 = vmatprep.subr.bf16.mxu0 0
        %1544 = vmatpush1.bf16.msra.mxu0 0
        %1545 = vmatprep.mubr.bf16.mxu0 0
        %1546 = vmatmul.mubr.bf16.gmra.mrb[0].mxu0 %v1442
        %v1547 = vpop.f32.mrb[0].mxu0
        %v1548 = vadd.f32 0.0, %v1547
        %v1549 = vpop.f32.mrb[0].mxu0
        %v1550 = vpop.f32.mrb[0].mxu0
        %v1551 = vadd.f32 0.0, %v1550
        %v1552 = vpop.f32.mrb[0].mxu0
        %1553 = vmatprep.mubr.bf16.mxu0 0
        %1554 = vmatmul.mubr.bf16.gmra.mrb[0].mxu0 %v1444
        %v1555 = vpop.f32.mrb[0].mxu0
        %v1556 = vadd.f32 0.0, %v1555
        %v1557 = vpop.f32.mrb[0].mxu0
        %v1558 = vpop.f32.mrb[0].mxu0
        %v1559 = vadd.f32 0.0, %v1558
        %v1560 = vpop.f32.mrb[0].mxu0
        %1561 = vmatprep.mubr.bf16.mxu0 0
        %1562 = vmatmul.mubr.bf16.gmra.mrb[0].mxu0 %v1446
        %v1563 = vpop.f32.mrb[0].mxu0
        %v1564 = vadd.f32 0.0, %v1563
        %v1565 = vpop.f32.mrb[0].mxu0
        %v1566 = vpop.f32.mrb[0].mxu0
        %v1567 = vadd.f32 0.0, %v1566
        %v1568 = vpop.f32.mrb[0].mxu0
        %1569 = vmatprep.mubr.bf16.mxu0 0
        %1570 = vmatmul.mubr.bf16.gmra.mrb[0].mxu0 %v1448
        %v1571 = vpop.f32.mrb[0].mxu0
        %v1572 = vadd.f32 0.0, %v1571
        %v1573 = vpop.f32.mrb[0].mxu0
        %v1574 = vpop.f32.mrb[0].mxu0
        %v1575 = vadd.f32 0.0, %v1574
        %v1576 = vpop.f32.mrb[0].mxu0
        %1577 = vmatprep.mubr.bf16.mxu0 0
        %1578 = vmatmul.mubr.bf16.gmra.mrb[0].mxu0 %v1450
        %v1579 = vpop.f32.mrb[0].mxu0
        %v1580 = vadd.f32 0.0, %v1579
        %v1581 = vpop.f32.mrb[0].mxu0
        %v1582 = vpop.f32.mrb[0].mxu0
        %v1583 = vadd.f32 0.0, %v1582
        %v1584 = vpop.f32.mrb[0].mxu0
        %1585 = vmatprep.mubr.bf16.mxu0 0
        %1586 = vmatmul.mubr.bf16.gmra.mrb[0].mxu0 %v1452
        %v1587 = vpop.f32.mrb[0].mxu0
        %v1588 = vadd.f32 0.0, %v1587
        %v1589 = vpop.f32.mrb[0].mxu0
        %v1590 = vpop.f32.mrb[0].mxu0
        %v1591 = vadd.f32 0.0, %v1590
        %v1592 = vpop.f32.mrb[0].mxu0
        %1593 = vmatprep.mubr.bf16.mxu0 0
        %1594 = vmatmul.mubr.bf16.gmra.mrb[0].mxu0 %v1454
        %v1595 = vpop.f32.mrb[0].mxu0
        %v1596 = vadd.f32 0.0, %v1595
        %v1597 = vpop.f32.mrb[0].mxu0
        %v1598 = vpop.f32.mrb[0].mxu0
        %v1599 = vadd.f32 0.0, %v1598
        %v1600 = vpop.f32.mrb[0].mxu0
        %1601 = vmatprep.mubr.bf16.mxu0 0
        %1602 = vmatmul.mubr.bf16.gmra.mrb[0].mxu0 %v1456
        %v1603 = vpop.f32.mrb[0].mxu0
        %v1604 = vadd.f32 0.0, %v1603
        %v1605 = vpop.f32.mrb[0].mxu0
        %v1606 = vpop.f32.mrb[0].mxu0
        %v1607 = vadd.f32 0.0, %v1606
        %v1608 = vpop.f32.mrb[0].mxu0
        %1609 = vmatprep.mubr.bf16.mxu0 0
        %1610 = vmatmul.mubr.bf16.gmra.mrb[0].mxu0 %v1458
        %v1611 = vpop.f32.mrb[0].mxu0
        %v1612 = vadd.f32 0.0, %v1611
        %v1613 = vpop.f32.mrb[0].mxu0
        %v1614 = vpop.f32.mrb[0].mxu0
        %v1615 = vadd.f32 0.0, %v1614
        %v1616 = vpop.f32.mrb[0].mxu0
        %1617 = vmatprep.mubr.bf16.mxu0 0
        %1618 = vmatmul.mubr.bf16.gmra.mrb[0].mxu0 %v1460
        %v1619 = vpop.f32.mrb[0].mxu0
        %v1620 = vadd.f32 0.0, %v1619
        %v1621 = vpop.f32.mrb[0].mxu0
        %v1622 = vpop.f32.mrb[0].mxu0
        %v1623 = vadd.f32 0.0, %v1622
        %v1624 = vpop.f32.mrb[0].mxu0
        %1625 = vmatprep.mubr.bf16.mxu0 0
        %1626 = vmatmul.mubr.bf16.gmra.mrb[0].mxu0 %v1462
        %v1627 = vpop.f32.mrb[0].mxu0
        %v1628 = vadd.f32 0.0, %v1627
        %v1629 = vpop.f32.mrb[0].mxu0
        %v1630 = vpop.f32.mrb[0].mxu0
        %v1631 = vadd.f32 0.0, %v1630
        %v1632 = vpop.f32.mrb[0].mxu0
        %1633 = vmatprep.mubr.bf16.mxu0 0
        %1634 = vmatmul.mubr.bf16.gmra.mrb[0].mxu0 %v1464
        %v1635 = vpop.f32.mrb[0].mxu0
        %v1636 = vadd.f32 0.0, %v1635
        %v1637 = vpop.f32.mrb[0].mxu0
        %v1638 = vpop.f32.mrb[0].mxu0
        %v1639 = vadd.f32 0.0, %v1638
        %v1640 = vpop.f32.mrb[0].mxu0
        %1641 = vmatprep.mubr.bf16.mxu0 0
        %1642 = vmatmul.mubr.bf16.gmra.mrb[0].mxu0 %v1466
        %v1643 = vpop.f32.mrb[0].mxu0
        %v1644 = vadd.f32 0.0, %v1643
        %v1645 = vpop.f32.mrb[0].mxu0
        %v1646 = vpop.f32.mrb[0].mxu0
        %v1647 = vadd.f32 0.0, %v1646
        %v1648 = vpop.f32.mrb[0].mxu0
        %1649 = vmatprep.mubr.bf16.mxu0 0
        %1650 = vmatmul.mubr.bf16.gmra.mrb[0].mxu0 %v1468
        %v1651 = vpop.f32.mrb[0].mxu0
        %v1652 = vadd.f32 0.0, %v1651
        %v1653 = vpop.f32.mrb[0].mxu0
        %v1654 = vpop.f32.mrb[0].mxu0
        %v1655 = vadd.f32 0.0, %v1654
        %v1656 = vpop.f32.mrb[0].mxu0
        %1657 = vmatprep.mubr.bf16.mxu0 0
        %1658 = vmatmul.mubr.bf16.gmra.mrb[0].mxu0 %v1470
        %v1659 = vpop.f32.mrb[0].mxu0
        %v1660 = vadd.f32 0.0, %v1659
        %v1661 = vpop.f32.mrb[0].mxu0
        %v1662 = vpop.f32.mrb[0].mxu0
        %v1663 = vadd.f32 0.0, %v1662
        %v1664 = vpop.f32.mrb[0].mxu0
        %1665 = vmatprep.mubr.bf16.mxu0 0
        %1666 = vmatmul.mubr.bf16.gmra.mrb[0].mxu0 %v1472
        %v1667 = vpop.f32.mrb[0].mxu0
        %v1668 = vadd.f32 0.0, %v1667
        %v1669 = vpop.f32.mrb[0].mxu0
        %v1670 = vpop.f32.mrb[0].mxu0
        %v1671 = vadd.f32 0.0, %v1670
        %v1672 = vpop.f32.mrb[0].mxu0
        %1673 = vmatprep.mubr.bf16.mxu0 0
        %1674 = vmatmul.mubr.bf16.gmra.mrb[0].mxu0 %v1474
        %v1675 = vpop.f32.mrb[0].mxu0
        %v1676 = vadd.f32 0.0, %v1675
        %v1677 = vpop.f32.mrb[0].mxu0
        %v1678 = vpop.f32.mrb[0].mxu0
        %v1679 = vadd.f32 0.0, %v1678
        %v1680 = vpop.f32.mrb[0].mxu0
        %1681 = vmatprep.mubr.bf16.mxu0 0
        %1682 = vmatmul.mubr.bf16.gmra.mrb[0].mxu0 %v1476
        %v1683 = vpop.f32.mrb[0].mxu0
        %v1684 = vadd.f32 0.0, %v1683
        %v1685 = vpop.f32.mrb[0].mxu0
        %v1686 = vpop.f32.mrb[0].mxu0
        %v1687 = vadd.f32 0.0, %v1686
        %v1688 = vpop.f32.mrb[0].mxu0
        %1689 = vmatprep.mubr.bf16.mxu0 0
        %1690 = vmatmul.mubr.bf16.gmra.mrb[0].mxu0 %v1478
        %v1691 = vpop.f32.mrb[0].mxu0
        %v1692 = vadd.f32 0.0, %v1691
        %v1693 = vpop.f32.mrb[0].mxu0
        %v1694 = vpop.f32.mrb[0].mxu0
        %v1695 = vadd.f32 0.0, %v1694
        %v1696 = vpop.f32.mrb[0].mxu0
        %1697 = vmatprep.mubr.bf16.mxu0 0
        %1698 = vmatmul.mubr.bf16.gmra.mrb[0].mxu0 %v1480
        %v1699 = vpop.f32.mrb[0].mxu0
        %v1700 = vadd.f32 0.0, %v1699
        %v1701 = vpop.f32.mrb[0].mxu0
        %v1702 = vpop.f32.mrb[0].mxu0
        %v1703 = vadd.f32 0.0, %v1702
        %v1704 = vpop.f32.mrb[0].mxu0
        %1705 = vmatprep.mubr.bf16.mxu0 0
        %1706 = vmatmul.mubr.bf16.gmra.mrb[0].mxu0 %v1482
        %v1707 = vpop.f32.mrb[0].mxu0
        %v1708 = vadd.f32 0.0, %v1707
        %v1709 = vpop.f32.mrb[0].mxu0
        %v1710 = vpop.f32.mrb[0].mxu0
        %v1711 = vadd.f32 0.0, %v1710
        %v1712 = vpop.f32.mrb[0].mxu0
        %1713 = vmatprep.mubr.bf16.mxu0 0
        %1714 = vmatmul.mubr.bf16.gmra.mrb[0].mxu0 %v1484
        %v1715 = vpop.f32.mrb[0].mxu0
        %v1716 = vadd.f32 0.0, %v1715
        %v1717 = vpop.f32.mrb[0].mxu0
        %v1718 = vpop.f32.mrb[0].mxu0
        %v1719 = vadd.f32 0.0, %v1718
        %v1720 = vpop.f32.mrb[0].mxu0
        %1721 = vmatprep.mubr.bf16.mxu0 0
        %1722 = vmatmul.mubr.bf16.gmra.mrb[0].mxu0 %v1486
        %v1723 = vpop.f32.mrb[0].mxu0
        %v1724 = vadd.f32 0.0, %v1723
        %v1725 = vpop.f32.mrb[0].mxu0
        %v1726 = vpop.f32.mrb[0].mxu0
        %v1727 = vadd.f32 0.0, %v1726
        %v1728 = vpop.f32.mrb[0].mxu0
        %1729 = vmatprep.mubr.bf16.mxu0 0
        %1730 = vmatmul.mubr.bf16.gmra.mrb[0].mxu0 %v1488
        %v1731 = vpop.f32.mrb[0].mxu0
        %v1732 = vadd.f32 0.0, %v1731
        %v1733 = vpop.f32.mrb[0].mxu0
        %v1734 = vpop.f32.mrb[0].mxu0
        %v1735 = vadd.f32 0.0, %v1734
        %v1736 = vpop.f32.mrb[0].mxu0
        %1737 = vmatprep.mubr.bf16.mxu0 0
        %1738 = vmatmul.mubr.bf16.gmra.mrb[0].mxu0 %v1490
        %v1739 = vpop.f32.mrb[0].mxu0
        %v1740 = vadd.f32 0.0, %v1739
        %v1741 = vpop.f32.mrb[0].mxu0
        %v1742 = vpop.f32.mrb[0].mxu0
        %v1743 = vadd.f32 0.0, %v1742
        %v1744 = vpop.f32.mrb[0].mxu0
        %1745 = vmatprep.mubr.bf16.mxu0 0
        %1746 = vmatmul.mubr.bf16.gmra.mrb[0].mxu0 %v1492
        %v1747 = vpop.f32.mrb[0].mxu0
        %v1748 = vadd.f32 0.0, %v1747
        %v1749 = vpop.f32.mrb[0].mxu0
        %v1750 = vpop.f32.mrb[0].mxu0
        %v1751 = vadd.f32 0.0, %v1750
        %v1752 = vpop.f32.mrb[0].mxu0
        %1753 = vmatprep.mubr.bf16.mxu0 0
        %1754 = vmatmul.mubr.bf16.gmra.mrb[0].mxu0 %v1494
        %v1755 = vpop.f32.mrb[0].mxu0
        %v1756 = vadd.f32 0.0, %v1755
        %v1757 = vpop.f32.mrb[0].mxu0
        %v1758 = vpop.f32.mrb[0].mxu0
        %v1759 = vadd.f32 0.0, %v1758
        %v1760 = vpop.f32.mrb[0].mxu0
        %1761 = vmatprep.mubr.bf16.mxu0 0
        %1762 = vmatmul.mubr.bf16.gmra.mrb[0].mxu0 %v1496
        %v1763 = vpop.f32.mrb[0].mxu0
        %v1764 = vadd.f32 0.0, %v1763
        %v1765 = vpop.f32.mrb[0].mxu0
        %v1766 = vpop.f32.mrb[0].mxu0
        %v1767 = vadd.f32 0.0, %v1766
        %v1768 = vpop.f32.mrb[0].mxu0
        %1769 = vmatprep.mubr.bf16.mxu0 0
        %1770 = vmatmul.mubr.bf16.gmra.mrb[0].mxu0 %v1498
        %v1771 = vpop.f32.mrb[0].mxu0
        %v1772 = vadd.f32 0.0, %v1771
        %v1773 = vpop.f32.mrb[0].mxu0
        %v1774 = vpop.f32.mrb[0].mxu0
        %v1775 = vadd.f32 0.0, %v1774
        %v1776 = vpop.f32.mrb[0].mxu0
        %1777 = vmatprep.mubr.bf16.mxu0 0
        %1778 = vmatmul.mubr.bf16.gmra.mrb[0].mxu0 %v1500
        %v1779 = vpop.f32.mrb[0].mxu0
        %v1780 = vadd.f32 0.0, %v1779
        %v1781 = vpop.f32.mrb[0].mxu0
        %v1782 = vpop.f32.mrb[0].mxu0
        %v1783 = vadd.f32 0.0, %v1782
        %v1784 = vpop.f32.mrb[0].mxu0
        %1785 = vmatprep.mubr.bf16.mxu0 0
        %1786 = vmatmul.mubr.bf16.gmra.mrb[0].mxu0 %v1502
        %v1787 = vpop.f32.mrb[0].mxu0
        %v1788 = vadd.f32 0.0, %v1787
        %v1789 = vpop.f32.mrb[0].mxu0
        %v1790 = vpop.f32.mrb[0].mxu0
        %v1791 = vadd.f32 0.0, %v1790
        %v1792 = vpop.f32.mrb[0].mxu0
        %1793 = vmatprep.mubr.bf16.mxu0 0
        %1794 = vmatmul.mubr.bf16.gmra.mrb[0].mxu0 %v1504
        %v1795 = vpop.f32.mrb[0].mxu0
        %v1796 = vadd.f32 0.0, %v1795
        %v1797 = vpop.f32.mrb[0].mxu0
        %v1798 = vpop.f32.mrb[0].mxu0
        %v1799 = vadd.f32 0.0, %v1798
        %v1800 = vpop.f32.mrb[0].mxu0
        %1801 = vdwg.mxu0
        %v1804 = vunpack.c.l.b16 %v1431
        %v1805 = vunpack.c.l.b16 %v1432
        %v1806 = vpack.c.b16 %v1805, %v1804
        %v1807 = vsel %vm1441, %v1360, 0
        %v1809 = vsel %vm1441, %v1362, 0
        %v1812 = vand.u32 %v1806, %v1509
        %1814 = vmatprep.subr.bf16.mxu0 0
        %1815 = vmatpush1.bf16.msra.mxu0 %v1812
        %1816 = vmatprep.subr.bf16.mxu0 0
        %1817 = vmatpush1.bf16.msra.mxu0 0
        %1818 = vmatprep.subr.bf16.mxu0 0
        %1819 = vmatpush1.bf16.msra.mxu0 0
        %1820 = vmatprep.subr.bf16.mxu0 0
        %1821 = vmatpush1.bf16.msra.mxu0 0
        %1822 = vmatprep.subr.bf16.mxu0 0
        %1823 = vmatpush1.bf16.msra.mxu0 0
        %1824 = vmatprep.subr.bf16.mxu0 0
        %1825 = vmatpush1.bf16.msra.mxu0 0
        %1826 = vmatprep.subr.bf16.mxu0 0
        %1827 = vmatpush1.bf16.msra.mxu0 0
        %1828 = vmatprep.subr.bf16.mxu0 0
        %1829 = vmatpush1.bf16.msra.mxu0 0
        %1830 = vmatprep.subr.bf16.mxu0 0
        %1831 = vmatpush1.bf16.msra.mxu0 0
        %1832 = vmatprep.subr.bf16.mxu0 0
        %1833 = vmatpush1.bf16.msra.mxu0 0
        %1834 = vmatprep.subr.bf16.mxu0 0
        %1835 = vmatpush1.bf16.msra.mxu0 0
        %1836 = vmatprep.subr.bf16.mxu0 0
        %1837 = vmatpush1.bf16.msra.mxu0 0
        %1838 = vmatprep.subr.bf16.mxu0 0
        %1839 = vmatpush1.bf16.msra.mxu0 0
        %1840 = vmatprep.subr.bf16.mxu0 0
        %1841 = vmatpush1.bf16.msra.mxu0 0
        %1842 = vmatprep.subr.bf16.mxu0 0
        %1843 = vmatpush1.bf16.msra.mxu0 0
        %1844 = vmatprep.subr.bf16.mxu0 0
        %1845 = vmatpush1.bf16.msra.mxu0 0
        %1846 = vmatprep.mubr.bf16.mxu0 0
        %1847 = vmatmul.mubr.bf16.gmra.mrb[0].mxu0 %v1807
        %v1848 = vpop.f32.mrb[0].mxu0
        %v1849 = vadd.f32 %v1548, %v1848
        %v1850 = vpop.f32.mrb[0].mxu0
        %v1851 = vpop.f32.mrb[0].mxu0
        %v1852 = vadd.f32 %v1551, %v1851
        %v1853 = vpop.f32.mrb[0].mxu0
        %1854 = vmatprep.mubr.bf16.mxu0 0
        %1855 = vmatmul.mubr.bf16.gmra.mrb[0].mxu0 %v1809
        %v1856 = vpop.f32.mrb[0].mxu0
        %v1857 = vadd.f32 %v1556, %v1856
        %v1858 = vpop.f32.mrb[0].mxu0
        %v1859 = vpop.f32.mrb[0].mxu0
        %v1860 = vadd.f32 %v1559, %v1859
        %v1861 = vpop.f32.mrb[0].mxu0
        %1862 = vmatprep.mubr.bf16.mxu0 0
        %1863 = vmatmul.mubr.bf16.gmra.mrb[0].mxu0 %v1442
        %v1864 = vpop.f32.mrb[0].mxu0
        %v1865 = vadd.f32 %v1564, %v1864
        %v1866 = vpop.f32.mrb[0].mxu0
        %v1867 = vpop.f32.mrb[0].mxu0
        %v1868 = vadd.f32 %v1567, %v1867
        %v1869 = vpop.f32.mrb[0].mxu0
        %1870 = vmatprep.mubr.bf16.mxu0 0
        %1871 = vmatmul.mubr.bf16.gmra.mrb[0].mxu0 %v1444
        %v1872 = vpop.f32.mrb[0].mxu0
        %v1873 = vadd.f32 %v1572, %v1872
        %v1874 = vpop.f32.mrb[0].mxu0
        %v1875 = vpop.f32.mrb[0].mxu0
        %v1876 = vadd.f32 %v1575, %v1875
        %v1877 = vpop.f32.mrb[0].mxu0
        %1878 = vmatprep.mubr.bf16.mxu0 0
        %1879 = vmatmul.mubr.bf16.gmra.mrb[0].mxu0 %v1446
        %v1880 = vpop.f32.mrb[0].mxu0
        %v1881 = vadd.f32 %v1580, %v1880
        %v1882 = vpop.f32.mrb[0].mxu0
        %v1883 = vpop.f32.mrb[0].mxu0
        %v1884 = vadd.f32 %v1583, %v1883
        %v1885 = vpop.f32.mrb[0].mxu0
        %1886 = vmatprep.mubr.bf16.mxu0 0
        %1887 = vmatmul.mubr.bf16.gmra.mrb[0].mxu0 %v1448
        %v1888 = vpop.f32.mrb[0].mxu0
        %v1889 = vadd.f32 %v1588, %v1888
        %v1890 = vpop.f32.mrb[0].mxu0
        %v1891 = vpop.f32.mrb[0].mxu0
        %v1892 = vadd.f32 %v1591, %v1891
        %v1893 = vpop.f32.mrb[0].mxu0
        %1894 = vmatprep.mubr.bf16.mxu0 0
        %1895 = vmatmul.mubr.bf16.gmra.mrb[0].mxu0 %v1450
        %v1896 = vpop.f32.mrb[0].mxu0
        %v1897 = vadd.f32 %v1596, %v1896
        %v1898 = vpop.f32.mrb[0].mxu0
        %v1899 = vpop.f32.mrb[0].mxu0
        %v1900 = vadd.f32 %v1599, %v1899
        %v1901 = vpop.f32.mrb[0].mxu0
        %1902 = vmatprep.mubr.bf16.mxu0 0
        %1903 = vmatmul.mubr.bf16.gmra.mrb[0].mxu0 %v1452
        %v1904 = vpop.f32.mrb[0].mxu0
        %v1905 = vadd.f32 %v1604, %v1904
        %v1906 = vpop.f32.mrb[0].mxu0
        %v1907 = vpop.f32.mrb[0].mxu0
        %v1908 = vadd.f32 %v1607, %v1907
        %v1909 = vpop.f32.mrb[0].mxu0
        %1910 = vmatprep.mubr.bf16.mxu0 0
        %1911 = vmatmul.mubr.bf16.gmra.mrb[0].mxu0 %v1454
        %v1912 = vpop.f32.mrb[0].mxu0
        %v1913 = vadd.f32 %v1612, %v1912
        %v1914 = vpop.f32.mrb[0].mxu0
        %v1915 = vpop.f32.mrb[0].mxu0
        %v1916 = vadd.f32 %v1615, %v1915
        %v1917 = vpop.f32.mrb[0].mxu0
        %1918 = vmatprep.mubr.bf16.mxu0 0
        %1919 = vmatmul.mubr.bf16.gmra.mrb[0].mxu0 %v1456
        %v1920 = vpop.f32.mrb[0].mxu0
        %v1921 = vadd.f32 %v1620, %v1920
        %v1922 = vpop.f32.mrb[0].mxu0
        %v1923 = vpop.f32.mrb[0].mxu0
        %v1924 = vadd.f32 %v1623, %v1923
        %v1925 = vpop.f32.mrb[0].mxu0
        %1926 = vmatprep.mubr.bf16.mxu0 0
        %1927 = vmatmul.mubr.bf16.gmra.mrb[0].mxu0 %v1458
        %v1928 = vpop.f32.mrb[0].mxu0
        %v1929 = vadd.f32 %v1628, %v1928
        %v1930 = vpop.f32.mrb[0].mxu0
        %v1931 = vpop.f32.mrb[0].mxu0
        %v1932 = vadd.f32 %v1631, %v1931
        %v1933 = vpop.f32.mrb[0].mxu0
        %1934 = vmatprep.mubr.bf16.mxu0 0
        %1935 = vmatmul.mubr.bf16.gmra.mrb[0].mxu0 %v1460
        %v1936 = vpop.f32.mrb[0].mxu0
        %v1937 = vadd.f32 %v1636, %v1936
        %v1938 = vpop.f32.mrb[0].mxu0
        %v1939 = vpop.f32.mrb[0].mxu0
        %v1940 = vadd.f32 %v1639, %v1939
        %v1941 = vpop.f32.mrb[0].mxu0
        %1942 = vmatprep.mubr.bf16.mxu0 0
        %1943 = vmatmul.mubr.bf16.gmra.mrb[0].mxu0 %v1462
        %v1944 = vpop.f32.mrb[0].mxu0
        %v1945 = vadd.f32 %v1644, %v1944
        %v1946 = vpop.f32.mrb[0].mxu0
        %v1947 = vpop.f32.mrb[0].mxu0
        %v1948 = vadd.f32 %v1647, %v1947
        %v1949 = vpop.f32.mrb[0].mxu0
        %1950 = vmatprep.mubr.bf16.mxu0 0
        %1951 = vmatmul.mubr.bf16.gmra.mrb[0].mxu0 %v1464
        %v1952 = vpop.f32.mrb[0].mxu0
        %v1953 = vadd.f32 %v1652, %v1952
        %v1954 = vpop.f32.mrb[0].mxu0
        %v1955 = vpop.f32.mrb[0].mxu0
        %v1956 = vadd.f32 %v1655, %v1955
        %v1957 = vpop.f32.mrb[0].mxu0
        %1958 = vmatprep.mubr.bf16.mxu0 0
        %1959 = vmatmul.mubr.bf16.gmra.mrb[0].mxu0 %v1466
        %v1960 = vpop.f32.mrb[0].mxu0
        %v1961 = vadd.f32 %v1660, %v1960
        %v1962 = vpop.f32.mrb[0].mxu0
        %v1963 = vpop.f32.mrb[0].mxu0
        %v1964 = vadd.f32 %v1663, %v1963
        %v1965 = vpop.f32.mrb[0].mxu0
        %1966 = vmatprep.mubr.bf16.mxu0 0
        %1967 = vmatmul.mubr.bf16.gmra.mrb[0].mxu0 %v1468
        %v1968 = vpop.f32.mrb[0].mxu0
        %v1969 = vadd.f32 %v1668, %v1968
        %v1970 = vpop.f32.mrb[0].mxu0
        %v1971 = vpop.f32.mrb[0].mxu0
        %v1972 = vadd.f32 %v1671, %v1971
        %v1973 = vpop.f32.mrb[0].mxu0
        %1974 = vmatprep.mubr.bf16.mxu0 0
        %1975 = vmatmul.mubr.bf16.gmra.mrb[0].mxu0 %v1470
        %v1976 = vpop.f32.mrb[0].mxu0
        %v1977 = vadd.f32 %v1676, %v1976
        %v1978 = vpop.f32.mrb[0].mxu0
        %v1979 = vpop.f32.mrb[0].mxu0
        %v1980 = vadd.f32 %v1679, %v1979
        %v1981 = vpop.f32.mrb[0].mxu0
        %1982 = vmatprep.mubr.bf16.mxu0 0
        %1983 = vmatmul.mubr.bf16.gmra.mrb[0].mxu0 %v1472
        %v1984 = vpop.f32.mrb[0].mxu0
        %v1985 = vadd.f32 %v1684, %v1984
        %v1986 = vpop.f32.mrb[0].mxu0
        %v1987 = vpop.f32.mrb[0].mxu0
        %v1988 = vadd.f32 %v1687, %v1987
        %v1989 = vpop.f32.mrb[0].mxu0
        %1990 = vmatprep.mubr.bf16.mxu0 0
        %1991 = vmatmul.mubr.bf16.gmra.mrb[0].mxu0 %v1474
        %v1992 = vpop.f32.mrb[0].mxu0
        %v1993 = vadd.f32 %v1692, %v1992
        %v1994 = vpop.f32.mrb[0].mxu0
        %v1995 = vpop.f32.mrb[0].mxu0
        %v1996 = vadd.f32 %v1695, %v1995
        %v1997 = vpop.f32.mrb[0].mxu0
        %1998 = vmatprep.mubr.bf16.mxu0 0
        %1999 = vmatmul.mubr.bf16.gmra.mrb[0].mxu0 %v1476
        %v2000 = vpop.f32.mrb[0].mxu0
        %v2001 = vadd.f32 %v1700, %v2000
        %v2002 = vpop.f32.mrb[0].mxu0
        %v2003 = vpop.f32.mrb[0].mxu0
        %v2004 = vadd.f32 %v1703, %v2003
        %v2005 = vpop.f32.mrb[0].mxu0
        %2006 = vmatprep.mubr.bf16.mxu0 0
        %2007 = vmatmul.mubr.bf16.gmra.mrb[0].mxu0 %v1478
        %v2008 = vpop.f32.mrb[0].mxu0
        %v2009 = vadd.f32 %v1708, %v2008
        %v2010 = vpop.f32.mrb[0].mxu0
        %v2011 = vpop.f32.mrb[0].mxu0
        %v2012 = vadd.f32 %v1711, %v2011
        %v2013 = vpop.f32.mrb[0].mxu0
        %2014 = vmatprep.mubr.bf16.mxu0 0
        %2015 = vmatmul.mubr.bf16.gmra.mrb[0].mxu0 %v1480
        %v2016 = vpop.f32.mrb[0].mxu0
        %v2017 = vadd.f32 %v1716, %v2016
        %v2018 = vpop.f32.mrb[0].mxu0
        %v2019 = vpop.f32.mrb[0].mxu0
        %v2020 = vadd.f32 %v1719, %v2019
        %v2021 = vpop.f32.mrb[0].mxu0
        %2022 = vmatprep.mubr.bf16.mxu0 0
        %2023 = vmatmul.mubr.bf16.gmra.mrb[0].mxu0 %v1482
        %v2024 = vpop.f32.mrb[0].mxu0
        %v2025 = vadd.f32 %v1724, %v2024
        %v2026 = vpop.f32.mrb[0].mxu0
        %v2027 = vpop.f32.mrb[0].mxu0
        %v2028 = vadd.f32 %v1727, %v2027
        %v2029 = vpop.f32.mrb[0].mxu0
        %2030 = vmatprep.mubr.bf16.mxu0 0
        %2031 = vmatmul.mubr.bf16.gmra.mrb[0].mxu0 %v1484
        %v2032 = vpop.f32.mrb[0].mxu0
        %v2033 = vadd.f32 %v1732, %v2032
        %v2034 = vpop.f32.mrb[0].mxu0
        %v2035 = vpop.f32.mrb[0].mxu0
        %v2036 = vadd.f32 %v1735, %v2035
        %v2037 = vpop.f32.mrb[0].mxu0
        %2038 = vmatprep.mubr.bf16.mxu0 0
        %2039 = vmatmul.mubr.bf16.gmra.mrb[0].mxu0 %v1486
        %v2040 = vpop.f32.mrb[0].mxu0
        %v2041 = vadd.f32 %v1740, %v2040
        %v2042 = vpop.f32.mrb[0].mxu0
        %v2043 = vpop.f32.mrb[0].mxu0
        %v2044 = vadd.f32 %v1743, %v2043
        %v2045 = vpop.f32.mrb[0].mxu0
        %2046 = vmatprep.mubr.bf16.mxu0 0
        %2047 = vmatmul.mubr.bf16.gmra.mrb[0].mxu0 %v1488
        %v2048 = vpop.f32.mrb[0].mxu0
        %v2049 = vadd.f32 %v1748, %v2048
        %v2050 = vpop.f32.mrb[0].mxu0
        %v2051 = vpop.f32.mrb[0].mxu0
        %v2052 = vadd.f32 %v1751, %v2051
        %v2053 = vpop.f32.mrb[0].mxu0
        %2054 = vmatprep.mubr.bf16.mxu0 0
        %2055 = vmatmul.mubr.bf16.gmra.mrb[0].mxu0 %v1490
        %v2056 = vpop.f32.mrb[0].mxu0
        %v2057 = vadd.f32 %v1756, %v2056
        %v2058 = vpop.f32.mrb[0].mxu0
        %v2059 = vpop.f32.mrb[0].mxu0
        %v2060 = vadd.f32 %v1759, %v2059
        %v2061 = vpop.f32.mrb[0].mxu0
        %2062 = vmatprep.mubr.bf16.mxu0 0
        %2063 = vmatmul.mubr.bf16.gmra.mrb[0].mxu0 %v1492
        %v2064 = vpop.f32.mrb[0].mxu0
        %v2065 = vadd.f32 %v1764, %v2064
        %v2066 = vpop.f32.mrb[0].mxu0
        %v2067 = vpop.f32.mrb[0].mxu0
        %v2068 = vadd.f32 %v1767, %v2067
        %v2069 = vpop.f32.mrb[0].mxu0
        %2070 = vmatprep.mubr.bf16.mxu0 0
        %2071 = vmatmul.mubr.bf16.gmra.mrb[0].mxu0 %v1494
        %v2072 = vpop.f32.mrb[0].mxu0
        %v2073 = vadd.f32 %v1772, %v2072
        %v2074 = vpop.f32.mrb[0].mxu0
        %v2075 = vpop.f32.mrb[0].mxu0
        %v2076 = vadd.f32 %v1775, %v2075
        %v2077 = vpop.f32.mrb[0].mxu0
        %2078 = vmatprep.mubr.bf16.mxu0 0
        %2079 = vmatmul.mubr.bf16.gmra.mrb[0].mxu0 %v1496
        %v2080 = vpop.f32.mrb[0].mxu0
        %v2081 = vadd.f32 %v1780, %v2080
        %v2082 = vpop.f32.mrb[0].mxu0
        %v2083 = vpop.f32.mrb[0].mxu0
        %v2084 = vadd.f32 %v1783, %v2083
        %v2085 = vpop.f32.mrb[0].mxu0
        %2086 = vmatprep.mubr.bf16.mxu0 0
        %2087 = vmatmul.mubr.bf16.gmra.mrb[0].mxu0 %v1498
        %v2088 = vpop.f32.mrb[0].mxu0
        %v2089 = vadd.f32 %v1788, %v2088
        %v2090 = vpop.f32.mrb[0].mxu0
        %v2091 = vpop.f32.mrb[0].mxu0
        %v2092 = vadd.f32 %v1791, %v2091
        %v2093 = vpop.f32.mrb[0].mxu0
        %2094 = vmatprep.mubr.bf16.mxu0 0
        %2095 = vmatmul.mubr.bf16.gmra.mrb[0].mxu0 %v1500
        %v2096 = vpop.f32.mrb[0].mxu0
        %v2097 = vadd.f32 %v1796, %v2096
        %v2098 = vpop.f32.mrb[0].mxu0
        %v2099 = vpop.f32.mrb[0].mxu0
        %v2100 = vadd.f32 %v1799, %v2099
        %v2101 = vpop.f32.mrb[0].mxu0
        %2102 = vdwg.mxu0
        %s2103 = scalar_lea.vmem %s3, 16
        %v2104 = vld [vmem:[%s2103] sm:$0xf]
        %v2105 = vld [vmem:[%s2103 + $0x4] sm:$0x1]
        %v2108 = vunpack.c.l.b16 %v2104
        %v2109 = vunpack.c.l.b16 %v2105
        %v2110 = vpack.c.b16 %v2109, %v2108
        %v2111 = vsel %vm1441, %v1428, 0
        %v2113 = vsel %vm1441, %v1430, 0
        %v2116 = vand.u32 %v2110, %v1509
        %2118 = vmatprep.subr.bf16.mxu0 0
        %2119 = vmatpush1.bf16.msra.mxu0 %v2116
        %2120 = vmatprep.subr.bf16.mxu0 0
        %2121 = vmatpush1.bf16.msra.mxu0 0
        %2122 = vmatprep.subr.bf16.mxu0 0
        %2123 = vmatpush1.bf16.msra.mxu0 0
        %2124 = vmatprep.subr.bf16.mxu0 0
        %2125 = vmatpush1.bf16.msra.mxu0 0
        %2126 = vmatprep.subr.bf16.mxu0 0
        %2127 = vmatpush1.bf16.msra.mxu0 0
        %2128 = vmatprep.subr.bf16.mxu0 0
        %2129 = vmatpush1.bf16.msra.mxu0 0
        %2130 = vmatprep.subr.bf16.mxu0 0
        %2131 = vmatpush1.bf16.msra.mxu0 0
        %2132 = vmatprep.subr.bf16.mxu0 0
        %2133 = vmatpush1.bf16.msra.mxu0 0
        %2134 = vmatprep.subr.bf16.mxu0 0
        %2135 = vmatpush1.bf16.msra.mxu0 0
        %2136 = vmatprep.subr.bf16.mxu0 0
        %2137 = vmatpush1.bf16.msra.mxu0 0
        %2138 = vmatprep.subr.bf16.mxu0 0
        %2139 = vmatpush1.bf16.msra.mxu0 0
        %2140 = vmatprep.subr.bf16.mxu0 0
        %2141 = vmatpush1.bf16.msra.mxu0 0
        %2142 = vmatprep.subr.bf16.mxu0 0
        %2143 = vmatpush1.bf16.msra.mxu0 0
        %2144 = vmatprep.subr.bf16.mxu0 0
        %2145 = vmatpush1.bf16.msra.mxu0 0
        %2146 = vmatprep.subr.bf16.mxu0 0
        %2147 = vmatpush1.bf16.msra.mxu0 0
        %2148 = vmatprep.subr.bf16.mxu0 0
        %2149 = vmatpush1.bf16.msra.mxu0 0
        %2150 = vmatprep.mubr.bf16.mxu0 0
        %2151 = vmatmul.mubr.bf16.gmra.mrb[0].mxu0 %v1446
        %v2152 = vpop.f32.mrb[0].mxu0
        %v2153 = vadd.f32 0.0, %v2152
        %v2154 = vpop.f32.mrb[0].mxu0
        %v2155 = vpop.f32.mrb[0].mxu0
        %v2156 = vadd.f32 0.0, %v2155
        %v2157 = vpop.f32.mrb[0].mxu0
        %2158 = vmatprep.mubr.bf16.mxu0 0
        %2159 = vmatmul.mubr.bf16.gmra.mrb[0].mxu0 %v1448
        %v2160 = vpop.f32.mrb[0].mxu0
        %v2161 = vadd.f32 0.0, %v2160
        %v2162 = vpop.f32.mrb[0].mxu0
        %v2163 = vpop.f32.mrb[0].mxu0
        %v2164 = vadd.f32 0.0, %v2163
        %v2165 = vpop.f32.mrb[0].mxu0
        %2166 = vmatprep.mubr.bf16.mxu0 0
        %2167 = vmatmul.mubr.bf16.gmra.mrb[0].mxu0 %v1450
        %v2168 = vpop.f32.mrb[0].mxu0
        %v2169 = vadd.f32 0.0, %v2168
        %v2170 = vpop.f32.mrb[0].mxu0
        %v2171 = vpop.f32.mrb[0].mxu0
        %v2172 = vadd.f32 0.0, %v2171
        %v2173 = vpop.f32.mrb[0].mxu0
        %2174 = vmatprep.mubr.bf16.mxu0 0
        %2175 = vmatmul.mubr.bf16.gmra.mrb[0].mxu0 %v1452
        %v2176 = vpop.f32.mrb[0].mxu0
        %v2177 = vadd.f32 0.0, %v2176
        %v2178 = vpop.f32.mrb[0].mxu0
        %v2179 = vpop.f32.mrb[0].mxu0
        %v2180 = vadd.f32 0.0, %v2179
        %v2181 = vpop.f32.mrb[0].mxu0
        %2182 = vmatprep.mubr.bf16.mxu0 0
        %2183 = vmatmul.mubr.bf16.gmra.mrb[0].mxu0 %v1454
        %v2184 = vpop.f32.mrb[0].mxu0
        %v2185 = vadd.f32 0.0, %v2184
        %v2186 = vpop.f32.mrb[0].mxu0
        %v2187 = vpop.f32.mrb[0].mxu0
        %v2188 = vadd.f32 0.0, %v2187
        %v2189 = vpop.f32.mrb[0].mxu0
        %2190 = vmatprep.mubr.bf16.mxu0 0
        %2191 = vmatmul.mubr.bf16.gmra.mrb[0].mxu0 %v1456
        %v2192 = vpop.f32.mrb[0].mxu0
        %v2193 = vadd.f32 0.0, %v2192
        %v2194 = vpop.f32.mrb[0].mxu0
        %v2195 = vpop.f32.mrb[0].mxu0
        %v2196 = vadd.f32 0.0, %v2195
        %v2197 = vpop.f32.mrb[0].mxu0
        %2198 = vmatprep.mubr.bf16.mxu0 0
        %2199 = vmatmul.mubr.bf16.gmra.mrb[0].mxu0 %v1458
        %v2200 = vpop.f32.mrb[0].mxu0
        %v2201 = vadd.f32 0.0, %v2200
        %v2202 = vpop.f32.mrb[0].mxu0
        %v2203 = vpop.f32.mrb[0].mxu0
        %v2204 = vadd.f32 0.0, %v2203
        %v2205 = vpop.f32.mrb[0].mxu0
        %2206 = vmatprep.mubr.bf16.mxu0 0
        %2207 = vmatmul.mubr.bf16.gmra.mrb[0].mxu0 %v1460
        %v2208 = vpop.f32.mrb[0].mxu0
        %v2209 = vadd.f32 0.0, %v2208
        %v2210 = vpop.f32.mrb[0].mxu0
        %v2211 = vpop.f32.mrb[0].mxu0
        %v2212 = vadd.f32 0.0, %v2211
        %v2213 = vpop.f32.mrb[0].mxu0
        %2214 = vmatprep.mubr.bf16.mxu0 0
        %2215 = vmatmul.mubr.bf16.gmra.mrb[0].mxu0 %v1462
        %v2216 = vpop.f32.mrb[0].mxu0
        %v2217 = vadd.f32 0.0, %v2216
        %v2218 = vpop.f32.mrb[0].mxu0
        %v2219 = vpop.f32.mrb[0].mxu0
        %v2220 = vadd.f32 0.0, %v2219
        %v2221 = vpop.f32.mrb[0].mxu0
        %2222 = vmatprep.mubr.bf16.mxu0 0
        %2223 = vmatmul.mubr.bf16.gmra.mrb[0].mxu0 %v1464
        %v2224 = vpop.f32.mrb[0].mxu0
        %v2225 = vadd.f32 0.0, %v2224
        %v2226 = vpop.f32.mrb[0].mxu0
        %v2227 = vpop.f32.mrb[0].mxu0
        %v2228 = vadd.f32 0.0, %v2227
        %v2229 = vpop.f32.mrb[0].mxu0
        %2230 = vmatprep.mubr.bf16.mxu0 0
        %2231 = vmatmul.mubr.bf16.gmra.mrb[0].mxu0 %v1466
        %v2232 = vpop.f32.mrb[0].mxu0
        %v2233 = vadd.f32 0.0, %v2232
        %v2234 = vpop.f32.mrb[0].mxu0
        %v2235 = vpop.f32.mrb[0].mxu0
        %v2236 = vadd.f32 0.0, %v2235
        %v2237 = vpop.f32.mrb[0].mxu0
        %2238 = vmatprep.mubr.bf16.mxu0 0
        %2239 = vmatmul.mubr.bf16.gmra.mrb[0].mxu0 %v1468
        %v2240 = vpop.f32.mrb[0].mxu0
        %v2241 = vadd.f32 0.0, %v2240
        %v2242 = vpop.f32.mrb[0].mxu0
        %v2243 = vpop.f32.mrb[0].mxu0
        %v2244 = vadd.f32 0.0, %v2243
        %v2245 = vpop.f32.mrb[0].mxu0
        %2246 = vmatprep.mubr.bf16.mxu0 0
        %2247 = vmatmul.mubr.bf16.gmra.mrb[0].mxu0 %v1470
        %v2248 = vpop.f32.mrb[0].mxu0
        %v2249 = vadd.f32 0.0, %v2248
        %v2250 = vpop.f32.mrb[0].mxu0
        %v2251 = vpop.f32.mrb[0].mxu0
        %v2252 = vadd.f32 0.0, %v2251
        %v2253 = vpop.f32.mrb[0].mxu0
        %2254 = vmatprep.mubr.bf16.mxu0 0
        %2255 = vmatmul.mubr.bf16.gmra.mrb[0].mxu0 %v1472
        %v2256 = vpop.f32.mrb[0].mxu0
        %v2257 = vadd.f32 0.0, %v2256
        %v2258 = vpop.f32.mrb[0].mxu0
        %v2259 = vpop.f32.mrb[0].mxu0
        %v2260 = vadd.f32 0.0, %v2259
        %v2261 = vpop.f32.mrb[0].mxu0
        %2262 = vmatprep.mubr.bf16.mxu0 0
        %2263 = vmatmul.mubr.bf16.gmra.mrb[0].mxu0 %v1474
        %v2264 = vpop.f32.mrb[0].mxu0
        %v2265 = vadd.f32 0.0, %v2264
        %v2266 = vpop.f32.mrb[0].mxu0
        %v2267 = vpop.f32.mrb[0].mxu0
        %v2268 = vadd.f32 0.0, %v2267
        %v2269 = vpop.f32.mrb[0].mxu0
        %2270 = vmatprep.mubr.bf16.mxu0 0
        %2271 = vmatmul.mubr.bf16.gmra.mrb[0].mxu0 %v1476
        %v2272 = vpop.f32.mrb[0].mxu0
        %v2273 = vadd.f32 0.0, %v2272
        %v2274 = vpop.f32.mrb[0].mxu0
        %v2275 = vpop.f32.mrb[0].mxu0
        %v2276 = vadd.f32 0.0, %v2275
        %v2277 = vpop.f32.mrb[0].mxu0
        %2278 = vmatprep.mubr.bf16.mxu0 0
        %2279 = vmatmul.mubr.bf16.gmra.mrb[0].mxu0 %v1478
        %v2280 = vpop.f32.mrb[0].mxu0
        %v2281 = vadd.f32 0.0, %v2280
        %v2282 = vpop.f32.mrb[0].mxu0
        %v2283 = vpop.f32.mrb[0].mxu0
        %v2284 = vadd.f32 0.0, %v2283
        %v2285 = vpop.f32.mrb[0].mxu0
        %2286 = vmatprep.mubr.bf16.mxu0 0
        %2287 = vmatmul.mubr.bf16.gmra.mrb[0].mxu0 %v1480
        %v2288 = vpop.f32.mrb[0].mxu0
        %v2289 = vadd.f32 0.0, %v2288
        %v2290 = vpop.f32.mrb[0].mxu0
        %v2291 = vpop.f32.mrb[0].mxu0
        %v2292 = vadd.f32 0.0, %v2291
        %v2293 = vpop.f32.mrb[0].mxu0
        %2294 = vmatprep.mubr.bf16.mxu0 0
        %2295 = vmatmul.mubr.bf16.gmra.mrb[0].mxu0 %v1482
        %v2296 = vpop.f32.mrb[0].mxu0
        %v2297 = vadd.f32 0.0, %v2296
        %v2298 = vpop.f32.mrb[0].mxu0
        %v2299 = vpop.f32.mrb[0].mxu0
        %v2300 = vadd.f32 0.0, %v2299
        %v2301 = vpop.f32.mrb[0].mxu0
        %2302 = vmatprep.mubr.bf16.mxu0 0
        %2303 = vmatmul.mubr.bf16.gmra.mrb[0].mxu0 %v1484
        %v2304 = vpop.f32.mrb[0].mxu0
        %v2305 = vadd.f32 0.0, %v2304
        %v2306 = vpop.f32.mrb[0].mxu0
        %v2307 = vpop.f32.mrb[0].mxu0
        %v2308 = vadd.f32 0.0, %v2307
        %v2309 = vpop.f32.mrb[0].mxu0
        %2310 = vmatprep.mubr.bf16.mxu0 0
        %2311 = vmatmul.mubr.bf16.gmra.mrb[0].mxu0 %v1486
        %v2312 = vpop.f32.mrb[0].mxu0
        %v2313 = vadd.f32 0.0, %v2312
        %v2314 = vpop.f32.mrb[0].mxu0
        %v2315 = vpop.f32.mrb[0].mxu0
        %v2316 = vadd.f32 0.0, %v2315
        %v2317 = vpop.f32.mrb[0].mxu0
        %2318 = vmatprep.mubr.bf16.mxu0 0
        %2319 = vmatmul.mubr.bf16.gmra.mrb[0].mxu0 %v1488
        %v2320 = vpop.f32.mrb[0].mxu0
        %v2321 = vadd.f32 0.0, %v2320
        %v2322 = vpop.f32.mrb[0].mxu0
        %v2323 = vpop.f32.mrb[0].mxu0
        %v2324 = vadd.f32 0.0, %v2323
        %v2325 = vpop.f32.mrb[0].mxu0
        %2326 = vmatprep.mubr.bf16.mxu0 0
        %2327 = vmatmul.mubr.bf16.gmra.mrb[0].mxu0 %v1490
        %v2328 = vpop.f32.mrb[0].mxu0
        %v2329 = vadd.f32 0.0, %v2328
        %v2330 = vpop.f32.mrb[0].mxu0
        %v2331 = vpop.f32.mrb[0].mxu0
        %v2332 = vadd.f32 0.0, %v2331
        %v2333 = vpop.f32.mrb[0].mxu0
        %2334 = vmatprep.mubr.bf16.mxu0 0
        %2335 = vmatmul.mubr.bf16.gmra.mrb[0].mxu0 %v1492
        %v2336 = vpop.f32.mrb[0].mxu0
        %v2337 = vadd.f32 0.0, %v2336
        %v2338 = vpop.f32.mrb[0].mxu0
        %v2339 = vpop.f32.mrb[0].mxu0
        %v2340 = vadd.f32 0.0, %v2339
        %v2341 = vpop.f32.mrb[0].mxu0
        %2342 = vmatprep.mubr.bf16.mxu0 0
        %2343 = vmatmul.mubr.bf16.gmra.mrb[0].mxu0 %v1494
        %v2344 = vpop.f32.mrb[0].mxu0
        %v2345 = vadd.f32 0.0, %v2344
        %v2346 = vpop.f32.mrb[0].mxu0
        %v2347 = vpop.f32.mrb[0].mxu0
        %v2348 = vadd.f32 0.0, %v2347
        %v2349 = vpop.f32.mrb[0].mxu0
        %2350 = vmatprep.mubr.bf16.mxu0 0
        %2351 = vmatmul.mubr.bf16.gmra.mrb[0].mxu0 %v1496
        %v2352 = vpop.f32.mrb[0].mxu0
        %v2353 = vadd.f32 0.0, %v2352
        %v2354 = vpop.f32.mrb[0].mxu0
        %v2355 = vpop.f32.mrb[0].mxu0
        %v2356 = vadd.f32 0.0, %v2355
        %v2357 = vpop.f32.mrb[0].mxu0
        %2358 = vmatprep.mubr.bf16.mxu0 0
        %2359 = vmatmul.mubr.bf16.gmra.mrb[0].mxu0 %v1498
        %v2360 = vpop.f32.mrb[0].mxu0
        %v2361 = vadd.f32 0.0, %v2360
        %v2362 = vpop.f32.mrb[0].mxu0
        %v2363 = vpop.f32.mrb[0].mxu0
        %v2364 = vadd.f32 0.0, %v2363
        %v2365 = vpop.f32.mrb[0].mxu0
        %2366 = vmatprep.mubr.bf16.mxu0 0
        %2367 = vmatmul.mubr.bf16.gmra.mrb[0].mxu0 %v1500
        %v2368 = vpop.f32.mrb[0].mxu0
        %v2369 = vadd.f32 0.0, %v2368
        %v2370 = vpop.f32.mrb[0].mxu0
        %v2371 = vpop.f32.mrb[0].mxu0
        %v2372 = vadd.f32 0.0, %v2371
        %v2373 = vpop.f32.mrb[0].mxu0
        %2374 = vmatprep.mubr.bf16.mxu0 0
        %2375 = vmatmul.mubr.bf16.gmra.mrb[0].mxu0 %v1502
        %v2376 = vpop.f32.mrb[0].mxu0
        %v2377 = vadd.f32 0.0, %v2376
        %v2378 = vpop.f32.mrb[0].mxu0
        %v2379 = vpop.f32.mrb[0].mxu0
        %v2380 = vadd.f32 0.0, %v2379
        %v2381 = vpop.f32.mrb[0].mxu0
        %2382 = vmatprep.mubr.bf16.mxu0 0
        %2383 = vmatmul.mubr.bf16.gmra.mrb[0].mxu0 %v1504
        %v2384 = vpop.f32.mrb[0].mxu0
        %v2385 = vadd.f32 0.0, %v2384
        %v2386 = vpop.f32.mrb[0].mxu0
        %v2387 = vpop.f32.mrb[0].mxu0
        %v2388 = vadd.f32 0.0, %v2387
        %v2389 = vpop.f32.mrb[0].mxu0
        %2390 = vmatprep.mubr.bf16.mxu0 0
        %2391 = vmatmul.mubr.bf16.gmra.mrb[0].mxu0 %v2111
        %v2392 = vpop.f32.mrb[0].mxu0
        %v2393 = vadd.f32 0.0, %v2392
        %v2394 = vpop.f32.mrb[0].mxu0
        %v2395 = vpop.f32.mrb[0].mxu0
        %v2396 = vadd.f32 0.0, %v2395
        %v2397 = vpop.f32.mrb[0].mxu0
        %2398 = vmatprep.mubr.bf16.mxu0 0
        %2399 = vmatmul.mubr.bf16.gmra.mrb[0].mxu0 %v2113
        %v2400 = vpop.f32.mrb[0].mxu0
        %v2401 = vadd.f32 0.0, %v2400
        %v2402 = vpop.f32.mrb[0].mxu0
        %v2403 = vpop.f32.mrb[0].mxu0
        %v2404 = vadd.f32 0.0, %v2403
        %v2405 = vpop.f32.mrb[0].mxu0
        %2406 = vdwg.mxu0
        %v2407 = vadd.f32 %v1849, %v2153
        %v2408 = vadd.f32 %v1852, %v2156
        %v2409 = vadd.f32 %v1857, %v2161
        %v2410 = vadd.f32 %v1860, %v2164
        %v2411 = vadd.f32 %v1865, %v2169
        %v2412 = vadd.f32 %v1868, %v2172
        %v2413 = vadd.f32 %v1873, %v2177
        %v2414 = vadd.f32 %v1876, %v2180
        %v2415 = vadd.f32 %v1881, %v2185
        %v2416 = vadd.f32 %v1884, %v2188
        %v2417 = vadd.f32 %v1889, %v2193
        %v2418 = vadd.f32 %v1892, %v2196
        %v2419 = vadd.f32 %v1897, %v2201
        %v2420 = vadd.f32 %v1900, %v2204
        %v2421 = vadd.f32 %v1905, %v2209
        %v2422 = vadd.f32 %v1908, %v2212
        %v2423 = vadd.f32 %v1913, %v2217
        %v2424 = vadd.f32 %v1916, %v2220
        %v2425 = vadd.f32 %v1921, %v2225
        %v2426 = vadd.f32 %v1924, %v2228
        %v2427 = vadd.f32 %v1929, %v2233
        %v2428 = vadd.f32 %v1932, %v2236
        %v2429 = vadd.f32 %v1937, %v2241
        %v2430 = vadd.f32 %v1940, %v2244
        %v2431 = vadd.f32 %v1945, %v2249
        %v2432 = vadd.f32 %v1948, %v2252
        %v2433 = vadd.f32 %v1953, %v2257
        %v2434 = vadd.f32 %v1956, %v2260
        %v2435 = vadd.f32 %v1961, %v2265
        %v2436 = vadd.f32 %v1964, %v2268
        %v2437 = vadd.f32 %v1969, %v2273
        %v2438 = vadd.f32 %v1972, %v2276
        %v2439 = vadd.f32 %v1977, %v2281
        %v2440 = vadd.f32 %v1980, %v2284
        %v2441 = vadd.f32 %v1985, %v2289
        %v2442 = vadd.f32 %v1988, %v2292
        %v2443 = vadd.f32 %v1993, %v2297
        %v2444 = vadd.f32 %v1996, %v2300
        %v2445 = vadd.f32 %v2001, %v2305
        %v2446 = vadd.f32 %v2004, %v2308
        %v2447 = vadd.f32 %v2009, %v2313
        %v2448 = vadd.f32 %v2012, %v2316
        %v2449 = vadd.f32 %v2017, %v2321
        %v2450 = vadd.f32 %v2020, %v2324
        %v2451 = vadd.f32 %v2025, %v2329
        %v2452 = vadd.f32 %v2028, %v2332
        %v2453 = vadd.f32 %v2033, %v2337
        %v2454 = vadd.f32 %v2036, %v2340
        %v2455 = vadd.f32 %v2041, %v2345
        %v2456 = vadd.f32 %v2044, %v2348
        %v2457 = vadd.f32 %v2049, %v2353
        %v2458 = vadd.f32 %v2052, %v2356
        %v2459 = vadd.f32 %v2057, %v2361
        %v2460 = vadd.f32 %v2060, %v2364
        %v2461 = vadd.f32 %v2065, %v2369
        %v2462 = vadd.f32 %v2068, %v2372
        %v2463 = vadd.f32 %v2073, %v2377
        %v2464 = vadd.f32 %v2076, %v2380
        %v2465 = vadd.f32 %v2081, %v2385
        %v2466 = vadd.f32 %v2084, %v2388
        %v2467 = vadd.f32 %v2089, %v2393
        %v2468 = vadd.f32 %v2092, %v2396
        %v2469 = vadd.f32 %v2097, %v2401
        %v2470 = vadd.f32 %v2100, %v2404
        %v2471 = vld [vmem:[%s4] sm:$0x1]
        %v2473 = vlaneseq
        %v2474 = vshrl.u32 %v2473, 7
        %v2475 = vsub.s32 0, %v2474
        %v2476 = vrot.slane %v2471, %v2475
        %v2478 = vadd.f32 %v2407, %v2476
        %v2479 = vadd.f32 %v2408, %v2476
        %v2480 = vadd.f32 %v2409, %v2476
        %v2481 = vadd.f32 %v2410, %v2476
        %v2482 = vadd.f32 %v2411, %v2476
        %v2483 = vadd.f32 %v2412, %v2476
        %v2484 = vadd.f32 %v2413, %v2476
        %v2485 = vadd.f32 %v2414, %v2476
        %v2486 = vadd.f32 %v2415, %v2476
        %v2487 = vadd.f32 %v2416, %v2476
        %v2488 = vadd.f32 %v2417, %v2476
        %v2489 = vadd.f32 %v2418, %v2476
        %v2490 = vadd.f32 %v2419, %v2476
        %v2491 = vadd.f32 %v2420, %v2476
        %v2492 = vadd.f32 %v2421, %v2476
        %v2493 = vadd.f32 %v2422, %v2476
        %v2494 = vadd.f32 %v2423, %v2476
        %v2495 = vadd.f32 %v2424, %v2476
        %v2496 = vadd.f32 %v2425, %v2476
        %v2497 = vadd.f32 %v2426, %v2476
        %v2498 = vadd.f32 %v2427, %v2476
        %v2499 = vadd.f32 %v2428, %v2476
        %v2500 = vadd.f32 %v2429, %v2476
        %v2501 = vadd.f32 %v2430, %v2476
        %v2502 = vadd.f32 %v2431, %v2476
        %v2503 = vadd.f32 %v2432, %v2476
        %v2504 = vadd.f32 %v2433, %v2476
        %v2505 = vadd.f32 %v2434, %v2476
        %v2506 = vadd.f32 %v2435, %v2476
        %v2507 = vadd.f32 %v2436, %v2476
        %v2508 = vadd.f32 %v2437, %v2476
        %v2509 = vadd.f32 %v2438, %v2476
        %v2510 = vadd.f32 %v2439, %v2476
        %v2511 = vadd.f32 %v2440, %v2476
        %v2512 = vadd.f32 %v2441, %v2476
        %v2513 = vadd.f32 %v2442, %v2476
        %v2514 = vadd.f32 %v2443, %v2476
        %v2515 = vadd.f32 %v2444, %v2476
        %v2516 = vadd.f32 %v2445, %v2476
        %v2517 = vadd.f32 %v2446, %v2476
        %v2518 = vadd.f32 %v2447, %v2476
        %v2519 = vadd.f32 %v2448, %v2476
        %v2520 = vadd.f32 %v2449, %v2476
        %v2521 = vadd.f32 %v2450, %v2476
        %v2522 = vadd.f32 %v2451, %v2476
        %v2523 = vadd.f32 %v2452, %v2476
        %v2524 = vadd.f32 %v2453, %v2476
        %v2525 = vadd.f32 %v2454, %v2476
        %v2526 = vadd.f32 %v2455, %v2476
        %v2527 = vadd.f32 %v2456, %v2476
        %v2528 = vadd.f32 %v2457, %v2476
        %v2529 = vadd.f32 %v2458, %v2476
        %v2530 = vadd.f32 %v2459, %v2476
        %v2531 = vadd.f32 %v2460, %v2476
        %v2532 = vadd.f32 %v2461, %v2476
        %v2533 = vadd.f32 %v2462, %v2476
        %v2534 = vadd.f32 %v2463, %v2476
        %v2535 = vadd.f32 %v2464, %v2476
        %v2536 = vadd.f32 %v2465, %v2476
        %v2537 = vadd.f32 %v2466, %v2476
        %v2538 = vadd.f32 %v2467, %v2476
        %v2539 = vadd.f32 %v2468, %v2476
        %v2540 = vadd.f32 %v2469, %v2476
        %v2541 = vadd.f32 %v2470, %v2476
        %v2542 = vmax.f32 %v2478, 0.0
        %v2543 = vmax.f32 %v2479, 0.0
        %v2544 = vmax.f32 %v2480, 0.0
        %v2545 = vmax.f32 %v2481, 0.0
        %v2546 = vmax.f32 %v2482, 0.0
        %v2547 = vmax.f32 %v2483, 0.0
        %v2548 = vmax.f32 %v2484, 0.0
        %v2549 = vmax.f32 %v2485, 0.0
        %v2550 = vmax.f32 %v2486, 0.0
        %v2551 = vmax.f32 %v2487, 0.0
        %v2552 = vmax.f32 %v2488, 0.0
        %v2553 = vmax.f32 %v2489, 0.0
        %v2554 = vmax.f32 %v2490, 0.0
        %v2555 = vmax.f32 %v2491, 0.0
        %v2556 = vmax.f32 %v2492, 0.0
        %v2557 = vmax.f32 %v2493, 0.0
        %v2558 = vmax.f32 %v2494, 0.0
        %v2559 = vmax.f32 %v2495, 0.0
        %v2560 = vmax.f32 %v2496, 0.0
        %v2561 = vmax.f32 %v2497, 0.0
        %v2562 = vmax.f32 %v2498, 0.0
        %v2563 = vmax.f32 %v2499, 0.0
        %v2564 = vmax.f32 %v2500, 0.0
        %v2565 = vmax.f32 %v2501, 0.0
        %v2566 = vmax.f32 %v2502, 0.0
        %v2567 = vmax.f32 %v2503, 0.0
        %v2568 = vmax.f32 %v2504, 0.0
        %v2569 = vmax.f32 %v2505, 0.0
        %v2570 = vmax.f32 %v2506, 0.0
        %v2571 = vmax.f32 %v2507, 0.0
        %v2572 = vmax.f32 %v2508, 0.0
        %v2573 = vmax.f32 %v2509, 0.0
        %v2574 = vmax.f32 %v2510, 0.0
        %v2575 = vmax.f32 %v2511, 0.0
        %v2576 = vmax.f32 %v2512, 0.0
        %v2577 = vmax.f32 %v2513, 0.0
        %v2578 = vmax.f32 %v2514, 0.0
        %v2579 = vmax.f32 %v2515, 0.0
        %v2580 = vmax.f32 %v2516, 0.0
        %v2581 = vmax.f32 %v2517, 0.0
        %v2582 = vmax.f32 %v2518, 0.0
        %v2583 = vmax.f32 %v2519, 0.0
        %v2584 = vmax.f32 %v2520, 0.0
        %v2585 = vmax.f32 %v2521, 0.0
        %v2586 = vmax.f32 %v2522, 0.0
        %v2587 = vmax.f32 %v2523, 0.0
        %v2588 = vmax.f32 %v2524, 0.0
        %v2589 = vmax.f32 %v2525, 0.0
        %v2590 = vmax.f32 %v2526, 0.0
        %v2591 = vmax.f32 %v2527, 0.0
        %v2592 = vmax.f32 %v2528, 0.0
        %v2593 = vmax.f32 %v2529, 0.0
        %v2594 = vmax.f32 %v2530, 0.0
        %v2595 = vmax.f32 %v2531, 0.0
        %v2596 = vmax.f32 %v2532, 0.0
        %v2597 = vmax.f32 %v2533, 0.0
        %v2598 = vmax.f32 %v2534, 0.0
        %v2599 = vmax.f32 %v2535, 0.0
        %v2600 = vmax.f32 %v2536, 0.0
        %v2601 = vmax.f32 %v2537, 0.0
        %v2602 = vmax.f32 %v2538, 0.0
        %v2603 = vmax.f32 %v2539, 0.0
        %v2604 = vmax.f32 %v2540, 0.0
        %v2605 = vmax.f32 %v2541, 0.0
        %v2606 = vmax.f32 %v2542, %v2546
        %v2607 = vmax.f32 %v2543, %v2547
        %v2608 = vmax.f32 %v2544, %v2548
        %v2609 = vmax.f32 %v2545, %v2549
        %v2610 = vmax.f32 %v2550, %v2554
        %v2611 = vmax.f32 %v2551, %v2555
        %v2612 = vmax.f32 %v2552, %v2556
        %v2613 = vmax.f32 %v2553, %v2557
        %v2614 = vmax.f32 %v2558, %v2562
        %v2615 = vmax.f32 %v2559, %v2563
        %v2616 = vmax.f32 %v2560, %v2564
        %v2617 = vmax.f32 %v2561, %v2565
        %v2618 = vmax.f32 %v2566, %v2570
        %v2619 = vmax.f32 %v2567, %v2571
        %v2620 = vmax.f32 %v2568, %v2572
        %v2621 = vmax.f32 %v2569, %v2573
        %v2622 = vmax.f32 %v2574, %v2578
        %v2623 = vmax.f32 %v2575, %v2579
        %v2624 = vmax.f32 %v2576, %v2580
        %v2625 = vmax.f32 %v2577, %v2581
        %v2626 = vmax.f32 %v2582, %v2586
        %v2627 = vmax.f32 %v2583, %v2587
        %v2628 = vmax.f32 %v2584, %v2588
        %v2629 = vmax.f32 %v2585, %v2589
        %v2630 = vmax.f32 %v2590, %v2594
        %v2631 = vmax.f32 %v2591, %v2595
        %v2632 = vmax.f32 %v2592, %v2596
        %v2633 = vmax.f32 %v2593, %v2597
        %v2634 = vmax.f32 %v2598, %v2602
        %v2635 = vmax.f32 %v2599, %v2603
        %v2636 = vmax.f32 %v2600, %v2604
        %v2637 = vmax.f32 %v2601, %v2605
        %v2670 = vcombine.high %v2606, %v2606
        %v2672 = vunpack.c.l.s4 1983009808
        %v2673 = vunpack.c.0.s8 %v2672
        %v2674 = vlaneseq
        %v2675 = vshrl.u32 %v2674, 7
        %v2676 = vsub.s32 %v2673, %v2675
        %v2677 = vrot.slane %v2606, %v2676
        %v2679 = vunpack.c.l.s4 1983009808
        %v2680 = vunpack.c.0.s8 %v2679
        %v2681 = vlaneseq
        %v2682 = vshrl.u32 %v2681, 7
        %v2683 = vsub.s32 %v2680, %v2682
        %v2684 = vrot.slane %v2670, %v2683
        %v2685 = vcombine.high %v2677, %v2677
        %v2686 = vcombine.high %v2684, %v2684
        %v2687 = vcombine.high %v2607, %v2607
        %v2689 = vunpack.c.l.s4 1983009808
        %v2690 = vunpack.c.0.s8 %v2689
        %v2691 = vlaneseq
        %v2692 = vshrl.u32 %v2691, 7
        %v2693 = vsub.s32 %v2690, %v2692
        %v2694 = vrot.slane %v2607, %v2693
        %v2696 = vunpack.c.l.s4 1983009808
        %v2697 = vunpack.c.0.s8 %v2696
        %v2698 = vlaneseq
        %v2699 = vshrl.u32 %v2698, 7
        %v2700 = vsub.s32 %v2697, %v2699
        %v2701 = vrot.slane %v2687, %v2700
        %v2702 = vcombine.high %v2694, %v2694
        %v2703 = vcombine.high %v2701, %v2701
        %v2704 = vcombine.high %v2608, %v2608
        %v2706 = vunpack.c.l.s4 1983009808
        %v2707 = vunpack.c.0.s8 %v2706
        %v2708 = vlaneseq
        %v2709 = vshrl.u32 %v2708, 7
        %v2710 = vsub.s32 %v2707, %v2709
        %v2711 = vrot.slane %v2608, %v2710
        %v2713 = vunpack.c.l.s4 1983009808
        %v2714 = vunpack.c.0.s8 %v2713
        %v2715 = vlaneseq
        %v2716 = vshrl.u32 %v2715, 7
        %v2717 = vsub.s32 %v2714, %v2716
        %v2718 = vrot.slane %v2704, %v2717
        %v2719 = vcombine.high %v2711, %v2711
        %v2720 = vcombine.high %v2718, %v2718
        %v2721 = vcombine.high %v2609, %v2609
        %v2723 = vunpack.c.l.s4 1983009808
        %v2724 = vunpack.c.0.s8 %v2723
        %v2725 = vlaneseq
        %v2726 = vshrl.u32 %v2725, 7
        %v2727 = vsub.s32 %v2724, %v2726
        %v2728 = vrot.slane %v2609, %v2727
        %v2730 = vunpack.c.l.s4 1983009808
        %v2731 = vunpack.c.0.s8 %v2730
        %v2732 = vlaneseq
        %v2733 = vshrl.u32 %v2732, 7
        %v2734 = vsub.s32 %v2731, %v2733
        %v2735 = vrot.slane %v2721, %v2734
        %v2736 = vcombine.high %v2728, %v2728
        %v2737 = vcombine.high %v2735, %v2735
        %v2738 = vcombine.high %v2610, %v2610
        %v2740 = vunpack.c.l.s4 1983009808
        %v2741 = vunpack.c.0.s8 %v2740
        %v2742 = vlaneseq
        %v2743 = vshrl.u32 %v2742, 7
        %v2744 = vsub.s32 %v2741, %v2743
        %v2745 = vrot.slane %v2610, %v2744
        %v2747 = vunpack.c.l.s4 1983009808
        %v2748 = vunpack.c.0.s8 %v2747
        %v2749 = vlaneseq
        %v2750 = vshrl.u32 %v2749, 7
        %v2751 = vsub.s32 %v2748, %v2750
        %v2752 = vrot.slane %v2738, %v2751
        %v2753 = vcombine.high %v2745, %v2745
        %v2754 = vcombine.high %v2752, %v2752
        %v2755 = vcombine.high %v2611, %v2611
        %v2757 = vunpack.c.l.s4 1983009808
        %v2758 = vunpack.c.0.s8 %v2757
        %v2759 = vlaneseq
        %v2760 = vshrl.u32 %v2759, 7
        %v2761 = vsub.s32 %v2758, %v2760
        %v2762 = vrot.slane %v2611, %v2761
        %v2764 = vunpack.c.l.s4 1983009808
        %v2765 = vunpack.c.0.s8 %v2764
        %v2766 = vlaneseq
        %v2767 = vshrl.u32 %v2766, 7
        %v2768 = vsub.s32 %v2765, %v2767
        %v2769 = vrot.slane %v2755, %v2768
        %v2770 = vcombine.high %v2762, %v2762
        %v2771 = vcombine.high %v2769, %v2769
        %v2772 = vcombine.high %v2612, %v2612
        %v2774 = vunpack.c.l.s4 1983009808
        %v2775 = vunpack.c.0.s8 %v2774
        %v2776 = vlaneseq
        %v2777 = vshrl.u32 %v2776, 7
        %v2778 = vsub.s32 %v2775, %v2777
        %v2779 = vrot.slane %v2612, %v2778
        %v2781 = vunpack.c.l.s4 1983009808
        %v2782 = vunpack.c.0.s8 %v2781
        %v2783 = vlaneseq
        %v2784 = vshrl.u32 %v2783, 7
        %v2785 = vsub.s32 %v2782, %v2784
        %v2786 = vrot.slane %v2772, %v2785
        %v2787 = vcombine.high %v2779, %v2779
        %v2788 = vcombine.high %v2786, %v2786
        %v2789 = vcombine.high %v2613, %v2613
        %v2791 = vunpack.c.l.s4 1983009808
        %v2792 = vunpack.c.0.s8 %v2791
        %v2793 = vlaneseq
        %v2794 = vshrl.u32 %v2793, 7
        %v2795 = vsub.s32 %v2792, %v2794
        %v2796 = vrot.slane %v2613, %v2795
        %v2798 = vunpack.c.l.s4 1983009808
        %v2799 = vunpack.c.0.s8 %v2798
        %v2800 = vlaneseq
        %v2801 = vshrl.u32 %v2800, 7
        %v2802 = vsub.s32 %v2799, %v2801
        %v2803 = vrot.slane %v2789, %v2802
        %v2804 = vcombine.high %v2796, %v2796
        %v2805 = vcombine.high %v2803, %v2803
        %v2806 = vcombine.high %v2614, %v2614
        %v2808 = vunpack.c.l.s4 1983009808
        %v2809 = vunpack.c.0.s8 %v2808
        %v2810 = vlaneseq
        %v2811 = vshrl.u32 %v2810, 7
        %v2812 = vsub.s32 %v2809, %v2811
        %v2813 = vrot.slane %v2614, %v2812
        %v2815 = vunpack.c.l.s4 1983009808
        %v2816 = vunpack.c.0.s8 %v2815
        %v2817 = vlaneseq
        %v2818 = vshrl.u32 %v2817, 7
        %v2819 = vsub.s32 %v2816, %v2818
        %v2820 = vrot.slane %v2806, %v2819
        %v2821 = vcombine.high %v2813, %v2813
        %v2822 = vcombine.high %v2820, %v2820
        %v2823 = vcombine.high %v2615, %v2615
        %v2825 = vunpack.c.l.s4 1983009808
        %v2826 = vunpack.c.0.s8 %v2825
        %v2827 = vlaneseq
        %v2828 = vshrl.u32 %v2827, 7
        %v2829 = vsub.s32 %v2826, %v2828
        %v2830 = vrot.slane %v2615, %v2829
        %v2832 = vunpack.c.l.s4 1983009808
        %v2833 = vunpack.c.0.s8 %v2832
        %v2834 = vlaneseq
        %v2835 = vshrl.u32 %v2834, 7
        %v2836 = vsub.s32 %v2833, %v2835
        %v2837 = vrot.slane %v2823, %v2836
        %v2838 = vcombine.high %v2830, %v2830
        %v2839 = vcombine.high %v2837, %v2837
        %v2840 = vcombine.high %v2616, %v2616
        %v2842 = vunpack.c.l.s4 1983009808
        %v2843 = vunpack.c.0.s8 %v2842
        %v2844 = vlaneseq
        %v2845 = vshrl.u32 %v2844, 7
        %v2846 = vsub.s32 %v2843, %v2845
        %v2847 = vrot.slane %v2616, %v2846
        %v2849 = vunpack.c.l.s4 1983009808
        %v2850 = vunpack.c.0.s8 %v2849
        %v2851 = vlaneseq
        %v2852 = vshrl.u32 %v2851, 7
        %v2853 = vsub.s32 %v2850, %v2852
        %v2854 = vrot.slane %v2840, %v2853
        %v2855 = vcombine.high %v2847, %v2847
        %v2856 = vcombine.high %v2854, %v2854
        %v2857 = vcombine.high %v2617, %v2617
        %v2859 = vunpack.c.l.s4 1983009808
        %v2860 = vunpack.c.0.s8 %v2859
        %v2861 = vlaneseq
        %v2862 = vshrl.u32 %v2861, 7
        %v2863 = vsub.s32 %v2860, %v2862
        %v2864 = vrot.slane %v2617, %v2863
        %v2866 = vunpack.c.l.s4 1983009808
        %v2867 = vunpack.c.0.s8 %v2866
        %v2868 = vlaneseq
        %v2869 = vshrl.u32 %v2868, 7
        %v2870 = vsub.s32 %v2867, %v2869
        %v2871 = vrot.slane %v2857, %v2870
        %v2872 = vcombine.high %v2864, %v2864
        %v2873 = vcombine.high %v2871, %v2871
        %v2874 = vcombine.high %v2618, %v2618
        %v2876 = vunpack.c.l.s4 1983009808
        %v2877 = vunpack.c.0.s8 %v2876
        %v2878 = vlaneseq
        %v2879 = vshrl.u32 %v2878, 7
        %v2880 = vsub.s32 %v2877, %v2879
        %v2881 = vrot.slane %v2618, %v2880
        %v2883 = vunpack.c.l.s4 1983009808
        %v2884 = vunpack.c.0.s8 %v2883
        %v2885 = vlaneseq
        %v2886 = vshrl.u32 %v2885, 7
        %v2887 = vsub.s32 %v2884, %v2886
        %v2888 = vrot.slane %v2874, %v2887
        %v2889 = vcombine.high %v2881, %v2881
        %v2890 = vcombine.high %v2888, %v2888
        %v2891 = vcombine.high %v2619, %v2619
        %v2893 = vunpack.c.l.s4 1983009808
        %v2894 = vunpack.c.0.s8 %v2893
        %v2895 = vlaneseq
        %v2896 = vshrl.u32 %v2895, 7
        %v2897 = vsub.s32 %v2894, %v2896
        %v2898 = vrot.slane %v2619, %v2897
        %v2900 = vunpack.c.l.s4 1983009808
        %v2901 = vunpack.c.0.s8 %v2900
        %v2902 = vlaneseq
        %v2903 = vshrl.u32 %v2902, 7
        %v2904 = vsub.s32 %v2901, %v2903
        %v2905 = vrot.slane %v2891, %v2904
        %v2906 = vcombine.high %v2898, %v2898
        %v2907 = vcombine.high %v2905, %v2905
        %v2908 = vcombine.high %v2620, %v2620
        %v2910 = vunpack.c.l.s4 1983009808
        %v2911 = vunpack.c.0.s8 %v2910
        %v2912 = vlaneseq
        %v2913 = vshrl.u32 %v2912, 7
        %v2914 = vsub.s32 %v2911, %v2913
        %v2915 = vrot.slane %v2620, %v2914
        %v2917 = vunpack.c.l.s4 1983009808
        %v2918 = vunpack.c.0.s8 %v2917
        %v2919 = vlaneseq
        %v2920 = vshrl.u32 %v2919, 7
        %v2921 = vsub.s32 %v2918, %v2920
        %v2922 = vrot.slane %v2908, %v2921
        %v2923 = vcombine.high %v2915, %v2915
        %v2924 = vcombine.high %v2922, %v2922
        %v2925 = vcombine.high %v2621, %v2621
        %v2927 = vunpack.c.l.s4 1983009808
        %v2928 = vunpack.c.0.s8 %v2927
        %v2929 = vlaneseq
        %v2930 = vshrl.u32 %v2929, 7
        %v2931 = vsub.s32 %v2928, %v2930
        %v2932 = vrot.slane %v2621, %v2931
        %v2934 = vunpack.c.l.s4 1983009808
        %v2935 = vunpack.c.0.s8 %v2934
        %v2936 = vlaneseq
        %v2937 = vshrl.u32 %v2936, 7
        %v2938 = vsub.s32 %v2935, %v2937
        %v2939 = vrot.slane %v2925, %v2938
        %v2940 = vcombine.high %v2932, %v2932
        %v2941 = vcombine.high %v2939, %v2939
        %v2942 = vcombine.high %v2622, %v2622
        %v2944 = vunpack.c.l.s4 1983009808
        %v2945 = vunpack.c.0.s8 %v2944
        %v2946 = vlaneseq
        %v2947 = vshrl.u32 %v2946, 7
        %v2948 = vsub.s32 %v2945, %v2947
        %v2949 = vrot.slane %v2622, %v2948
        %v2951 = vunpack.c.l.s4 1983009808
        %v2952 = vunpack.c.0.s8 %v2951
        %v2953 = vlaneseq
        %v2954 = vshrl.u32 %v2953, 7
        %v2955 = vsub.s32 %v2952, %v2954
        %v2956 = vrot.slane %v2942, %v2955
        %v2957 = vcombine.high %v2949, %v2949
        %v2958 = vcombine.high %v2956, %v2956
        %v2959 = vcombine.high %v2623, %v2623
        %v2961 = vunpack.c.l.s4 1983009808
        %v2962 = vunpack.c.0.s8 %v2961
        %v2963 = vlaneseq
        %v2964 = vshrl.u32 %v2963, 7
        %v2965 = vsub.s32 %v2962, %v2964
        %v2966 = vrot.slane %v2623, %v2965
        %v2968 = vunpack.c.l.s4 1983009808
        %v2969 = vunpack.c.0.s8 %v2968
        %v2970 = vlaneseq
        %v2971 = vshrl.u32 %v2970, 7
        %v2972 = vsub.s32 %v2969, %v2971
        %v2973 = vrot.slane %v2959, %v2972
        %v2974 = vcombine.high %v2966, %v2966
        %v2975 = vcombine.high %v2973, %v2973
        %v2976 = vcombine.high %v2624, %v2624
        %v2978 = vunpack.c.l.s4 1983009808
        %v2979 = vunpack.c.0.s8 %v2978
        %v2980 = vlaneseq
        %v2981 = vshrl.u32 %v2980, 7
        %v2982 = vsub.s32 %v2979, %v2981
        %v2983 = vrot.slane %v2624, %v2982
        %v2985 = vunpack.c.l.s4 1983009808
        %v2986 = vunpack.c.0.s8 %v2985
        %v2987 = vlaneseq
        %v2988 = vshrl.u32 %v2987, 7
        %v2989 = vsub.s32 %v2986, %v2988
        %v2990 = vrot.slane %v2976, %v2989
        %v2991 = vcombine.high %v2983, %v2983
        %v2992 = vcombine.high %v2990, %v2990
        %v2993 = vcombine.high %v2625, %v2625
        %v2995 = vunpack.c.l.s4 1983009808
        %v2996 = vunpack.c.0.s8 %v2995
        %v2997 = vlaneseq
        %v2998 = vshrl.u32 %v2997, 7
        %v2999 = vsub.s32 %v2996, %v2998
        %v3000 = vrot.slane %v2625, %v2999
        %v3002 = vunpack.c.l.s4 1983009808
        %v3003 = vunpack.c.0.s8 %v3002
        %v3004 = vlaneseq
        %v3005 = vshrl.u32 %v3004, 7
        %v3006 = vsub.s32 %v3003, %v3005
        %v3007 = vrot.slane %v2993, %v3006
        %v3008 = vcombine.high %v3000, %v3000
        %v3009 = vcombine.high %v3007, %v3007
        %v3010 = vcombine.high %v2626, %v2626
        %v3012 = vunpack.c.l.s4 1983009808
        %v3013 = vunpack.c.0.s8 %v3012
        %v3014 = vlaneseq
        %v3015 = vshrl.u32 %v3014, 7
        %v3016 = vsub.s32 %v3013, %v3015
        %v3017 = vrot.slane %v2626, %v3016
        %v3019 = vunpack.c.l.s4 1983009808
        %v3020 = vunpack.c.0.s8 %v3019
        %v3021 = vlaneseq
        %v3022 = vshrl.u32 %v3021, 7
        %v3023 = vsub.s32 %v3020, %v3022
        %v3024 = vrot.slane %v3010, %v3023
        %v3025 = vcombine.high %v3017, %v3017
        %v3026 = vcombine.high %v3024, %v3024
        %v3027 = vcombine.high %v2627, %v2627
        %v3029 = vunpack.c.l.s4 1983009808
        %v3030 = vunpack.c.0.s8 %v3029
        %v3031 = vlaneseq
        %v3032 = vshrl.u32 %v3031, 7
        %v3033 = vsub.s32 %v3030, %v3032
        %v3034 = vrot.slane %v2627, %v3033
        %v3036 = vunpack.c.l.s4 1983009808
        %v3037 = vunpack.c.0.s8 %v3036
        %v3038 = vlaneseq
        %v3039 = vshrl.u32 %v3038, 7
        %v3040 = vsub.s32 %v3037, %v3039
        %v3041 = vrot.slane %v3027, %v3040
        %v3042 = vcombine.high %v3034, %v3034
        %v3043 = vcombine.high %v3041, %v3041
        %v3044 = vcombine.high %v2628, %v2628
        %v3046 = vunpack.c.l.s4 1983009808
        %v3047 = vunpack.c.0.s8 %v3046
        %v3048 = vlaneseq
        %v3049 = vshrl.u32 %v3048, 7
        %v3050 = vsub.s32 %v3047, %v3049
        %v3051 = vrot.slane %v2628, %v3050
        %v3053 = vunpack.c.l.s4 1983009808
        %v3054 = vunpack.c.0.s8 %v3053
        %v3055 = vlaneseq
        %v3056 = vshrl.u32 %v3055, 7
        %v3057 = vsub.s32 %v3054, %v3056
        %v3058 = vrot.slane %v3044, %v3057
        %v3059 = vcombine.high %v3051, %v3051
        %v3060 = vcombine.high %v3058, %v3058
        %v3061 = vcombine.high %v2629, %v2629
        %v3063 = vunpack.c.l.s4 1983009808
        %v3064 = vunpack.c.0.s8 %v3063
        %v3065 = vlaneseq
        %v3066 = vshrl.u32 %v3065, 7
        %v3067 = vsub.s32 %v3064, %v3066
        %v3068 = vrot.slane %v2629, %v3067
        %v3070 = vunpack.c.l.s4 1983009808
        %v3071 = vunpack.c.0.s8 %v3070
        %v3072 = vlaneseq
        %v3073 = vshrl.u32 %v3072, 7
        %v3074 = vsub.s32 %v3071, %v3073
        %v3075 = vrot.slane %v3061, %v3074
        %v3076 = vcombine.high %v3068, %v3068
        %v3077 = vcombine.high %v3075, %v3075
        %v3078 = vcombine.high %v2630, %v2630
        %v3080 = vunpack.c.l.s4 1983009808
        %v3081 = vunpack.c.0.s8 %v3080
        %v3082 = vlaneseq
        %v3083 = vshrl.u32 %v3082, 7
        %v3084 = vsub.s32 %v3081, %v3083
        %v3085 = vrot.slane %v2630, %v3084
        %v3087 = vunpack.c.l.s4 1983009808
        %v3088 = vunpack.c.0.s8 %v3087
        %v3089 = vlaneseq
        %v3090 = vshrl.u32 %v3089, 7
        %v3091 = vsub.s32 %v3088, %v3090
        %v3092 = vrot.slane %v3078, %v3091
        %v3093 = vcombine.high %v3085, %v3085
        %v3094 = vcombine.high %v3092, %v3092
        %v3095 = vcombine.high %v2631, %v2631
        %v3097 = vunpack.c.l.s4 1983009808
        %v3098 = vunpack.c.0.s8 %v3097
        %v3099 = vlaneseq
        %v3100 = vshrl.u32 %v3099, 7
        %v3101 = vsub.s32 %v3098, %v3100
        %v3102 = vrot.slane %v2631, %v3101
        %v3104 = vunpack.c.l.s4 1983009808
        %v3105 = vunpack.c.0.s8 %v3104
        %v3106 = vlaneseq
        %v3107 = vshrl.u32 %v3106, 7
        %v3108 = vsub.s32 %v3105, %v3107
        %v3109 = vrot.slane %v3095, %v3108
        %v3110 = vcombine.high %v3102, %v3102
        %v3111 = vcombine.high %v3109, %v3109
        %v3112 = vcombine.high %v2632, %v2632
        %v3114 = vunpack.c.l.s4 1983009808
        %v3115 = vunpack.c.0.s8 %v3114
        %v3116 = vlaneseq
        %v3117 = vshrl.u32 %v3116, 7
        %v3118 = vsub.s32 %v3115, %v3117
        %v3119 = vrot.slane %v2632, %v3118
        %v3121 = vunpack.c.l.s4 1983009808
        %v3122 = vunpack.c.0.s8 %v3121
        %v3123 = vlaneseq
        %v3124 = vshrl.u32 %v3123, 7
        %v3125 = vsub.s32 %v3122, %v3124
        %v3126 = vrot.slane %v3112, %v3125
        %v3127 = vcombine.high %v3119, %v3119
        %v3128 = vcombine.high %v3126, %v3126
        %v3129 = vcombine.high %v2633, %v2633
        %v3131 = vunpack.c.l.s4 1983009808
        %v3132 = vunpack.c.0.s8 %v3131
        %v3133 = vlaneseq
        %v3134 = vshrl.u32 %v3133, 7
        %v3135 = vsub.s32 %v3132, %v3134
        %v3136 = vrot.slane %v2633, %v3135
        %v3138 = vunpack.c.l.s4 1983009808
        %v3139 = vunpack.c.0.s8 %v3138
        %v3140 = vlaneseq
        %v3141 = vshrl.u32 %v3140, 7
        %v3142 = vsub.s32 %v3139, %v3141
        %v3143 = vrot.slane %v3129, %v3142
        %v3144 = vcombine.high %v3136, %v3136
        %v3145 = vcombine.high %v3143, %v3143
        %v3146 = vcombine.high %v2634, %v2634
        %v3148 = vunpack.c.l.s4 1983009808
        %v3149 = vunpack.c.0.s8 %v3148
        %v3150 = vlaneseq
        %v3151 = vshrl.u32 %v3150, 7
        %v3152 = vsub.s32 %v3149, %v3151
        %v3153 = vrot.slane %v2634, %v3152
        %v3155 = vunpack.c.l.s4 1983009808
        %v3156 = vunpack.c.0.s8 %v3155
        %v3157 = vlaneseq
        %v3158 = vshrl.u32 %v3157, 7
        %v3159 = vsub.s32 %v3156, %v3158
        %v3160 = vrot.slane %v3146, %v3159
        %v3161 = vcombine.high %v3153, %v3153
        %v3162 = vcombine.high %v3160, %v3160
        %v3163 = vcombine.high %v2635, %v2635
        %v3165 = vunpack.c.l.s4 1983009808
        %v3166 = vunpack.c.0.s8 %v3165
        %v3167 = vlaneseq
        %v3168 = vshrl.u32 %v3167, 7
        %v3169 = vsub.s32 %v3166, %v3168
        %v3170 = vrot.slane %v2635, %v3169
        %v3172 = vunpack.c.l.s4 1983009808
        %v3173 = vunpack.c.0.s8 %v3172
        %v3174 = vlaneseq
        %v3175 = vshrl.u32 %v3174, 7
        %v3176 = vsub.s32 %v3173, %v3175
        %v3177 = vrot.slane %v3163, %v3176
        %v3178 = vcombine.high %v3170, %v3170
        %v3179 = vcombine.high %v3177, %v3177
        %v3180 = vcombine.high %v2636, %v2636
        %v3182 = vunpack.c.l.s4 1983009808
        %v3183 = vunpack.c.0.s8 %v3182
        %v3184 = vlaneseq
        %v3185 = vshrl.u32 %v3184, 7
        %v3186 = vsub.s32 %v3183, %v3185
        %v3187 = vrot.slane %v2636, %v3186
        %v3189 = vunpack.c.l.s4 1983009808
        %v3190 = vunpack.c.0.s8 %v3189
        %v3191 = vlaneseq
        %v3192 = vshrl.u32 %v3191, 7
        %v3193 = vsub.s32 %v3190, %v3192
        %v3194 = vrot.slane %v3180, %v3193
        %v3195 = vcombine.high %v3187, %v3187
        %v3196 = vcombine.high %v3194, %v3194
        %v3197 = vcombine.high %v2637, %v2637
        %v3199 = vunpack.c.l.s4 1983009808
        %v3200 = vunpack.c.0.s8 %v3199
        %v3201 = vlaneseq
        %v3202 = vshrl.u32 %v3201, 7
        %v3203 = vsub.s32 %v3200, %v3202
        %v3204 = vrot.slane %v2637, %v3203
        %v3206 = vunpack.c.l.s4 1983009808
        %v3207 = vunpack.c.0.s8 %v3206
        %v3208 = vlaneseq
        %v3209 = vshrl.u32 %v3208, 7
        %v3210 = vsub.s32 %v3207, %v3209
        %v3211 = vrot.slane %v3197, %v3210
        %v3212 = vcombine.high %v3204, %v3204
        %v3213 = vcombine.high %v3211, %v3211
        %v3342 = vrot.slane %v2677, 7
        %v3343 = vrot.slane %v3342, 2
        %v3344 = vrot.slane %v2685, 7
        %v3345 = vrot.slane %v3344, 2
        %v3346 = vrot.slane %v2684, 7
        %v3347 = vrot.slane %v3346, 2
        %v3348 = vrot.slane %v2686, 7
        %v3349 = vrot.slane %v3348, 2
        %v3350 = vrot.slane %v2694, 7
        %v3351 = vrot.slane %v3350, 2
        %v3352 = vrot.slane %v2702, 7
        %v3353 = vrot.slane %v3352, 2
        %v3354 = vrot.slane %v2701, 7
        %v3355 = vrot.slane %v3354, 2
        %v3356 = vrot.slane %v2703, 7
        %v3357 = vrot.slane %v3356, 2
        %v3358 = vrot.slane %v2711, 7
        %v3359 = vrot.slane %v3358, 2
        %v3360 = vrot.slane %v2719, 7
        %v3361 = vrot.slane %v3360, 2
        %v3362 = vrot.slane %v2718, 7
        %v3363 = vrot.slane %v3362, 2
        %v3364 = vrot.slane %v2720, 7
        %v3365 = vrot.slane %v3364, 2
        %v3366 = vrot.slane %v2728, 7
        %v3367 = vrot.slane %v3366, 2
        %v3368 = vrot.slane %v2736, 7
        %v3369 = vrot.slane %v3368, 2
        %v3370 = vrot.slane %v2735, 7
        %v3371 = vrot.slane %v3370, 2
        %v3372 = vrot.slane %v2737, 7
        %v3373 = vrot.slane %v3372, 2
        %v3374 = vrot.slane %v2745, 7
        %v3375 = vrot.slane %v3374, 2
        %v3376 = vrot.slane %v2753, 7
        %v3377 = vrot.slane %v3376, 2
        %v3378 = vrot.slane %v2752, 7
        %v3379 = vrot.slane %v3378, 2
        %v3380 = vrot.slane %v2754, 7
        %v3381 = vrot.slane %v3380, 2
        %v3382 = vrot.slane %v2762, 7
        %v3383 = vrot.slane %v3382, 2
        %v3384 = vrot.slane %v2770, 7
        %v3385 = vrot.slane %v3384, 2
        %v3386 = vrot.slane %v2769, 7
        %v3387 = vrot.slane %v3386, 2
        %v3388 = vrot.slane %v2771, 7
        %v3389 = vrot.slane %v3388, 2
        %v3390 = vrot.slane %v2779, 7
        %v3391 = vrot.slane %v3390, 2
        %v3392 = vrot.slane %v2787, 7
        %v3393 = vrot.slane %v3392, 2
        %v3394 = vrot.slane %v2786, 7
        %v3395 = vrot.slane %v3394, 2
        %v3396 = vrot.slane %v2788, 7
        %v3397 = vrot.slane %v3396, 2
        %v3398 = vrot.slane %v2796, 7
        %v3399 = vrot.slane %v3398, 2
        %v3400 = vrot.slane %v2804, 7
        %v3401 = vrot.slane %v3400, 2
        %v3402 = vrot.slane %v2803, 7
        %v3403 = vrot.slane %v3402, 2
        %v3404 = vrot.slane %v2805, 7
        %v3405 = vrot.slane %v3404, 2
        %v3406 = vrot.slane %v2813, 7
        %v3407 = vrot.slane %v3406, 2
        %v3408 = vrot.slane %v2821, 7
        %v3409 = vrot.slane %v3408, 2
        %v3410 = vrot.slane %v2820, 7
        %v3411 = vrot.slane %v3410, 2
        %v3412 = vrot.slane %v2822, 7
        %v3413 = vrot.slane %v3412, 2
        %v3414 = vrot.slane %v2830, 7
        %v3415 = vrot.slane %v3414, 2
        %v3416 = vrot.slane %v2838, 7
        %v3417 = vrot.slane %v3416, 2
        %v3418 = vrot.slane %v2837, 7
        %v3419 = vrot.slane %v3418, 2
        %v3420 = vrot.slane %v2839, 7
        %v3421 = vrot.slane %v3420, 2
        %v3422 = vrot.slane %v2847, 7
        %v3423 = vrot.slane %v3422, 2
        %v3424 = vrot.slane %v2855, 7
        %v3425 = vrot.slane %v3424, 2
        %v3426 = vrot.slane %v2854, 7
        %v3427 = vrot.slane %v3426, 2
        %v3428 = vrot.slane %v2856, 7
        %v3429 = vrot.slane %v3428, 2
        %v3430 = vrot.slane %v2864, 7
        %v3431 = vrot.slane %v3430, 2
        %v3432 = vrot.slane %v2872, 7
        %v3433 = vrot.slane %v3432, 2
        %v3434 = vrot.slane %v2871, 7
        %v3435 = vrot.slane %v3434, 2
        %v3436 = vrot.slane %v2873, 7
        %v3437 = vrot.slane %v3436, 2
        %v3438 = vrot.slane %v2881, 7
        %v3439 = vrot.slane %v3438, 2
        %v3440 = vrot.slane %v2889, 7
        %v3441 = vrot.slane %v3440, 2
        %v3442 = vrot.slane %v2888, 7
        %v3443 = vrot.slane %v3442, 2
        %v3444 = vrot.slane %v2890, 7
        %v3445 = vrot.slane %v3444, 2
        %v3446 = vrot.slane %v2898, 7
        %v3447 = vrot.slane %v3446, 2
        %v3448 = vrot.slane %v2906, 7
        %v3449 = vrot.slane %v3448, 2
        %v3450 = vrot.slane %v2905, 7
        %v3451 = vrot.slane %v3450, 2
        %v3452 = vrot.slane %v2907, 7
        %v3453 = vrot.slane %v3452, 2
        %v3454 = vrot.slane %v2915, 7
        %v3455 = vrot.slane %v3454, 2
        %v3456 = vrot.slane %v2923, 7
        %v3457 = vrot.slane %v3456, 2
        %v3458 = vrot.slane %v2922, 7
        %v3459 = vrot.slane %v3458, 2
        %v3460 = vrot.slane %v2924, 7
        %v3461 = vrot.slane %v3460, 2
        %v3462 = vrot.slane %v2932, 7
        %v3463 = vrot.slane %v3462, 2
        %v3464 = vrot.slane %v2940, 7
        %v3465 = vrot.slane %v3464, 2
        %v3466 = vrot.slane %v2939, 7
        %v3467 = vrot.slane %v3466, 2
        %v3468 = vrot.slane %v2941, 7
        %v3469 = vrot.slane %v3468, 2
        %v3470 = vrot.slane %v2949, 7
        %v3471 = vrot.slane %v3470, 2
        %v3472 = vrot.slane %v2957, 7
        %v3473 = vrot.slane %v3472, 2
        %v3474 = vrot.slane %v2956, 7
        %v3475 = vrot.slane %v3474, 2
        %v3476 = vrot.slane %v2958, 7
        %v3477 = vrot.slane %v3476, 2
        %v3478 = vrot.slane %v2966, 7
        %v3479 = vrot.slane %v3478, 2
        %v3480 = vrot.slane %v2974, 7
        %v3481 = vrot.slane %v3480, 2
        %v3482 = vrot.slane %v2973, 7
        %v3483 = vrot.slane %v3482, 2
        %v3484 = vrot.slane %v2975, 7
        %v3485 = vrot.slane %v3484, 2
        %v3486 = vrot.slane %v2983, 7
        %v3487 = vrot.slane %v3486, 2
        %v3488 = vrot.slane %v2991, 7
        %v3489 = vrot.slane %v3488, 2
        %v3490 = vrot.slane %v2990, 7
        %v3491 = vrot.slane %v3490, 2
        %v3492 = vrot.slane %v2992, 7
        %v3493 = vrot.slane %v3492, 2
        %v3494 = vrot.slane %v3000, 7
        %v3495 = vrot.slane %v3494, 2
        %v3496 = vrot.slane %v3008, 7
        %v3497 = vrot.slane %v3496, 2
        %v3498 = vrot.slane %v3007, 7
        %v3499 = vrot.slane %v3498, 2
        %v3500 = vrot.slane %v3009, 7
        %v3501 = vrot.slane %v3500, 2
        %v3502 = vrot.slane %v3017, 7
        %v3503 = vrot.slane %v3502, 2
        %v3504 = vrot.slane %v3025, 7
        %v3505 = vrot.slane %v3504, 2
        %v3506 = vrot.slane %v3024, 7
        %v3507 = vrot.slane %v3506, 2
        %v3508 = vrot.slane %v3026, 7
        %v3509 = vrot.slane %v3508, 2
        %v3510 = vrot.slane %v3034, 7
        %v3511 = vrot.slane %v3510, 2
        %v3512 = vrot.slane %v3042, 7
        %v3513 = vrot.slane %v3512, 2
        %v3514 = vrot.slane %v3041, 7
        %v3515 = vrot.slane %v3514, 2
        %v3516 = vrot.slane %v3043, 7
        %v3517 = vrot.slane %v3516, 2
        %v3518 = vrot.slane %v3051, 7
        %v3519 = vrot.slane %v3518, 2
        %v3520 = vrot.slane %v3059, 7
        %v3521 = vrot.slane %v3520, 2
        %v3522 = vrot.slane %v3058, 7
        %v3523 = vrot.slane %v3522, 2
        %v3524 = vrot.slane %v3060, 7
        %v3525 = vrot.slane %v3524, 2
        %v3526 = vrot.slane %v3068, 7
        %v3527 = vrot.slane %v3526, 2
        %v3528 = vrot.slane %v3076, 7
        %v3529 = vrot.slane %v3528, 2
        %v3530 = vrot.slane %v3075, 7
        %v3531 = vrot.slane %v3530, 2
        %v3532 = vrot.slane %v3077, 7
        %v3533 = vrot.slane %v3532, 2
        %v3534 = vrot.slane %v3085, 7
        %v3535 = vrot.slane %v3534, 2
        %v3536 = vrot.slane %v3093, 7
        %v3537 = vrot.slane %v3536, 2
        %v3538 = vrot.slane %v3092, 7
        %v3539 = vrot.slane %v3538, 2
        %v3540 = vrot.slane %v3094, 7
        %v3541 = vrot.slane %v3540, 2
        %v3542 = vrot.slane %v3102, 7
        %v3543 = vrot.slane %v3542, 2
        %v3544 = vrot.slane %v3110, 7
        %v3545 = vrot.slane %v3544, 2
        %v3546 = vrot.slane %v3109, 7
        %v3547 = vrot.slane %v3546, 2
        %v3548 = vrot.slane %v3111, 7
        %v3549 = vrot.slane %v3548, 2
        %v3550 = vrot.slane %v3119, 7
        %v3551 = vrot.slane %v3550, 2
        %v3552 = vrot.slane %v3127, 7
        %v3553 = vrot.slane %v3552, 2
        %v3554 = vrot.slane %v3126, 7
        %v3555 = vrot.slane %v3554, 2
        %v3556 = vrot.slane %v3128, 7
        %v3557 = vrot.slane %v3556, 2
        %v3558 = vrot.slane %v3136, 7
        %v3559 = vrot.slane %v3558, 2
        %v3560 = vrot.slane %v3144, 7
        %v3561 = vrot.slane %v3560, 2
        %v3562 = vrot.slane %v3143, 7
        %v3563 = vrot.slane %v3562, 2
        %v3564 = vrot.slane %v3145, 7
        %v3565 = vrot.slane %v3564, 2
        %v3566 = vrot.slane %v3153, 7
        %v3567 = vrot.slane %v3566, 2
        %v3568 = vrot.slane %v3161, 7
        %v3569 = vrot.slane %v3568, 2
        %v3570 = vrot.slane %v3160, 7
        %v3571 = vrot.slane %v3570, 2
        %v3572 = vrot.slane %v3162, 7
        %v3573 = vrot.slane %v3572, 2
        %v3574 = vrot.slane %v3170, 7
        %v3575 = vrot.slane %v3574, 2
        %v3576 = vrot.slane %v3178, 7
        %v3577 = vrot.slane %v3576, 2
        %v3578 = vrot.slane %v3177, 7
        %v3579 = vrot.slane %v3578, 2
        %v3580 = vrot.slane %v3179, 7
        %v3581 = vrot.slane %v3580, 2
        %v3582 = vrot.slane %v3187, 7
        %v3583 = vrot.slane %v3582, 2
        %v3584 = vrot.slane %v3195, 7
        %v3585 = vrot.slane %v3584, 2
        %v3586 = vrot.slane %v3194, 7
        %v3587 = vrot.slane %v3586, 2
        %v3588 = vrot.slane %v3196, 7
        %v3589 = vrot.slane %v3588, 2
        %v3590 = vrot.slane %v3204, 7
        %v3591 = vrot.slane %v3590, 2
        %v3592 = vrot.slane %v3212, 7
        %v3593 = vrot.slane %v3592, 2
        %v3594 = vrot.slane %v3211, 7
        %v3595 = vrot.slane %v3594, 2
        %v3596 = vrot.slane %v3213, 7
        %v3597 = vrot.slane %v3596, 2
        %v3726 = vmax.f32 %v2677, %v3343
        %v3727 = vmax.f32 %v2685, %v3345
        %v3728 = vmax.f32 %v2684, %v3347
        %v3729 = vmax.f32 %v2686, %v3349
        %v3730 = vmax.f32 %v2694, %v3351
        %v3731 = vmax.f32 %v2702, %v3353
        %v3732 = vmax.f32 %v2701, %v3355
        %v3733 = vmax.f32 %v2703, %v3357
        %v3734 = vmax.f32 %v2711, %v3359
        %v3735 = vmax.f32 %v2719, %v3361
        %v3736 = vmax.f32 %v2718, %v3363
        %v3737 = vmax.f32 %v2720, %v3365
        %v3738 = vmax.f32 %v2728, %v3367
        %v3739 = vmax.f32 %v2736, %v3369
        %v3740 = vmax.f32 %v2735, %v3371
        %v3741 = vmax.f32 %v2737, %v3373
        %v3742 = vmax.f32 %v2745, %v3375
        %v3743 = vmax.f32 %v2753, %v3377
        %v3744 = vmax.f32 %v2752, %v3379
        %v3745 = vmax.f32 %v2754, %v3381
        %v3746 = vmax.f32 %v2762, %v3383
        %v3747 = vmax.f32 %v2770, %v3385
        %v3748 = vmax.f32 %v2769, %v3387
        %v3749 = vmax.f32 %v2771, %v3389
        %v3750 = vmax.f32 %v2779, %v3391
        %v3751 = vmax.f32 %v2787, %v3393
        %v3752 = vmax.f32 %v2786, %v3395
        %v3753 = vmax.f32 %v2788, %v3397
        %v3754 = vmax.f32 %v2796, %v3399
        %v3755 = vmax.f32 %v2804, %v3401
        %v3756 = vmax.f32 %v2803, %v3403
        %v3757 = vmax.f32 %v2805, %v3405
        %v3758 = vmax.f32 %v2813, %v3407
        %v3759 = vmax.f32 %v2821, %v3409
        %v3760 = vmax.f32 %v2820, %v3411
        %v3761 = vmax.f32 %v2822, %v3413
        %v3762 = vmax.f32 %v2830, %v3415
        %v3763 = vmax.f32 %v2838, %v3417
        %v3764 = vmax.f32 %v2837, %v3419
        %v3765 = vmax.f32 %v2839, %v3421
        %v3766 = vmax.f32 %v2847, %v3423
        %v3767 = vmax.f32 %v2855, %v3425
        %v3768 = vmax.f32 %v2854, %v3427
        %v3769 = vmax.f32 %v2856, %v3429
        %v3770 = vmax.f32 %v2864, %v3431
        %v3771 = vmax.f32 %v2872, %v3433
        %v3772 = vmax.f32 %v2871, %v3435
        %v3773 = vmax.f32 %v2873, %v3437
        %v3774 = vmax.f32 %v2881, %v3439
        %v3775 = vmax.f32 %v2889, %v3441
        %v3776 = vmax.f32 %v2888, %v3443
        %v3777 = vmax.f32 %v2890, %v3445
        %v3778 = vmax.f32 %v2898, %v3447
        %v3779 = vmax.f32 %v2906, %v3449
        %v3780 = vmax.f32 %v2905, %v3451
        %v3781 = vmax.f32 %v2907, %v3453
        %v3782 = vmax.f32 %v2915, %v3455
        %v3783 = vmax.f32 %v2923, %v3457
        %v3784 = vmax.f32 %v2922, %v3459
        %v3785 = vmax.f32 %v2924, %v3461
        %v3786 = vmax.f32 %v2932, %v3463
        %v3787 = vmax.f32 %v2940, %v3465
        %v3788 = vmax.f32 %v2939, %v3467
        %v3789 = vmax.f32 %v2941, %v3469
        %v3790 = vmax.f32 %v2949, %v3471
        %v3791 = vmax.f32 %v2957, %v3473
        %v3792 = vmax.f32 %v2956, %v3475
        %v3793 = vmax.f32 %v2958, %v3477
        %v3794 = vmax.f32 %v2966, %v3479
        %v3795 = vmax.f32 %v2974, %v3481
        %v3796 = vmax.f32 %v2973, %v3483
        %v3797 = vmax.f32 %v2975, %v3485
        %v3798 = vmax.f32 %v2983, %v3487
        %v3799 = vmax.f32 %v2991, %v3489
        %v3800 = vmax.f32 %v2990, %v3491
        %v3801 = vmax.f32 %v2992, %v3493
        %v3802 = vmax.f32 %v3000, %v3495
        %v3803 = vmax.f32 %v3008, %v3497
        %v3804 = vmax.f32 %v3007, %v3499
        %v3805 = vmax.f32 %v3009, %v3501
        %v3806 = vmax.f32 %v3017, %v3503
        %v3807 = vmax.f32 %v3025, %v3505
        %v3808 = vmax.f32 %v3024, %v3507
        %v3809 = vmax.f32 %v3026, %v3509
        %v3810 = vmax.f32 %v3034, %v3511
        %v3811 = vmax.f32 %v3042, %v3513
        %v3812 = vmax.f32 %v3041, %v3515
        %v3813 = vmax.f32 %v3043, %v3517
        %v3814 = vmax.f32 %v3051, %v3519
        %v3815 = vmax.f32 %v3059, %v3521
        %v3816 = vmax.f32 %v3058, %v3523
        %v3817 = vmax.f32 %v3060, %v3525
        %v3818 = vmax.f32 %v3068, %v3527
        %v3819 = vmax.f32 %v3076, %v3529
        %v3820 = vmax.f32 %v3075, %v3531
        %v3821 = vmax.f32 %v3077, %v3533
        %v3822 = vmax.f32 %v3085, %v3535
        %v3823 = vmax.f32 %v3093, %v3537
        %v3824 = vmax.f32 %v3092, %v3539
        %v3825 = vmax.f32 %v3094, %v3541
        %v3826 = vmax.f32 %v3102, %v3543
        %v3827 = vmax.f32 %v3110, %v3545
        %v3828 = vmax.f32 %v3109, %v3547
        %v3829 = vmax.f32 %v3111, %v3549
        %v3830 = vmax.f32 %v3119, %v3551
        %v3831 = vmax.f32 %v3127, %v3553
        %v3832 = vmax.f32 %v3126, %v3555
        %v3833 = vmax.f32 %v3128, %v3557
        %v3834 = vmax.f32 %v3136, %v3559
        %v3835 = vmax.f32 %v3144, %v3561
        %v3836 = vmax.f32 %v3143, %v3563
        %v3837 = vmax.f32 %v3145, %v3565
        %v3838 = vmax.f32 %v3153, %v3567
        %v3839 = vmax.f32 %v3161, %v3569
        %v3840 = vmax.f32 %v3160, %v3571
        %v3841 = vmax.f32 %v3162, %v3573
        %v3842 = vmax.f32 %v3170, %v3575
        %v3843 = vmax.f32 %v3178, %v3577
        %v3844 = vmax.f32 %v3177, %v3579
        %v3845 = vmax.f32 %v3179, %v3581
        %v3846 = vmax.f32 %v3187, %v3583
        %v3847 = vmax.f32 %v3195, %v3585
        %v3848 = vmax.f32 %v3194, %v3587
        %v3849 = vmax.f32 %v3196, %v3589
        %v3850 = vmax.f32 %v3204, %v3591
        %v3851 = vmax.f32 %v3212, %v3593
        %v3852 = vmax.f32 %v3211, %v3595
        %v3853 = vmax.f32 %v3213, %v3597
        %vm3982 = vcmask 1044484
        %v3983 = vsel %vm3982, %v3726, %v3726
        %vm3984 = vcmask 1046534
        %v3985 = vsel %vm3984, %v3726, %v3983
        %v3986 = vrot.slane %v3727, 7
        %vm3987 = vcmask 1041409
        %v3988 = vsel %vm3987, %v3986, %v3985
        %vm3989 = vcmask 1043459
        %v3990 = vsel %vm3989, %v3986, %v3988
        %vm3991 = vcmask 1045509
        %v3992 = vsel %vm3991, %v3986, %v3990
        %vm3993 = vcmask 1047559
        %v3994 = vsel %vm3993, %v3986, %v3992
        %v3995 = vsel %vm3982, %v3728, %v3728
        %v3996 = vsel %vm3984, %v3728, %v3995
        %v3997 = vrot.slane %v3729, 7
        %v3998 = vsel %vm3987, %v3997, %v3996
        %v3999 = vsel %vm3989, %v3997, %v3998
        %v4000 = vsel %vm3991, %v3997, %v3999
        %v4001 = vsel %vm3993, %v3997, %v4000
        %v4002 = vsel %vm3982, %v3730, %v3730
        %v4003 = vsel %vm3984, %v3730, %v4002
        %v4004 = vrot.slane %v3731, 7
        %v4005 = vsel %vm3987, %v4004, %v4003
        %v4006 = vsel %vm3989, %v4004, %v4005
        %v4007 = vsel %vm3991, %v4004, %v4006
        %v4008 = vsel %vm3993, %v4004, %v4007
        %v4009 = vsel %vm3982, %v3732, %v3732
        %v4010 = vsel %vm3984, %v3732, %v4009
        %v4011 = vrot.slane %v3733, 7
        %v4012 = vsel %vm3987, %v4011, %v4010
        %v4013 = vsel %vm3989, %v4011, %v4012
        %v4014 = vsel %vm3991, %v4011, %v4013
        %v4015 = vsel %vm3993, %v4011, %v4014
        %v4016 = vsel %vm3982, %v3734, %v3734
        %v4017 = vsel %vm3984, %v3734, %v4016
        %v4018 = vrot.slane %v3735, 7
        %v4019 = vsel %vm3987, %v4018, %v4017
        %v4020 = vsel %vm3989, %v4018, %v4019
        %v4021 = vsel %vm3991, %v4018, %v4020
        %v4022 = vsel %vm3993, %v4018, %v4021
        %v4023 = vsel %vm3982, %v3736, %v3736
        %v4024 = vsel %vm3984, %v3736, %v4023
        %v4025 = vrot.slane %v3737, 7
        %v4026 = vsel %vm3987, %v4025, %v4024
        %v4027 = vsel %vm3989, %v4025, %v4026
        %v4028 = vsel %vm3991, %v4025, %v4027
        %v4029 = vsel %vm3993, %v4025, %v4028
        %v4030 = vsel %vm3982, %v3738, %v3738
        %v4031 = vsel %vm3984, %v3738, %v4030
        %v4032 = vrot.slane %v3739, 7
        %v4033 = vsel %vm3987, %v4032, %v4031
        %v4034 = vsel %vm3989, %v4032, %v4033
        %v4035 = vsel %vm3991, %v4032, %v4034
        %v4036 = vsel %vm3993, %v4032, %v4035
        %v4037 = vsel %vm3982, %v3740, %v3740
        %v4038 = vsel %vm3984, %v3740, %v4037
        %v4039 = vrot.slane %v3741, 7
        %v4040 = vsel %vm3987, %v4039, %v4038
        %v4041 = vsel %vm3989, %v4039, %v4040
        %v4042 = vsel %vm3991, %v4039, %v4041
        %v4043 = vsel %vm3993, %v4039, %v4042
        %v4044 = vsel %vm3982, %v3742, %v3742
        %v4045 = vsel %vm3984, %v3742, %v4044
        %v4046 = vrot.slane %v3743, 7
        %v4047 = vsel %vm3987, %v4046, %v4045
        %v4048 = vsel %vm3989, %v4046, %v4047
        %v4049 = vsel %vm3991, %v4046, %v4048
        %v4050 = vsel %vm3993, %v4046, %v4049
        %v4051 = vsel %vm3982, %v3744, %v3744
        %v4052 = vsel %vm3984, %v3744, %v4051
        %v4053 = vrot.slane %v3745, 7
        %v4054 = vsel %vm3987, %v4053, %v4052
        %v4055 = vsel %vm3989, %v4053, %v4054
        %v4056 = vsel %vm3991, %v4053, %v4055
        %v4057 = vsel %vm3993, %v4053, %v4056
        %v4058 = vsel %vm3982, %v3746, %v3746
        %v4059 = vsel %vm3984, %v3746, %v4058
        %v4060 = vrot.slane %v3747, 7
        %v4061 = vsel %vm3987, %v4060, %v4059
        %v4062 = vsel %vm3989, %v4060, %v4061
        %v4063 = vsel %vm3991, %v4060, %v4062
        %v4064 = vsel %vm3993, %v4060, %v4063
        %v4065 = vsel %vm3982, %v3748, %v3748
        %v4066 = vsel %vm3984, %v3748, %v4065
        %v4067 = vrot.slane %v3749, 7
        %v4068 = vsel %vm3987, %v4067, %v4066
        %v4069 = vsel %vm3989, %v4067, %v4068
        %v4070 = vsel %vm3991, %v4067, %v4069
        %v4071 = vsel %vm3993, %v4067, %v4070
        %v4072 = vsel %vm3982, %v3750, %v3750
        %v4073 = vsel %vm3984, %v3750, %v4072
        %v4074 = vrot.slane %v3751, 7
        %v4075 = vsel %vm3987, %v4074, %v4073
        %v4076 = vsel %vm3989, %v4074, %v4075
        %v4077 = vsel %vm3991, %v4074, %v4076
        %v4078 = vsel %vm3993, %v4074, %v4077
        %v4079 = vsel %vm3982, %v3752, %v3752
        %v4080 = vsel %vm3984, %v3752, %v4079
        %v4081 = vrot.slane %v3753, 7
        %v4082 = vsel %vm3987, %v4081, %v4080
        %v4083 = vsel %vm3989, %v4081, %v4082
        %v4084 = vsel %vm3991, %v4081, %v4083
        %v4085 = vsel %vm3993, %v4081, %v4084
        %v4086 = vsel %vm3982, %v3754, %v3754
        %v4087 = vsel %vm3984, %v3754, %v4086
        %v4088 = vrot.slane %v3755, 7
        %v4089 = vsel %vm3987, %v4088, %v4087
        %v4090 = vsel %vm3989, %v4088, %v4089
        %v4091 = vsel %vm3991, %v4088, %v4090
        %v4092 = vsel %vm3993, %v4088, %v4091
        %v4093 = vsel %vm3982, %v3756, %v3756
        %v4094 = vsel %vm3984, %v3756, %v4093
        %v4095 = vrot.slane %v3757, 7
        %v4096 = vsel %vm3987, %v4095, %v4094
        %v4097 = vsel %vm3989, %v4095, %v4096
        %v4098 = vsel %vm3991, %v4095, %v4097
        %v4099 = vsel %vm3993, %v4095, %v4098
        %v4100 = vsel %vm3982, %v3758, %v3758
        %v4101 = vsel %vm3984, %v3758, %v4100
        %v4102 = vrot.slane %v3759, 7
        %v4103 = vsel %vm3987, %v4102, %v4101
        %v4104 = vsel %vm3989, %v4102, %v4103
        %v4105 = vsel %vm3991, %v4102, %v4104
        %v4106 = vsel %vm3993, %v4102, %v4105
        %v4107 = vsel %vm3982, %v3760, %v3760
        %v4108 = vsel %vm3984, %v3760, %v4107
        %v4109 = vrot.slane %v3761, 7
        %v4110 = vsel %vm3987, %v4109, %v4108
        %v4111 = vsel %vm3989, %v4109, %v4110
        %v4112 = vsel %vm3991, %v4109, %v4111
        %v4113 = vsel %vm3993, %v4109, %v4112
        %v4114 = vsel %vm3982, %v3762, %v3762
        %v4115 = vsel %vm3984, %v3762, %v4114
        %v4116 = vrot.slane %v3763, 7
        %v4117 = vsel %vm3987, %v4116, %v4115
        %v4118 = vsel %vm3989, %v4116, %v4117
        %v4119 = vsel %vm3991, %v4116, %v4118
        %v4120 = vsel %vm3993, %v4116, %v4119
        %v4121 = vsel %vm3982, %v3764, %v3764
        %v4122 = vsel %vm3984, %v3764, %v4121
        %v4123 = vrot.slane %v3765, 7
        %v4124 = vsel %vm3987, %v4123, %v4122
        %v4125 = vsel %vm3989, %v4123, %v4124
        %v4126 = vsel %vm3991, %v4123, %v4125
        %v4127 = vsel %vm3993, %v4123, %v4126
        %v4128 = vsel %vm3982, %v3766, %v3766
        %v4129 = vsel %vm3984, %v3766, %v4128
        %v4130 = vrot.slane %v3767, 7
        %v4131 = vsel %vm3987, %v4130, %v4129
        %v4132 = vsel %vm3989, %v4130, %v4131
        %v4133 = vsel %vm3991, %v4130, %v4132
        %v4134 = vsel %vm3993, %v4130, %v4133
        %v4135 = vsel %vm3982, %v3768, %v3768
        %v4136 = vsel %vm3984, %v3768, %v4135
        %v4137 = vrot.slane %v3769, 7
        %v4138 = vsel %vm3987, %v4137, %v4136
        %v4139 = vsel %vm3989, %v4137, %v4138
        %v4140 = vsel %vm3991, %v4137, %v4139
        %v4141 = vsel %vm3993, %v4137, %v4140
        %v4142 = vsel %vm3982, %v3770, %v3770
        %v4143 = vsel %vm3984, %v3770, %v4142
        %v4144 = vrot.slane %v3771, 7
        %v4145 = vsel %vm3987, %v4144, %v4143
        %v4146 = vsel %vm3989, %v4144, %v4145
        %v4147 = vsel %vm3991, %v4144, %v4146
        %v4148 = vsel %vm3993, %v4144, %v4147
        %v4149 = vsel %vm3982, %v3772, %v3772
        %v4150 = vsel %vm3984, %v3772, %v4149
        %v4151 = vrot.slane %v3773, 7
        %v4152 = vsel %vm3987, %v4151, %v4150
        %v4153 = vsel %vm3989, %v4151, %v4152
        %v4154 = vsel %vm3991, %v4151, %v4153
        %v4155 = vsel %vm3993, %v4151, %v4154
        %v4156 = vsel %vm3982, %v3774, %v3774
        %v4157 = vsel %vm3984, %v3774, %v4156
        %v4158 = vrot.slane %v3775, 7
        %v4159 = vsel %vm3987, %v4158, %v4157
        %v4160 = vsel %vm3989, %v4158, %v4159
        %v4161 = vsel %vm3991, %v4158, %v4160
        %v4162 = vsel %vm3993, %v4158, %v4161
        %v4163 = vsel %vm3982, %v3776, %v3776
        %v4164 = vsel %vm3984, %v3776, %v4163
        %v4165 = vrot.slane %v3777, 7
        %v4166 = vsel %vm3987, %v4165, %v4164
        %v4167 = vsel %vm3989, %v4165, %v4166
        %v4168 = vsel %vm3991, %v4165, %v4167
        %v4169 = vsel %vm3993, %v4165, %v4168
        %v4170 = vsel %vm3982, %v3778, %v3778
        %v4171 = vsel %vm3984, %v3778, %v4170
        %v4172 = vrot.slane %v3779, 7
        %v4173 = vsel %vm3987, %v4172, %v4171
        %v4174 = vsel %vm3989, %v4172, %v4173
        %v4175 = vsel %vm3991, %v4172, %v4174
        %v4176 = vsel %vm3993, %v4172, %v4175
        %v4177 = vsel %vm3982, %v3780, %v3780
        %v4178 = vsel %vm3984, %v3780, %v4177
        %v4179 = vrot.slane %v3781, 7
        %v4180 = vsel %vm3987, %v4179, %v4178
        %v4181 = vsel %vm3989, %v4179, %v4180
        %v4182 = vsel %vm3991, %v4179, %v4181
        %v4183 = vsel %vm3993, %v4179, %v4182
        %v4184 = vsel %vm3982, %v3782, %v3782
        %v4185 = vsel %vm3984, %v3782, %v4184
        %v4186 = vrot.slane %v3783, 7
        %v4187 = vsel %vm3987, %v4186, %v4185
        %v4188 = vsel %vm3989, %v4186, %v4187
        %v4189 = vsel %vm3991, %v4186, %v4188
        %v4190 = vsel %vm3993, %v4186, %v4189
        %v4191 = vsel %vm3982, %v3784, %v3784
        %v4192 = vsel %vm3984, %v3784, %v4191
        %v4193 = vrot.slane %v3785, 7
        %v4194 = vsel %vm3987, %v4193, %v4192
        %v4195 = vsel %vm3989, %v4193, %v4194
        %v4196 = vsel %vm3991, %v4193, %v4195
        %v4197 = vsel %vm3993, %v4193, %v4196
        %v4198 = vsel %vm3982, %v3786, %v3786
        %v4199 = vsel %vm3984, %v3786, %v4198
        %v4200 = vrot.slane %v3787, 7
        %v4201 = vsel %vm3987, %v4200, %v4199
        %v4202 = vsel %vm3989, %v4200, %v4201
        %v4203 = vsel %vm3991, %v4200, %v4202
        %v4204 = vsel %vm3993, %v4200, %v4203
        %v4205 = vsel %vm3982, %v3788, %v3788
        %v4206 = vsel %vm3984, %v3788, %v4205
        %v4207 = vrot.slane %v3789, 7
        %v4208 = vsel %vm3987, %v4207, %v4206
        %v4209 = vsel %vm3989, %v4207, %v4208
        %v4210 = vsel %vm3991, %v4207, %v4209
        %v4211 = vsel %vm3993, %v4207, %v4210
        %v4212 = vsel %vm3982, %v3790, %v3790
        %v4213 = vsel %vm3984, %v3790, %v4212
        %v4214 = vrot.slane %v3791, 7
        %v4215 = vsel %vm3987, %v4214, %v4213
        %v4216 = vsel %vm3989, %v4214, %v4215
        %v4217 = vsel %vm3991, %v4214, %v4216
        %v4218 = vsel %vm3993, %v4214, %v4217
        %v4219 = vsel %vm3982, %v3792, %v3792
        %v4220 = vsel %vm3984, %v3792, %v4219
        %v4221 = vrot.slane %v3793, 7
        %v4222 = vsel %vm3987, %v4221, %v4220
        %v4223 = vsel %vm3989, %v4221, %v4222
        %v4224 = vsel %vm3991, %v4221, %v4223
        %v4225 = vsel %vm3993, %v4221, %v4224
        %v4226 = vsel %vm3982, %v3794, %v3794
        %v4227 = vsel %vm3984, %v3794, %v4226
        %v4228 = vrot.slane %v3795, 7
        %v4229 = vsel %vm3987, %v4228, %v4227
        %v4230 = vsel %vm3989, %v4228, %v4229
        %v4231 = vsel %vm3991, %v4228, %v4230
        %v4232 = vsel %vm3993, %v4228, %v4231
        %v4233 = vsel %vm3982, %v3796, %v3796
        %v4234 = vsel %vm3984, %v3796, %v4233
        %v4235 = vrot.slane %v3797, 7
        %v4236 = vsel %vm3987, %v4235, %v4234
        %v4237 = vsel %vm3989, %v4235, %v4236
        %v4238 = vsel %vm3991, %v4235, %v4237
        %v4239 = vsel %vm3993, %v4235, %v4238
        %v4240 = vsel %vm3982, %v3798, %v3798
        %v4241 = vsel %vm3984, %v3798, %v4240
        %v4242 = vrot.slane %v3799, 7
        %v4243 = vsel %vm3987, %v4242, %v4241
        %v4244 = vsel %vm3989, %v4242, %v4243
        %v4245 = vsel %vm3991, %v4242, %v4244
        %v4246 = vsel %vm3993, %v4242, %v4245
        %v4247 = vsel %vm3982, %v3800, %v3800
        %v4248 = vsel %vm3984, %v3800, %v4247
        %v4249 = vrot.slane %v3801, 7
        %v4250 = vsel %vm3987, %v4249, %v4248
        %v4251 = vsel %vm3989, %v4249, %v4250
        %v4252 = vsel %vm3991, %v4249, %v4251
        %v4253 = vsel %vm3993, %v4249, %v4252
        %v4254 = vsel %vm3982, %v3802, %v3802
        %v4255 = vsel %vm3984, %v3802, %v4254
        %v4256 = vrot.slane %v3803, 7
        %v4257 = vsel %vm3987, %v4256, %v4255
        %v4258 = vsel %vm3989, %v4256, %v4257
        %v4259 = vsel %vm3991, %v4256, %v4258
        %v4260 = vsel %vm3993, %v4256, %v4259
        %v4261 = vsel %vm3982, %v3804, %v3804
        %v4262 = vsel %vm3984, %v3804, %v4261
        %v4263 = vrot.slane %v3805, 7
        %v4264 = vsel %vm3987, %v4263, %v4262
        %v4265 = vsel %vm3989, %v4263, %v4264
        %v4266 = vsel %vm3991, %v4263, %v4265
        %v4267 = vsel %vm3993, %v4263, %v4266
        %v4268 = vsel %vm3982, %v3806, %v3806
        %v4269 = vsel %vm3984, %v3806, %v4268
        %v4270 = vrot.slane %v3807, 7
        %v4271 = vsel %vm3987, %v4270, %v4269
        %v4272 = vsel %vm3989, %v4270, %v4271
        %v4273 = vsel %vm3991, %v4270, %v4272
        %v4274 = vsel %vm3993, %v4270, %v4273
        %v4275 = vsel %vm3982, %v3808, %v3808
        %v4276 = vsel %vm3984, %v3808, %v4275
        %v4277 = vrot.slane %v3809, 7
        %v4278 = vsel %vm3987, %v4277, %v4276
        %v4279 = vsel %vm3989, %v4277, %v4278
        %v4280 = vsel %vm3991, %v4277, %v4279
        %v4281 = vsel %vm3993, %v4277, %v4280
        %v4282 = vsel %vm3982, %v3810, %v3810
        %v4283 = vsel %vm3984, %v3810, %v4282
        %v4284 = vrot.slane %v3811, 7
        %v4285 = vsel %vm3987, %v4284, %v4283
        %v4286 = vsel %vm3989, %v4284, %v4285
        %v4287 = vsel %vm3991, %v4284, %v4286
        %v4288 = vsel %vm3993, %v4284, %v4287
        %v4289 = vsel %vm3982, %v3812, %v3812
        %v4290 = vsel %vm3984, %v3812, %v4289
        %v4291 = vrot.slane %v3813, 7
        %v4292 = vsel %vm3987, %v4291, %v4290
        %v4293 = vsel %vm3989, %v4291, %v4292
        %v4294 = vsel %vm3991, %v4291, %v4293
        %v4295 = vsel %vm3993, %v4291, %v4294
        %v4296 = vsel %vm3982, %v3814, %v3814
        %v4297 = vsel %vm3984, %v3814, %v4296
        %v4298 = vrot.slane %v3815, 7
        %v4299 = vsel %vm3987, %v4298, %v4297
        %v4300 = vsel %vm3989, %v4298, %v4299
        %v4301 = vsel %vm3991, %v4298, %v4300
        %v4302 = vsel %vm3993, %v4298, %v4301
        %v4303 = vsel %vm3982, %v3816, %v3816
        %v4304 = vsel %vm3984, %v3816, %v4303
        %v4305 = vrot.slane %v3817, 7
        %v4306 = vsel %vm3987, %v4305, %v4304
        %v4307 = vsel %vm3989, %v4305, %v4306
        %v4308 = vsel %vm3991, %v4305, %v4307
        %v4309 = vsel %vm3993, %v4305, %v4308
        %v4310 = vsel %vm3982, %v3818, %v3818
        %v4311 = vsel %vm3984, %v3818, %v4310
        %v4312 = vrot.slane %v3819, 7
        %v4313 = vsel %vm3987, %v4312, %v4311
        %v4314 = vsel %vm3989, %v4312, %v4313
        %v4315 = vsel %vm3991, %v4312, %v4314
        %v4316 = vsel %vm3993, %v4312, %v4315
        %v4317 = vsel %vm3982, %v3820, %v3820
        %v4318 = vsel %vm3984, %v3820, %v4317
        %v4319 = vrot.slane %v3821, 7
        %v4320 = vsel %vm3987, %v4319, %v4318
        %v4321 = vsel %vm3989, %v4319, %v4320
        %v4322 = vsel %vm3991, %v4319, %v4321
        %v4323 = vsel %vm3993, %v4319, %v4322
        %v4324 = vsel %vm3982, %v3822, %v3822
        %v4325 = vsel %vm3984, %v3822, %v4324
        %v4326 = vrot.slane %v3823, 7
        %v4327 = vsel %vm3987, %v4326, %v4325
        %v4328 = vsel %vm3989, %v4326, %v4327
        %v4329 = vsel %vm3991, %v4326, %v4328
        %v4330 = vsel %vm3993, %v4326, %v4329
        %v4331 = vsel %vm3982, %v3824, %v3824
        %v4332 = vsel %vm3984, %v3824, %v4331
        %v4333 = vrot.slane %v3825, 7
        %v4334 = vsel %vm3987, %v4333, %v4332
        %v4335 = vsel %vm3989, %v4333, %v4334
        %v4336 = vsel %vm3991, %v4333, %v4335
        %v4337 = vsel %vm3993, %v4333, %v4336
        %v4338 = vsel %vm3982, %v3826, %v3826
        %v4339 = vsel %vm3984, %v3826, %v4338
        %v4340 = vrot.slane %v3827, 7
        %v4341 = vsel %vm3987, %v4340, %v4339
        %v4342 = vsel %vm3989, %v4340, %v4341
        %v4343 = vsel %vm3991, %v4340, %v4342
        %v4344 = vsel %vm3993, %v4340, %v4343
        %v4345 = vsel %vm3982, %v3828, %v3828
        %v4346 = vsel %vm3984, %v3828, %v4345
        %v4347 = vrot.slane %v3829, 7
        %v4348 = vsel %vm3987, %v4347, %v4346
        %v4349 = vsel %vm3989, %v4347, %v4348
        %v4350 = vsel %vm3991, %v4347, %v4349
        %v4351 = vsel %vm3993, %v4347, %v4350
        %v4352 = vsel %vm3982, %v3830, %v3830
        %v4353 = vsel %vm3984, %v3830, %v4352
        %v4354 = vrot.slane %v3831, 7
        %v4355 = vsel %vm3987, %v4354, %v4353
        %v4356 = vsel %vm3989, %v4354, %v4355
        %v4357 = vsel %vm3991, %v4354, %v4356
        %v4358 = vsel %vm3993, %v4354, %v4357
        %v4359 = vsel %vm3982, %v3832, %v3832
        %v4360 = vsel %vm3984, %v3832, %v4359
        %v4361 = vrot.slane %v3833, 7
        %v4362 = vsel %vm3987, %v4361, %v4360
        %v4363 = vsel %vm3989, %v4361, %v4362
        %v4364 = vsel %vm3991, %v4361, %v4363
        %v4365 = vsel %vm3993, %v4361, %v4364
        %v4366 = vsel %vm3982, %v3834, %v3834
        %v4367 = vsel %vm3984, %v3834, %v4366
        %v4368 = vrot.slane %v3835, 7
        %v4369 = vsel %vm3987, %v4368, %v4367
        %v4370 = vsel %vm3989, %v4368, %v4369
        %v4371 = vsel %vm3991, %v4368, %v4370
        %v4372 = vsel %vm3993, %v4368, %v4371
        %v4373 = vsel %vm3982, %v3836, %v3836
        %v4374 = vsel %vm3984, %v3836, %v4373
        %v4375 = vrot.slane %v3837, 7
        %v4376 = vsel %vm3987, %v4375, %v4374
        %v4377 = vsel %vm3989, %v4375, %v4376
        %v4378 = vsel %vm3991, %v4375, %v4377
        %v4379 = vsel %vm3993, %v4375, %v4378
        %v4380 = vsel %vm3982, %v3838, %v3838
        %v4381 = vsel %vm3984, %v3838, %v4380
        %v4382 = vrot.slane %v3839, 7
        %v4383 = vsel %vm3987, %v4382, %v4381
        %v4384 = vsel %vm3989, %v4382, %v4383
        %v4385 = vsel %vm3991, %v4382, %v4384
        %v4386 = vsel %vm3993, %v4382, %v4385
        %v4387 = vsel %vm3982, %v3840, %v3840
        %v4388 = vsel %vm3984, %v3840, %v4387
        %v4389 = vrot.slane %v3841, 7
        %v4390 = vsel %vm3987, %v4389, %v4388
        %v4391 = vsel %vm3989, %v4389, %v4390
        %v4392 = vsel %vm3991, %v4389, %v4391
        %v4393 = vsel %vm3993, %v4389, %v4392
        %v4394 = vsel %vm3982, %v3842, %v3842
        %v4395 = vsel %vm3984, %v3842, %v4394
        %v4396 = vrot.slane %v3843, 7
        %v4397 = vsel %vm3987, %v4396, %v4395
        %v4398 = vsel %vm3989, %v4396, %v4397
        %v4399 = vsel %vm3991, %v4396, %v4398
        %v4400 = vsel %vm3993, %v4396, %v4399
        %v4401 = vsel %vm3982, %v3844, %v3844
        %v4402 = vsel %vm3984, %v3844, %v4401
        %v4403 = vrot.slane %v3845, 7
        %v4404 = vsel %vm3987, %v4403, %v4402
        %v4405 = vsel %vm3989, %v4403, %v4404
        %v4406 = vsel %vm3991, %v4403, %v4405
        %v4407 = vsel %vm3993, %v4403, %v4406
        %v4408 = vsel %vm3982, %v3846, %v3846
        %v4409 = vsel %vm3984, %v3846, %v4408
        %v4410 = vrot.slane %v3847, 7
        %v4411 = vsel %vm3987, %v4410, %v4409
        %v4412 = vsel %vm3989, %v4410, %v4411
        %v4413 = vsel %vm3991, %v4410, %v4412
        %v4414 = vsel %vm3993, %v4410, %v4413
        %v4415 = vsel %vm3982, %v3848, %v3848
        %v4416 = vsel %vm3984, %v3848, %v4415
        %v4417 = vrot.slane %v3849, 7
        %v4418 = vsel %vm3987, %v4417, %v4416
        %v4419 = vsel %vm3989, %v4417, %v4418
        %v4420 = vsel %vm3991, %v4417, %v4419
        %v4421 = vsel %vm3993, %v4417, %v4420
        %v4422 = vsel %vm3982, %v3850, %v3850
        %v4423 = vsel %vm3984, %v3850, %v4422
        %v4424 = vrot.slane %v3851, 7
        %v4425 = vsel %vm3987, %v4424, %v4423
        %v4426 = vsel %vm3989, %v4424, %v4425
        %v4427 = vsel %vm3991, %v4424, %v4426
        %v4428 = vsel %vm3993, %v4424, %v4427
        %v4429 = vsel %vm3982, %v3852, %v3852
        %v4430 = vsel %vm3984, %v3852, %v4429
        %v4431 = vrot.slane %v3853, 7
        %v4432 = vsel %vm3987, %v4431, %v4430
        %v4433 = vsel %vm3989, %v4431, %v4432
        %v4434 = vsel %vm3991, %v4431, %v4433
        %v4435 = vsel %vm3993, %v4431, %v4434
        %v4500 = vcombine.low %v3994, %v4050
        %v4502 = vunpack.c.l.s4 1934713408
        %v4503 = vunpack.c.0.s8 %v4502
        %v4504 = vlaneseq
        %v4505 = vshrl.u32 %v4504, 7
        %v4506 = vsub.s32 %v4503, %v4505
        %v4507 = vrot.slane %v4500, %v4506
        %v4508 = vcombine.high %v4507, 0.0
        %v4509 = vcombine.low %v4106, %v4162
        %v4511 = vunpack.c.l.s4 1934713408
        %v4512 = vunpack.c.0.s8 %v4511
        %v4513 = vlaneseq
        %v4514 = vshrl.u32 %v4513, 7
        %v4515 = vsub.s32 %v4512, %v4514
        %v4516 = vrot.slane %v4509, %v4515
        %v4517 = vcombine.high %v4516, 0.0
        %v4518 = vcombine.low %v4218, %v4274
        %v4520 = vunpack.c.l.s4 1934713408
        %v4521 = vunpack.c.0.s8 %v4520
        %v4522 = vlaneseq
        %v4523 = vshrl.u32 %v4522, 7
        %v4524 = vsub.s32 %v4521, %v4523
        %v4525 = vrot.slane %v4518, %v4524
        %v4526 = vcombine.high %v4525, 0.0
        %v4527 = vcombine.low %v4330, %v4386
        %v4529 = vunpack.c.l.s4 1934713408
        %v4530 = vunpack.c.0.s8 %v4529
        %v4531 = vlaneseq
        %v4532 = vshrl.u32 %v4531, 7
        %v4533 = vsub.s32 %v4530, %v4532
        %v4534 = vrot.slane %v4527, %v4533
        %v4535 = vcombine.high %v4534, 0.0
        %v4536 = vcombine.low %v4001, %v4057
        %v4538 = vunpack.c.l.s4 1934713408
        %v4539 = vunpack.c.0.s8 %v4538
        %v4540 = vlaneseq
        %v4541 = vshrl.u32 %v4540, 7
        %v4542 = vsub.s32 %v4539, %v4541
        %v4543 = vrot.slane %v4536, %v4542
        %v4544 = vcombine.high %v4543, 0.0
        %v4545 = vcombine.low %v4113, %v4169
        %v4547 = vunpack.c.l.s4 1934713408
        %v4548 = vunpack.c.0.s8 %v4547
        %v4549 = vlaneseq
        %v4550 = vshrl.u32 %v4549, 7
        %v4551 = vsub.s32 %v4548, %v4550
        %v4552 = vrot.slane %v4545, %v4551
        %v4553 = vcombine.high %v4552, 0.0
        %v4554 = vcombine.low %v4225, %v4281
        %v4556 = vunpack.c.l.s4 1934713408
        %v4557 = vunpack.c.0.s8 %v4556
        %v4558 = vlaneseq
        %v4559 = vshrl.u32 %v4558, 7
        %v4560 = vsub.s32 %v4557, %v4559
        %v4561 = vrot.slane %v4554, %v4560
        %v4562 = vcombine.high %v4561, 0.0
        %v4563 = vcombine.low %v4337, %v4393
        %v4565 = vunpack.c.l.s4 1934713408
        %v4566 = vunpack.c.0.s8 %v4565
        %v4567 = vlaneseq
        %v4568 = vshrl.u32 %v4567, 7
        %v4569 = vsub.s32 %v4566, %v4568
        %v4570 = vrot.slane %v4563, %v4569
        %v4571 = vcombine.high %v4570, 0.0
        %v4572 = vcombine.low %v4008, %v4064
        %v4574 = vunpack.c.l.s4 1934713408
        %v4575 = vunpack.c.0.s8 %v4574
        %v4576 = vlaneseq
        %v4577 = vshrl.u32 %v4576, 7
        %v4578 = vsub.s32 %v4575, %v4577
        %v4579 = vrot.slane %v4572, %v4578
        %v4580 = vcombine.high %v4579, 0.0
        %v4581 = vcombine.low %v4120, %v4176
        %v4583 = vunpack.c.l.s4 1934713408
        %v4584 = vunpack.c.0.s8 %v4583
        %v4585 = vlaneseq
        %v4586 = vshrl.u32 %v4585, 7
        %v4587 = vsub.s32 %v4584, %v4586
        %v4588 = vrot.slane %v4581, %v4587
        %v4589 = vcombine.high %v4588, 0.0
        %v4590 = vcombine.low %v4232, %v4288
        %v4592 = vunpack.c.l.s4 1934713408
        %v4593 = vunpack.c.0.s8 %v4592
        %v4594 = vlaneseq
        %v4595 = vshrl.u32 %v4594, 7
        %v4596 = vsub.s32 %v4593, %v4595
        %v4597 = vrot.slane %v4590, %v4596
        %v4598 = vcombine.high %v4597, 0.0
        %v4599 = vcombine.low %v4344, %v4400
        %v4601 = vunpack.c.l.s4 1934713408
        %v4602 = vunpack.c.0.s8 %v4601
        %v4603 = vlaneseq
        %v4604 = vshrl.u32 %v4603, 7
        %v4605 = vsub.s32 %v4602, %v4604
        %v4606 = vrot.slane %v4599, %v4605
        %v4607 = vcombine.high %v4606, 0.0
        %v4608 = vcombine.low %v4015, %v4071
        %v4610 = vunpack.c.l.s4 1934713408
        %v4611 = vunpack.c.0.s8 %v4610
        %v4612 = vlaneseq
        %v4613 = vshrl.u32 %v4612, 7
        %v4614 = vsub.s32 %v4611, %v4613
        %v4615 = vrot.slane %v4608, %v4614
        %v4616 = vcombine.high %v4615, 0.0
        %v4617 = vcombine.low %v4127, %v4183
        %v4619 = vunpack.c.l.s4 1934713408
        %v4620 = vunpack.c.0.s8 %v4619
        %v4621 = vlaneseq
        %v4622 = vshrl.u32 %v4621, 7
        %v4623 = vsub.s32 %v4620, %v4622
        %v4624 = vrot.slane %v4617, %v4623
        %v4625 = vcombine.high %v4624, 0.0
        %v4626 = vcombine.low %v4239, %v4295
        %v4628 = vunpack.c.l.s4 1934713408
        %v4629 = vunpack.c.0.s8 %v4628
        %v4630 = vlaneseq
        %v4631 = vshrl.u32 %v4630, 7
        %v4632 = vsub.s32 %v4629, %v4631
        %v4633 = vrot.slane %v4626, %v4632
        %v4634 = vcombine.high %v4633, 0.0
        %v4635 = vcombine.low %v4351, %v4407
        %v4637 = vunpack.c.l.s4 1934713408
        %v4638 = vunpack.c.0.s8 %v4637
        %v4639 = vlaneseq
        %v4640 = vshrl.u32 %v4639, 7
        %v4641 = vsub.s32 %v4638, %v4640
        %v4642 = vrot.slane %v4635, %v4641
        %v4643 = vcombine.high %v4642, 0.0
        %v4644 = vcombine.low %v4022, %v4078
        %v4646 = vunpack.c.l.s4 1934713408
        %v4647 = vunpack.c.0.s8 %v4646
        %v4648 = vlaneseq
        %v4649 = vshrl.u32 %v4648, 7
        %v4650 = vsub.s32 %v4647, %v4649
        %v4651 = vrot.slane %v4644, %v4650
        %v4652 = vcombine.high %v4651, 0.0
        %v4653 = vcombine.low %v4134, %v4190
        %v4655 = vunpack.c.l.s4 1934713408
        %v4656 = vunpack.c.0.s8 %v4655
        %v4657 = vlaneseq
        %v4658 = vshrl.u32 %v4657, 7
        %v4659 = vsub.s32 %v4656, %v4658
        %v4660 = vrot.slane %v4653, %v4659
        %v4661 = vcombine.high %v4660, 0.0
        %v4662 = vcombine.low %v4246, %v4302
        %v4664 = vunpack.c.l.s4 1934713408
        %v4665 = vunpack.c.0.s8 %v4664
        %v4666 = vlaneseq
        %v4667 = vshrl.u32 %v4666, 7
        %v4668 = vsub.s32 %v4665, %v4667
        %v4669 = vrot.slane %v4662, %v4668
        %v4670 = vcombine.high %v4669, 0.0
        %v4671 = vcombine.low %v4358, %v4414
        %v4673 = vunpack.c.l.s4 1934713408
        %v4674 = vunpack.c.0.s8 %v4673
        %v4675 = vlaneseq
        %v4676 = vshrl.u32 %v4675, 7
        %v4677 = vsub.s32 %v4674, %v4676
        %v4678 = vrot.slane %v4671, %v4677
        %v4679 = vcombine.high %v4678, 0.0
        %v4680 = vcombine.low %v4029, %v4085
        %v4682 = vunpack.c.l.s4 1934713408
        %v4683 = vunpack.c.0.s8 %v4682
        %v4684 = vlaneseq
        %v4685 = vshrl.u32 %v4684, 7
        %v4686 = vsub.s32 %v4683, %v4685
        %v4687 = vrot.slane %v4680, %v4686
        %v4688 = vcombine.high %v4687, 0.0
        %v4689 = vcombine.low %v4141, %v4197
        %v4691 = vunpack.c.l.s4 1934713408
        %v4692 = vunpack.c.0.s8 %v4691
        %v4693 = vlaneseq
        %v4694 = vshrl.u32 %v4693, 7
        %v4695 = vsub.s32 %v4692, %v4694
        %v4696 = vrot.slane %v4689, %v4695
        %v4697 = vcombine.high %v4696, 0.0
        %v4698 = vcombine.low %v4253, %v4309
        %v4700 = vunpack.c.l.s4 1934713408
        %v4701 = vunpack.c.0.s8 %v4700
        %v4702 = vlaneseq
        %v4703 = vshrl.u32 %v4702, 7
        %v4704 = vsub.s32 %v4701, %v4703
        %v4705 = vrot.slane %v4698, %v4704
        %v4706 = vcombine.high %v4705, 0.0
        %v4707 = vcombine.low %v4365, %v4421
        %v4709 = vunpack.c.l.s4 1934713408
        %v4710 = vunpack.c.0.s8 %v4709
        %v4711 = vlaneseq
        %v4712 = vshrl.u32 %v4711, 7
        %v4713 = vsub.s32 %v4710, %v4712
        %v4714 = vrot.slane %v4707, %v4713
        %v4715 = vcombine.high %v4714, 0.0
        %v4716 = vcombine.low %v4036, %v4092
        %v4718 = vunpack.c.l.s4 1934713408
        %v4719 = vunpack.c.0.s8 %v4718
        %v4720 = vlaneseq
        %v4721 = vshrl.u32 %v4720, 7
        %v4722 = vsub.s32 %v4719, %v4721
        %v4723 = vrot.slane %v4716, %v4722
        %v4724 = vcombine.high %v4723, 0.0
        %v4725 = vcombine.low %v4148, %v4204
        %v4727 = vunpack.c.l.s4 1934713408
        %v4728 = vunpack.c.0.s8 %v4727
        %v4729 = vlaneseq
        %v4730 = vshrl.u32 %v4729, 7
        %v4731 = vsub.s32 %v4728, %v4730
        %v4732 = vrot.slane %v4725, %v4731
        %v4733 = vcombine.high %v4732, 0.0
        %v4734 = vcombine.low %v4260, %v4316
        %v4736 = vunpack.c.l.s4 1934713408
        %v4737 = vunpack.c.0.s8 %v4736
        %v4738 = vlaneseq
        %v4739 = vshrl.u32 %v4738, 7
        %v4740 = vsub.s32 %v4737, %v4739
        %v4741 = vrot.slane %v4734, %v4740
        %v4742 = vcombine.high %v4741, 0.0
        %v4743 = vcombine.low %v4372, %v4428
        %v4745 = vunpack.c.l.s4 1934713408
        %v4746 = vunpack.c.0.s8 %v4745
        %v4747 = vlaneseq
        %v4748 = vshrl.u32 %v4747, 7
        %v4749 = vsub.s32 %v4746, %v4748
        %v4750 = vrot.slane %v4743, %v4749
        %v4751 = vcombine.high %v4750, 0.0
        %v4752 = vcombine.low %v4043, %v4099
        %v4754 = vunpack.c.l.s4 1934713408
        %v4755 = vunpack.c.0.s8 %v4754
        %v4756 = vlaneseq
        %v4757 = vshrl.u32 %v4756, 7
        %v4758 = vsub.s32 %v4755, %v4757
        %v4759 = vrot.slane %v4752, %v4758
        %v4760 = vcombine.high %v4759, 0.0
        %v4761 = vcombine.low %v4155, %v4211
        %v4763 = vunpack.c.l.s4 1934713408
        %v4764 = vunpack.c.0.s8 %v4763
        %v4765 = vlaneseq
        %v4766 = vshrl.u32 %v4765, 7
        %v4767 = vsub.s32 %v4764, %v4766
        %v4768 = vrot.slane %v4761, %v4767
        %v4769 = vcombine.high %v4768, 0.0
        %v4770 = vcombine.low %v4267, %v4323
        %v4772 = vunpack.c.l.s4 1934713408
        %v4773 = vunpack.c.0.s8 %v4772
        %v4774 = vlaneseq
        %v4775 = vshrl.u32 %v4774, 7
        %v4776 = vsub.s32 %v4773, %v4775
        %v4777 = vrot.slane %v4770, %v4776
        %v4778 = vcombine.high %v4777, 0.0
        %v4779 = vcombine.low %v4379, %v4435
        %v4781 = vunpack.c.l.s4 1934713408
        %v4782 = vunpack.c.0.s8 %v4781
        %v4783 = vlaneseq
        %v4784 = vshrl.u32 %v4783, 7
        %v4785 = vsub.s32 %v4782, %v4784
        %v4786 = vrot.slane %v4779, %v4785
        %v4787 = vcombine.high %v4786, 0.0
        %v4792 = vcombine.low %v4507, %v4516
        %v4793 = vcombine.low %v4525, %v4534
        %v4795 = vunpack.c.l.s4 1983009808
        %v4796 = vunpack.c.0.s8 %v4795
        %v4797 = vlaneseq
        %v4798 = vshrl.u32 %v4797, 7
        %v4799 = vsub.s32 %v4796, %v4798
        %v4800 = vrot.slane %v4792, %v4799
        %v4802 = vunpack.c.l.s4 1983009808
        %v4803 = vunpack.c.0.s8 %v4802
        %v4804 = vlaneseq
        %v4805 = vshrl.u32 %v4804, 7
        %v4806 = vsub.s32 %v4803, %v4805
        %v4807 = vrot.slane %v4793, %v4806
        %v4808 = vcombine.low %v4800, %v4807
        %v4814 = vcombine.low %v4508, %v4517
        %v4815 = vcombine.low %v4526, %v4535
        %v4817 = vunpack.c.l.s4 1983009808
        %v4818 = vunpack.c.0.s8 %v4817
        %v4819 = vlaneseq
        %v4820 = vshrl.u32 %v4819, 7
        %v4821 = vsub.s32 %v4818, %v4820
        %v4822 = vrot.slane %v4814, %v4821
        %v4824 = vunpack.c.l.s4 1983009808
        %v4825 = vunpack.c.0.s8 %v4824
        %v4826 = vlaneseq
        %v4827 = vshrl.u32 %v4826, 7
        %v4828 = vsub.s32 %v4825, %v4827
        %v4829 = vrot.slane %v4815, %v4828
        %v4830 = vcombine.low %v4822, %v4829
        %4831 = vrot.lane.b32.xlu0 %v4830, 8
        %v4832 = vpop.permute.xlu0 %4831
        %v4838 = vcombine.low %v4543, %v4552
        %v4839 = vcombine.low %v4561, %v4570
        %v4841 = vunpack.c.l.s4 1983009808
        %v4842 = vunpack.c.0.s8 %v4841
        %v4843 = vlaneseq
        %v4844 = vshrl.u32 %v4843, 7
        %v4845 = vsub.s32 %v4842, %v4844
        %v4846 = vrot.slane %v4838, %v4845
        %v4848 = vunpack.c.l.s4 1983009808
        %v4849 = vunpack.c.0.s8 %v4848
        %v4850 = vlaneseq
        %v4851 = vshrl.u32 %v4850, 7
        %v4852 = vsub.s32 %v4849, %v4851
        %v4853 = vrot.slane %v4839, %v4852
        %v4854 = vcombine.low %v4846, %v4853
        %4855 = vrot.lane.b32.xlu0 %v4854, 16
        %v4856 = vpop.permute.xlu0 %4855
        %v4862 = vcombine.low %v4544, %v4553
        %v4863 = vcombine.low %v4562, %v4571
        %v4865 = vunpack.c.l.s4 1983009808
        %v4866 = vunpack.c.0.s8 %v4865
        %v4867 = vlaneseq
        %v4868 = vshrl.u32 %v4867, 7
        %v4869 = vsub.s32 %v4866, %v4868
        %v4870 = vrot.slane %v4862, %v4869
        %v4872 = vunpack.c.l.s4 1983009808
        %v4873 = vunpack.c.0.s8 %v4872
        %v4874 = vlaneseq
        %v4875 = vshrl.u32 %v4874, 7
        %v4876 = vsub.s32 %v4873, %v4875
        %v4877 = vrot.slane %v4863, %v4876
        %v4878 = vcombine.low %v4870, %v4877
        %4879 = vrot.lane.b32.xlu0 %v4878, 24
        %v4880 = vpop.permute.xlu0 %4879
        %v4886 = vcombine.low %v4579, %v4588
        %v4887 = vcombine.low %v4597, %v4606
        %v4889 = vunpack.c.l.s4 1983009808
        %v4890 = vunpack.c.0.s8 %v4889
        %v4891 = vlaneseq
        %v4892 = vshrl.u32 %v4891, 7
        %v4893 = vsub.s32 %v4890, %v4892
        %v4894 = vrot.slane %v4886, %v4893
        %v4896 = vunpack.c.l.s4 1983009808
        %v4897 = vunpack.c.0.s8 %v4896
        %v4898 = vlaneseq
        %v4899 = vshrl.u32 %v4898, 7
        %v4900 = vsub.s32 %v4897, %v4899
        %v4901 = vrot.slane %v4887, %v4900
        %v4902 = vcombine.low %v4894, %v4901
        %4903 = vrot.lane.b32.xlu0 %v4902, 32
        %v4904 = vpop.permute.xlu0 %4903
        %v4910 = vcombine.low %v4580, %v4589
        %v4911 = vcombine.low %v4598, %v4607
        %v4913 = vunpack.c.l.s4 1983009808
        %v4914 = vunpack.c.0.s8 %v4913
        %v4915 = vlaneseq
        %v4916 = vshrl.u32 %v4915, 7
        %v4917 = vsub.s32 %v4914, %v4916
        %v4918 = vrot.slane %v4910, %v4917
        %v4920 = vunpack.c.l.s4 1983009808
        %v4921 = vunpack.c.0.s8 %v4920
        %v4922 = vlaneseq
        %v4923 = vshrl.u32 %v4922, 7
        %v4924 = vsub.s32 %v4921, %v4923
        %v4925 = vrot.slane %v4911, %v4924
        %v4926 = vcombine.low %v4918, %v4925
        %4927 = vrot.lane.b32.xlu0 %v4926, 40
        %v4928 = vpop.permute.xlu0 %4927
        %v4934 = vcombine.low %v4615, %v4624
        %v4935 = vcombine.low %v4633, %v4642
        %v4937 = vunpack.c.l.s4 1983009808
        %v4938 = vunpack.c.0.s8 %v4937
        %v4939 = vlaneseq
        %v4940 = vshrl.u32 %v4939, 7
        %v4941 = vsub.s32 %v4938, %v4940
        %v4942 = vrot.slane %v4934, %v4941
        %v4944 = vunpack.c.l.s4 1983009808
        %v4945 = vunpack.c.0.s8 %v4944
        %v4946 = vlaneseq
        %v4947 = vshrl.u32 %v4946, 7
        %v4948 = vsub.s32 %v4945, %v4947
        %v4949 = vrot.slane %v4935, %v4948
        %v4950 = vcombine.low %v4942, %v4949
        %4951 = vrot.lane.b32.xlu0 %v4950, 48
        %v4952 = vpop.permute.xlu0 %4951
        %v4958 = vcombine.low %v4616, %v4625
        %v4959 = vcombine.low %v4634, %v4643
        %v4961 = vunpack.c.l.s4 1983009808
        %v4962 = vunpack.c.0.s8 %v4961
        %v4963 = vlaneseq
        %v4964 = vshrl.u32 %v4963, 7
        %v4965 = vsub.s32 %v4962, %v4964
        %v4966 = vrot.slane %v4958, %v4965
        %v4968 = vunpack.c.l.s4 1983009808
        %v4969 = vunpack.c.0.s8 %v4968
        %v4970 = vlaneseq
        %v4971 = vshrl.u32 %v4970, 7
        %v4972 = vsub.s32 %v4969, %v4971
        %v4973 = vrot.slane %v4959, %v4972
        %v4974 = vcombine.low %v4966, %v4973
        %4975 = vrot.lane.b32.xlu0 %v4974, 56
        %v4976 = vpop.permute.xlu0 %4975
        %v4982 = vcombine.low %v4651, %v4660
        %v4983 = vcombine.low %v4669, %v4678
        %v4985 = vunpack.c.l.s4 1983009808
        %v4986 = vunpack.c.0.s8 %v4985
        %v4987 = vlaneseq
        %v4988 = vshrl.u32 %v4987, 7
        %v4989 = vsub.s32 %v4986, %v4988
        %v4990 = vrot.slane %v4982, %v4989
        %v4992 = vunpack.c.l.s4 1983009808
        %v4993 = vunpack.c.0.s8 %v4992
        %v4994 = vlaneseq
        %v4995 = vshrl.u32 %v4994, 7
        %v4996 = vsub.s32 %v4993, %v4995
        %v4997 = vrot.slane %v4983, %v4996
        %v4998 = vcombine.low %v4990, %v4997
        %4999 = vrot.lane.b32.xlu0 %v4998, 64
        %v5000 = vpop.permute.xlu0 %4999
        %v5006 = vcombine.low %v4652, %v4661
        %v5007 = vcombine.low %v4670, %v4679
        %v5009 = vunpack.c.l.s4 1983009808
        %v5010 = vunpack.c.0.s8 %v5009
        %v5011 = vlaneseq
        %v5012 = vshrl.u32 %v5011, 7
        %v5013 = vsub.s32 %v5010, %v5012
        %v5014 = vrot.slane %v5006, %v5013
        %v5016 = vunpack.c.l.s4 1983009808
        %v5017 = vunpack.c.0.s8 %v5016
        %v5018 = vlaneseq
        %v5019 = vshrl.u32 %v5018, 7
        %v5020 = vsub.s32 %v5017, %v5019
        %v5021 = vrot.slane %v5007, %v5020
        %v5022 = vcombine.low %v5014, %v5021
        %5023 = vrot.lane.b32.xlu0 %v5022, 72
        %v5024 = vpop.permute.xlu0 %5023
        %v5030 = vcombine.low %v4687, %v4696
        %v5031 = vcombine.low %v4705, %v4714
        %v5033 = vunpack.c.l.s4 1983009808
        %v5034 = vunpack.c.0.s8 %v5033
        %v5035 = vlaneseq
        %v5036 = vshrl.u32 %v5035, 7
        %v5037 = vsub.s32 %v5034, %v5036
        %v5038 = vrot.slane %v5030, %v5037
        %v5040 = vunpack.c.l.s4 1983009808
        %v5041 = vunpack.c.0.s8 %v5040
        %v5042 = vlaneseq
        %v5043 = vshrl.u32 %v5042, 7
        %v5044 = vsub.s32 %v5041, %v5043
        %v5045 = vrot.slane %v5031, %v5044
        %v5046 = vcombine.low %v5038, %v5045
        %5047 = vrot.lane.b32.xlu0 %v5046, 80
        %v5048 = vpop.permute.xlu0 %5047
        %v5054 = vcombine.low %v4688, %v4697
        %v5055 = vcombine.low %v4706, %v4715
        %v5057 = vunpack.c.l.s4 1983009808
        %v5058 = vunpack.c.0.s8 %v5057
        %v5059 = vlaneseq
        %v5060 = vshrl.u32 %v5059, 7
        %v5061 = vsub.s32 %v5058, %v5060
        %v5062 = vrot.slane %v5054, %v5061
        %v5064 = vunpack.c.l.s4 1983009808
        %v5065 = vunpack.c.0.s8 %v5064
        %v5066 = vlaneseq
        %v5067 = vshrl.u32 %v5066, 7
        %v5068 = vsub.s32 %v5065, %v5067
        %v5069 = vrot.slane %v5055, %v5068
        %v5070 = vcombine.low %v5062, %v5069
        %5071 = vrot.lane.b32.xlu0 %v5070, 88
        %v5072 = vpop.permute.xlu0 %5071
        %v5078 = vcombine.low %v4723, %v4732
        %v5079 = vcombine.low %v4741, %v4750
        %v5081 = vunpack.c.l.s4 1983009808
        %v5082 = vunpack.c.0.s8 %v5081
        %v5083 = vlaneseq
        %v5084 = vshrl.u32 %v5083, 7
        %v5085 = vsub.s32 %v5082, %v5084
        %v5086 = vrot.slane %v5078, %v5085
        %v5088 = vunpack.c.l.s4 1983009808
        %v5089 = vunpack.c.0.s8 %v5088
        %v5090 = vlaneseq
        %v5091 = vshrl.u32 %v5090, 7
        %v5092 = vsub.s32 %v5089, %v5091
        %v5093 = vrot.slane %v5079, %v5092
        %v5094 = vcombine.low %v5086, %v5093
        %5095 = vrot.lane.b32.xlu0 %v5094, 96
        %v5096 = vpop.permute.xlu0 %5095
        %v5102 = vcombine.low %v4724, %v4733
        %v5103 = vcombine.low %v4742, %v4751
        %v5105 = vunpack.c.l.s4 1983009808
        %v5106 = vunpack.c.0.s8 %v5105
        %v5107 = vlaneseq
        %v5108 = vshrl.u32 %v5107, 7
        %v5109 = vsub.s32 %v5106, %v5108
        %v5110 = vrot.slane %v5102, %v5109
        %v5112 = vunpack.c.l.s4 1983009808
        %v5113 = vunpack.c.0.s8 %v5112
        %v5114 = vlaneseq
        %v5115 = vshrl.u32 %v5114, 7
        %v5116 = vsub.s32 %v5113, %v5115
        %v5117 = vrot.slane %v5103, %v5116
        %v5118 = vcombine.low %v5110, %v5117
        %5119 = vrot.lane.b32.xlu0 %v5118, 104
        %v5120 = vpop.permute.xlu0 %5119
        %v5126 = vcombine.low %v4759, %v4768
        %v5127 = vcombine.low %v4777, %v4786
        %v5129 = vunpack.c.l.s4 1983009808
        %v5130 = vunpack.c.0.s8 %v5129
        %v5131 = vlaneseq
        %v5132 = vshrl.u32 %v5131, 7
        %v5133 = vsub.s32 %v5130, %v5132
        %v5134 = vrot.slane %v5126, %v5133
        %v5136 = vunpack.c.l.s4 1983009808
        %v5137 = vunpack.c.0.s8 %v5136
        %v5138 = vlaneseq
        %v5139 = vshrl.u32 %v5138, 7
        %v5140 = vsub.s32 %v5137, %v5139
        %v5141 = vrot.slane %v5127, %v5140
        %v5142 = vcombine.low %v5134, %v5141
        %5143 = vrot.lane.b32.xlu0 %v5142, 112
        %v5144 = vpop.permute.xlu0 %5143
        %v5150 = vcombine.low %v4760, %v4769
        %v5151 = vcombine.low %v4778, %v4787
        %v5153 = vunpack.c.l.s4 1983009808
        %v5154 = vunpack.c.0.s8 %v5153
        %v5155 = vlaneseq
        %v5156 = vshrl.u32 %v5155, 7
        %v5157 = vsub.s32 %v5154, %v5156
        %v5158 = vrot.slane %v5150, %v5157
        %v5160 = vunpack.c.l.s4 1983009808
        %v5161 = vunpack.c.0.s8 %v5160
        %v5162 = vlaneseq
        %v5163 = vshrl.u32 %v5162, 7
        %v5164 = vsub.s32 %v5161, %v5163
        %v5165 = vrot.slane %v5151, %v5164
        %v5166 = vcombine.low %v5158, %v5165
        %5167 = vrot.lane.b32.xlu0 %v5166, 120
        %v5168 = vpop.permute.xlu0 %5167
        %vm5170 = vcmask 64512
        %v5171 = vsel %vm5170, %v4808, %v4832
        %vm5172 = vcmask 130048
        %v5173 = vsel %vm5172, %v5171, %v4856
        %vm5174 = vcmask 195584
        %v5175 = vsel %vm5174, %v5173, %v4880
        %vm5176 = vcmask 261120
        %v5177 = vsel %vm5176, %v5175, %v4904
        %vm5178 = vcmask 326656
        %v5179 = vsel %vm5178, %v5177, %v4928
        %vm5180 = vcmask 392192
        %v5181 = vsel %vm5180, %v5179, %v4952
        %vm5182 = vcmask 457728
        %v5183 = vsel %vm5182, %v5181, %v4976
        %vm5184 = vcmask 523264
        %v5185 = vsel %vm5184, %v5183, %v5000
        %vm5186 = vcmask 588800
        %v5187 = vsel %vm5186, %v5185, %v5024
        %vm5188 = vcmask 654336
        %v5189 = vsel %vm5188, %v5187, %v5048
        %vm5190 = vcmask 719872
        %v5191 = vsel %vm5190, %v5189, %v5072
        %vm5192 = vcmask 785408
        %v5193 = vsel %vm5192, %v5191, %v5096
        %vm5194 = vcmask 850944
        %v5195 = vsel %vm5194, %v5193, %v5120
        %vm5196 = vcmask 916480
        %v5197 = vsel %vm5196, %v5195, %v5144
        %vm5198 = vcmask 982016
        %v5199 = vsel %vm5198, %v5197, %v5168
        %5200 = vst [vmem:[%s334] sm:$0xff] %v5199
        %s5201 = sand.u32 %s183, 1
        %s5202 = scalar_lea.sflag [#allocation3], %s5201
        %s5203 = sand.u32 %s183, 1
        %s5204 = smul.addr %s5203, 8
        %s5205 = scalar_lea.vmem [#allocation2], %s5204
        // Predicated region
        $region41: #{tpu_custom_call.1} parent=39 // pred_check
          %p5206 = pneg %p193
        $region42: #{tpu_custom_call.1} parent=39 // pred_check_branch
          %5208 = sbr.rel (%p5206) target = $region44
        $region43: #{tpu_custom_call.1} parent=39 // pred_region
          %s5210 = ssub.s32 128, 128
          %5211 = vsyncadd %s5202, %s5210
          %s5212 = smul.addr %s23, 2
          %s5213 = sadd.s32 %s24, %s5212
          %s5214 = smul.addr %s5213, 128
          %s5215 = scalar_lea.hbm %s5, %s5214
          %s5217 = sshll.u32 %s5205, 4
          %s5218 = int_to_ptr.vmem [resolvable:$true] %s5217
          %5220 = dma.vmem_to_hbm [thread:$0]  %s5218, 128, %s5215, %s5202
        $region44: #{tpu_custom_call.1} parent=39 // pred_fallthru
          _
      $region40: #{tpu_custom_call.1} parent=5 // pred_fallthru
        _
      %p5221 = scmp.le.s32.totalorder 2, %s14
      // Predicated region
      $region45: #{tpu_custom_call.1} parent=5 // pred_check
        %p5222 = pneg %p5221
      $region46: #{tpu_custom_call.1} parent=5 // pred_check_branch
        %5224 = sbr.rel (%p5222) target = $region48
      $region47: #{tpu_custom_call.1} parent=5 // pred_region
        %s5225 = ssub.s32 %s14, 2
        // Predicated region
        $region49: #{tpu_custom_call.1} parent=47 // pred_check
          %p5226 = pneg %p199
        $region50: #{tpu_custom_call.1} parent=47 // pred_check_branch
          %5228 = sbr.rel (%p5226) target = $region52
        $region51: #{tpu_custom_call.1} parent=47 // pred_region
          %s5229 = sand.u32 %s184, 1
          %s5230 = scalar_lea.sflag [#allocation3], %s5229
          %s5231 = sand.u32 %s184, 1
          %s5232 = smul.addr %s5231, 8
          %s5233 = scalar_lea.vmem [#allocation2], %s5232
          %5234 = dma.done %s5230, 128
        $region52: #{tpu_custom_call.1} parent=47 // pred_fallthru
          _
      $region48: #{tpu_custom_call.1} parent=5 // pred_fallthru
        _
    $region6: #{tpu_custom_call.1} parent=1 // loop_footer
      %s18 = sadd.s32 1, %s14
    $region7: #{tpu_custom_call.1} parent=1 // loop_footer_branch
      %13 = sbr.rel target = $region3
    $region8: #{tpu_custom_call.1} parent=1 // loop_exit
      _
    %5235 = vsyncpa [#allocation3], 1
    %s5236 = scalar_lea.sflag [#allocation3], 1
    %5237 = vsyncpa %s5236, 1

</llo_original>
